<compile_context>
chip_gen: v7x
topology: tpu7x:2x2x1
jax: 0.10.0
libtpu: 0.0.40
codegen_flags: <defaults>
</compile_context>

<pallas_src>
import math

import jax
import jax.numpy as jnp
from jax.experimental import pallas as pl
from jax.experimental.pallas import tpu as pltpu

# ----------------- small, forward-consistent config -----------------
BATCH = 2
SEQ = 8
DIM = 32          # model dim
HIDDEN = 64       # FFN hidden dim
HEADS = 4
NUM_BLOCKS = 2
VOCAB = 50
MAX_LEN = 64
PAD_IDX = 0
LN_EPS = 1e-5
HEAD_DIM = DIM // HEADS


# ----------------------------- kernel -------------------------------
def _gelu(x):
    # TODO(synk): torch.nn.GELU default is the erf form; tanh approximation used here
    # (EUP tanh) — small systematic numerical deviation, identical asymptotics.
    c = math.sqrt(2.0 / math.pi)
    return 0.5 * x * (1.0 + jnp.tanh(c * (x + 0.044715 * x * x * x)))


def _layernorm(x, g, b):
    mean = jnp.mean(x, axis=-1, keepdims=True)
    var = jnp.mean(jnp.square(x - mean), axis=-1, keepdims=True)
    return (x - mean) * jax.lax.rsqrt(var + LN_EPS) * g + b


def _bert_kernel(emb_ref, mask_ref,
                 wqkv_ref, bqkv_ref, wo_ref, bo_ref,
                 w1_ref, b1_ref, w2_ref, b2_ref,
                 ln1g_ref, ln1b_ref, ln2g_ref, ln2b_ref,
                 o_ref):
    """One grid step = one batch element; the whole encoder stack runs out of VMEM."""
    x = emb_ref[0]          # (S, D)  f32, already scaled by sqrt(D)
    mask = mask_ref[0]      # (1, S)  additive mask: 0 (attend) / -1e9 (pad)
    scale = 1.0 / math.sqrt(HEAD_DIM)

    for blk in range(NUM_BLOCKS):          # static unroll over encoder blocks
        # ---- fused QKV projection: one lane-dense (S, D) x (D, 3D) MXU matmul ----
        qkv = jnp.dot(x.astype(jnp.bfloat16), wqkv_ref[blk],
                      preferred_element_type=jnp.float32) + bqkv_ref[blk]   # (S, 3D) f32

        # ---- multi-head attention; head split/merge via static lane slices ----
        head_outs = []
        for h in range(HEADS):             # static unroll over heads (tiny (S,dh) tiles)
            q = qkv[:, h * HEAD_DIM:(h + 1) * HEAD_DIM]                       # (S, dh)
            k = qkv[:, DIM + h * HEAD_DIM:DIM + (h + 1) * HEAD_DIM]           # (S, dh)
            v = qkv[:, 2 * DIM + h * HEAD_DIM:2 * DIM + (h + 1) * HEAD_DIM]   # (S, dh)
            # scores: (S, S) = q @ k^T  (contract over head_dim)
            s = jax.lax.dot_general(q, k, (((1,), (1,)), ((), ())),
                                    preferred_element_type=jnp.float32) * scale
            s = s + mask                                       # broadcast (1,S) over rows
            s = s - jnp.max(s, axis=-1, keepdims=True)         # numerically safe softmax
            p = jnp.exp(s)
            p = p * pl.reciprocal(jnp.sum(p, axis=-1, keepdims=True), approx=True)
            head_outs.append(jnp.dot(p, v, preferred_element_type=jnp.float32))
        attn = jnp.concatenate(head_outs, axis=-1)                            # (S, D) f32

        # ---- output projection ----
        attn = jnp.dot(attn.astype(jnp.bfloat16), wo_ref[blk],
                       preferred_element_type=jnp.float32) + bo_ref[blk]

        # ---- residual + LayerNorm 1 (f32) ----
        x1 = _layernorm(attn + x, ln1g_ref[blk], ln1b_ref[blk])

        # ---- feed-forward: bf16 matmuls, f32 accumulate, f32 GELU ----
        h1 = _gelu(jnp.dot(x1.astype(jnp.bfloat16), w1_ref[blk],
                           preferred_element_type=jnp.float32) + b1_ref[blk])
        ff = jnp.dot(h1.astype(jnp.bfloat16), w2_ref[blk],
                     preferred_element_type=jnp.float32) + b2_ref[blk]

        # ---- residual + LayerNorm 2 (f32) ----
        x = _layernorm(ff + x1, ln2g_ref[blk], ln2b_ref[blk])

    o_ref[0] = x.astype(o_ref.dtype)


def bert_encoder_stack(emb, mask_add, p):
    """emb: (B, S, D) f32; mask_add: (B, 1, S) f32 -> (B, S, D) f32."""
    B, S, D = emb.shape
    full = lambda b: (0, 0, 0)            # noqa: E731  weights resident, fetched once

    return pl.pallas_call(
        _bert_kernel,
        out_shape=jax.ShapeDtypeStruct((B, S, D), jnp.float32),
        grid=(B,),
        in_specs=[
            pl.BlockSpec((1, S, D), lambda b: (b, 0, 0)),                 # emb
            pl.BlockSpec((1, 1, S), lambda b: (b, 0, 0)),                 # additive mask
            pl.BlockSpec((NUM_BLOCKS, DIM, 3 * DIM), full),               # wqkv (bf16)
            pl.BlockSpec((NUM_BLOCKS, 1, 3 * DIM), full),                 # bqkv
            pl.BlockSpec((NUM_BLOCKS, DIM, DIM), full),                   # wo (bf16)
            pl.BlockSpec((NUM_BLOCKS, 1, DIM), full),                     # bo
            pl.BlockSpec((NUM_BLOCKS, DIM, HIDDEN), full),                # w1 (bf16)
            pl.BlockSpec((NUM_BLOCKS, 1, HIDDEN), full),                  # b1
            pl.BlockSpec((NUM_BLOCKS, HIDDEN, DIM), full),                # w2 (bf16)
            pl.BlockSpec((NUM_BLOCKS, 1, DIM), full),                     # b2
            pl.BlockSpec((NUM_BLOCKS, 1, DIM), full),                     # ln1_g
            pl.BlockSpec((NUM_BLOCKS, 1, DIM), full),                     # ln1_b
            pl.BlockSpec((NUM_BLOCKS, 1, DIM), full),                     # ln2_g
            pl.BlockSpec((NUM_BLOCKS, 1, DIM), full),                     # ln2_b
        ],
        out_specs=pl.BlockSpec((1, S, D), lambda b: (b, 0, 0)),
        compiler_params=pltpu.CompilerParams(
            dimension_semantics=("parallel",)),       # megacore split over batch (v7x)
    )(emb, mask_add,
      p["wqkv"], p["bqkv"], p["wo"], p["bo"],
      p["w1"], p["b1"], p["w2"], p["b2"],
      p["ln1_g"], p["ln1_b"], p["ln2_g"], p["ln2_b"])


# -------------------------- params & glue -----------------------------
def init_params(key):
    def dense(k, fan_in, fan_out):
        kw, kb = jax.random.split(k)
        w = jax.random.normal(kw, (fan_in, fan_out), jnp.float32) * 0.02
        b = jax.random.normal(kb, (fan_out,), jnp.float32) * 0.02
        return w, b

    keys = jax.random.split(key, 2 + NUM_BLOCKS)
    params = {}
    params["tok_emb"] = jax.random.normal(keys[0], (VOCAB, DIM), jnp.float32) * 0.02
    params["seg_emb"] = jax.random.normal(keys[1], (2, DIM), jnp.float32) * 0.02

    # TODO(synk): original BertEmbedding internals unavailable; using
    # token + segment + sinusoidal-position sum (no embedding LayerNorm/dropout).
    pos = jnp.arange(MAX_LEN, dtype=jnp.float32)[:, None]
    div = jnp.exp(jnp.arange(0, DIM, 2, dtype=jnp.float32) * (-math.log(10000.0) / DIM))
    pe = jnp.zeros((MAX_LEN, DIM), jnp.float32)
    pe = pe.at[:, 0::2].set(jnp.sin(pos * div))
    pe = pe.at[:, 1::2].set(jnp.cos(pos * div))
    params["pos_emb"] = pe

    wqkv, bqkv, wo, bo, w1, b1, w2, b2 = [], [], [], [], [], [], [], []
    ln1g, ln1b, ln2g, ln2b = [], [], [], []
    for i in range(NUM_BLOCKS):
        bk = jax.random.split(keys[2 + i], 6)
        wq, bq_ = dense(bk[0], DIM, DIM)
        wk_, bk__ = dense(bk[1], DIM, DIM)
        wv, bv = dense(bk[2], DIM, DIM)
        wo_i, bo_i = dense(bk[3], DIM, DIM)
        w1_i, b1_i = dense(bk[4], DIM, HIDDEN)
        w2_i, b2_i = dense(bk[5], HIDDEN, DIM)
        wqkv.append(jnp.concatenate([wq, wk_, wv], axis=1))          # (D, 3D)
        bqkv.append(jnp.concatenate([bq_, bk__, bv]).reshape(1, 3 * DIM))
        wo.append(wo_i); bo.append(bo_i.reshape(1, DIM))
        w1.append(w1_i); b1.append(b1_i.reshape(1, HIDDEN))
        w2.append(w2_i); b2.append(b2_i.reshape(1, DIM))
        ln1g.append(jnp.ones((1, DIM), jnp.float32)); ln1b.append(jnp.zeros((1, DIM), jnp.float32))
        ln2g.append(jnp.ones((1, DIM), jnp.float32)); ln2b.append(jnp.zeros((1, DIM), jnp.float32))

    # Weights stored bf16 (MXU-native, half the DMA bytes); biases / LN params f32.
    params["wqkv"] = jnp.stack(wqkv).astype(jnp.bfloat16)
    params["bqkv"] = jnp.stack(bqkv)
    params["wo"] = jnp.stack(wo).astype(jnp.bfloat16)
    params["bo"] = jnp.stack(bo)
    params["w1"] = jnp.stack(w1).astype(jnp.bfloat16)
    params["b1"] = jnp.stack(b1)
    params["w2"] = jnp.stack(w2).astype(jnp.bfloat16)
    params["b2"] = jnp.stack(b2)
    params["ln1_g"] = jnp.stack(ln1g); params["ln1_b"] = jnp.stack(ln1b)
    params["ln2_g"] = jnp.stack(ln2g); params["ln2_b"] = jnp.stack(ln2b)
    return params


def bert_forward(params, tokens, segment_mask=None, attention_mask=None):
    """tokens: (B, S) int32 -> (B, S, DIM) float32 (matches Bert.forward semantics).
    Dropout layers are identity (eval mode)."""
    B, S = tokens.shape
    if segment_mask is None:
        segment_mask = jnp.zeros_like(tokens)
    if attention_mask is None:
        attention_mask = tokens != PAD_IDX
    attention_mask = attention_mask.reshape(B, 1, S)
    # Precompute additive mask once (0 = attend, -1e9 = masked), kept in f32.
    mask_add = jnp.where(attention_mask, 0.0, -1e9).astype(jnp.float32)

    emb = (jnp.take(params["tok_emb"], tokens, axis=0)
           + jnp.take(params["seg_emb"], segment_mask, axis=0)
           + params["pos_emb"][:S][None, :, :]) * math.sqrt(DIM)
    emb = emb.astype(jnp.float32)

    return bert_encoder_stack(emb, mask_add, params)


# ------------------------------- main --------------------------------
if __name__ == "__main__":
    root = jax.random.PRNGKey(0)
    pkey, tkey = jax.random.split(root)

    params = init_params(pkey)

    tokens = jax.random.randint(tkey, (BATCH, SEQ), 1, VOCAB, dtype=jnp.int32)
    tokens = tokens.at[:, -2:].set(PAD_IDX)        # trailing padding to exercise the mask
    segments = jnp.zeros((BATCH, SEQ), dtype=jnp.int32)

    fwd = jax.jit(bert_forward)
    out = fwd(params, tokens, segments)
    out = jax.block_until_ready(out)

    assert out.shape == (BATCH, SEQ, DIM), out.shape
    assert out.dtype == jnp.float32
    assert bool(jnp.all(jnp.isfinite(out)))
    print("KERNEL_OK")
</pallas_src>

<mosaic_0001>
module attributes {stable_mosaic.version = 11 : i64} {
  func.func @_bert_kernel(%arg0: i32, %arg1: memref<1x8x32xf32, #tpu.memory_space<vmem>>, %arg2: memref<1x1x8xf32, #tpu.memory_space<vmem>>, %arg3: memref<2x32x96xbf16, #tpu.memory_space<vmem>>, %arg4: memref<2x1x96xf32, #tpu.memory_space<vmem>>, %arg5: memref<2x32x32xbf16, #tpu.memory_space<vmem>>, %arg6: memref<2x1x32xf32, #tpu.memory_space<vmem>>, %arg7: memref<2x32x64xbf16, #tpu.memory_space<vmem>>, %arg8: memref<2x1x64xf32, #tpu.memory_space<vmem>>, %arg9: memref<2x64x32xbf16, #tpu.memory_space<vmem>>, %arg10: memref<2x1x32xf32, #tpu.memory_space<vmem>>, %arg11: memref<2x1x32xf32, #tpu.memory_space<vmem>>, %arg12: memref<2x1x32xf32, #tpu.memory_space<vmem>>, %arg13: memref<2x1x32xf32, #tpu.memory_space<vmem>>, %arg14: memref<2x1x32xf32, #tpu.memory_space<vmem>>, %arg15: memref<1x8x32xf32, #tpu.memory_space<vmem>>) attributes {dimension_semantics = [#tpu.dimension_semantics<parallel>], iteration_bounds = array<i64: 2>, scalar_prefetch = 0 : i64, scratch_operands = 0 : i64, tpu.core_type = #tpu.core_type<tc>, window_params = [{transform_indices = @transform_0, window_bounds = array<i64: 1, 8, 32>}, {transform_indices = @transform_1, window_bounds = array<i64: 1, 1, 8>}, {pipeline_mode = #tpu.pipeline_mode<synchronous>, transform_indices = @transform_2, window_bounds = array<i64: 2, 32, 96>}, {pipeline_mode = #tpu.pipeline_mode<synchronous>, transform_indices = @transform_3, window_bounds = array<i64: 2, 1, 96>}, {pipeline_mode = #tpu.pipeline_mode<synchronous>, transform_indices = @transform_4, window_bounds = array<i64: 2, 32, 32>}, {pipeline_mode = #tpu.pipeline_mode<synchronous>, transform_indices = @transform_5, window_bounds = array<i64: 2, 1, 32>}, {pipeline_mode = #tpu.pipeline_mode<synchronous>, transform_indices = @transform_6, window_bounds = array<i64: 2, 32, 64>}, {pipeline_mode = #tpu.pipeline_mode<synchronous>, transform_indices = @transform_7, window_bounds = array<i64: 2, 1, 64>}, {pipeline_mode = #tpu.pipeline_mode<synchronous>, transform_indices = @transform_8, window_bounds = array<i64: 2, 64, 32>}, {pipeline_mode = #tpu.pipeline_mode<synchronous>, transform_indices = @transform_9, window_bounds = array<i64: 2, 1, 32>}, {pipeline_mode = #tpu.pipeline_mode<synchronous>, transform_indices = @transform_10, window_bounds = array<i64: 2, 1, 32>}, {pipeline_mode = #tpu.pipeline_mode<synchronous>, transform_indices = @transform_11, window_bounds = array<i64: 2, 1, 32>}, {pipeline_mode = #tpu.pipeline_mode<synchronous>, transform_indices = @transform_12, window_bounds = array<i64: 2, 1, 32>}, {pipeline_mode = #tpu.pipeline_mode<synchronous>, transform_indices = @transform_13, window_bounds = array<i64: 2, 1, 32>}, {transform_indices = @transform_14, window_bounds = array<i64: 1, 8, 32>}]} {
    %c0 = arith.constant 0 : index
    %c0_0 = arith.constant 0 : index
    %c0_1 = arith.constant 0 : index
    %0 = vector.load %arg1[%c0, %c0_0, %c0_1] : memref<1x8x32xf32, #tpu.memory_space<vmem>>, vector<1x8x32xf32>
    %1 = vector.shape_cast %0 : vector<1x8x32xf32> to vector<8x32xf32>
    %c0_2 = arith.constant 0 : index
    %c0_3 = arith.constant 0 : index
    %c0_4 = arith.constant 0 : index
    %2 = vector.load %arg2[%c0_2, %c0_3, %c0_4] : memref<1x1x8xf32, #tpu.memory_space<vmem>>, vector<1x1x8xf32>
    %3 = vector.shape_cast %2 : vector<1x1x8xf32> to vector<1x8xf32>
    %4 = arith.truncf %1 : vector<8x32xf32> to vector<8x32xbf16>
    %c0_5 = arith.constant 0 : index
    %c0_6 = arith.constant 0 : index
    %c0_7 = arith.constant 0 : index
    %5 = vector.load %arg3[%c0_5, %c0_6, %c0_7] : memref<2x32x96xbf16, #tpu.memory_space<vmem>>, vector<1x32x96xbf16>
    %6 = vector.shape_cast %5 : vector<1x32x96xbf16> to vector<32x96xbf16>
    %cst = arith.constant dense<0.000000e+00> : vector<8x96xf32>
    %7 = tpu.matmul %4, %6, %cst {dimension_numbers = #tpu.dot_dimension_numbers<[1], [0], [0], [1], [0, 0, 1, 1], [], []>} : vector<8x32xbf16>, vector<32x96xbf16>, vector<8x96xf32> -> vector<8x96xf32>
    %c0_8 = arith.constant 0 : index
    %c0_9 = arith.constant 0 : index
    %c0_10 = arith.constant 0 : index
    %8 = vector.load %arg4[%c0_8, %c0_9, %c0_10] : memref<2x1x96xf32, #tpu.memory_space<vmem>>, vector<1x1x96xf32>
    %9 = vector.shape_cast %8 : vector<1x1x96xf32> to vector<1x96xf32>
    %10 = vector.broadcast %9 : vector<1x96xf32> to vector<8x96xf32>
    %11 = arith.addf %7, %10 : vector<8x96xf32>
    %12 = vector.extract_strided_slice %11 {offsets = [0, 0], sizes = [8, 8], strides = [1, 1]} : vector<8x96xf32> to vector<8x8xf32>
    %13 = vector.extract_strided_slice %11 {offsets = [0, 32], sizes = [8, 8], strides = [1, 1]} : vector<8x96xf32> to vector<8x8xf32>
    %14 = vector.extract_strided_slice %11 {offsets = [0, 64], sizes = [8, 8], strides = [1, 1]} : vector<8x96xf32> to vector<8x8xf32>
    %cst_11 = arith.constant dense<0.000000e+00> : vector<8x8xf32>
    %15 = tpu.matmul %12, %13, %cst_11 {dimension_numbers = #tpu.dot_dimension_numbers<[1], [1], [0], [0], [0, 0, 1, 0], [], []>} : vector<8x8xf32>, vector<8x8xf32>, vector<8x8xf32> -> vector<8x8xf32>
    %cst_12 = arith.constant 0.353553385 : f32
    %16 = vector.broadcast %cst_12 : f32 to vector<8x8xf32>
    %17 = arith.mulf %15, %16 : vector<8x8xf32>
    %18 = vector.broadcast %3 : vector<1x8xf32> to vector<8x8xf32>
    %19 = arith.addf %17, %18 : vector<8x8xf32>
    %cst_13 = arith.constant dense<0xFF800000> : vector<8xf32>
    %20 = vector.multi_reduction <maximumf>, %19, %cst_13 [1] : vector<8x8xf32> to vector<8xf32>
    %21 = vector.shape_cast %20 : vector<8xf32> to vector<8x1xf32>
    %22 = vector.broadcast %21 : vector<8x1xf32> to vector<8x8xf32>
    %23 = arith.subf %19, %22 : vector<8x8xf32>
    %24 = math.exp %23 : vector<8x8xf32>
    %cst_14 = arith.constant dense<0.000000e+00> : vector<8xf32>
    %25 = vector.multi_reduction <add>, %24, %cst_14 [1] : vector<8x8xf32> to vector<8xf32>
    %26 = vector.shape_cast %25 : vector<8xf32> to vector<8x1xf32>
    %27 = tpu.reciprocal %26 {approx = true} : vector<8x1xf32> -> vector<8x1xf32>
    %28 = vector.broadcast %27 : vector<8x1xf32> to vector<8x8xf32>
    %29 = arith.mulf %24, %28 : vector<8x8xf32>
    %cst_15 = arith.constant dense<0.000000e+00> : vector<8x8xf32>
    %30 = tpu.matmul %29, %14, %cst_15 {dimension_numbers = #tpu.dot_dimension_numbers<[1], [0], [0], [1], [0, 0, 1, 1], [], []>} : vector<8x8xf32>, vector<8x8xf32>, vector<8x8xf32> -> vector<8x8xf32>
    %31 = vector.extract_strided_slice %11 {offsets = [0, 8], sizes = [8, 8], strides = [1, 1]} : vector<8x96xf32> to vector<8x8xf32>
    %32 = vector.extract_strided_slice %11 {offsets = [0, 40], sizes = [8, 8], strides = [1, 1]} : vector<8x96xf32> to vector<8x8xf32>
    %33 = vector.extract_strided_slice %11 {offsets = [0, 72], sizes = [8, 8], strides = [1, 1]} : vector<8x96xf32> to vector<8x8xf32>
    %cst_16 = arith.constant dense<0.000000e+00> : vector<8x8xf32>
    %34 = tpu.matmul %31, %32, %cst_16 {dimension_numbers = #tpu.dot_dimension_numbers<[1], [1], [0], [0], [0, 0, 1, 0], [], []>} : vector<8x8xf32>, vector<8x8xf32>, vector<8x8xf32> -> vector<8x8xf32>
    %cst_17 = arith.constant 0.353553385 : f32
    %35 = vector.broadcast %cst_17 : f32 to vector<8x8xf32>
    %36 = arith.mulf %34, %35 : vector<8x8xf32>
    %37 = vector.broadcast %3 : vector<1x8xf32> to vector<8x8xf32>
    %38 = arith.addf %36, %37 : vector<8x8xf32>
    %cst_18 = arith.constant dense<0xFF800000> : vector<8xf32>
    %39 = vector.multi_reduction <maximumf>, %38, %cst_18 [1] : vector<8x8xf32> to vector<8xf32>
    %40 = vector.shape_cast %39 : vector<8xf32> to vector<8x1xf32>
    %41 = vector.broadcast %40 : vector<8x1xf32> to vector<8x8xf32>
    %42 = arith.subf %38, %41 : vector<8x8xf32>
    %43 = math.exp %42 : vector<8x8xf32>
    %cst_19 = arith.constant dense<0.000000e+00> : vector<8xf32>
    %44 = vector.multi_reduction <add>, %43, %cst_19 [1] : vector<8x8xf32> to vector<8xf32>
    %45 = vector.shape_cast %44 : vector<8xf32> to vector<8x1xf32>
    %46 = tpu.reciprocal %45 {approx = true} : vector<8x1xf32> -> vector<8x1xf32>
    %47 = vector.broadcast %46 : vector<8x1xf32> to vector<8x8xf32>
    %48 = arith.mulf %43, %47 : vector<8x8xf32>
    %cst_20 = arith.constant dense<0.000000e+00> : vector<8x8xf32>
    %49 = tpu.matmul %48, %33, %cst_20 {dimension_numbers = #tpu.dot_dimension_numbers<[1], [0], [0], [1], [0, 0, 1, 1], [], []>} : vector<8x8xf32>, vector<8x8xf32>, vector<8x8xf32> -> vector<8x8xf32>
    %50 = vector.extract_strided_slice %11 {offsets = [0, 16], sizes = [8, 8], strides = [1, 1]} : vector<8x96xf32> to vector<8x8xf32>
    %51 = vector.extract_strided_slice %11 {offsets = [0, 48], sizes = [8, 8], strides = [1, 1]} : vector<8x96xf32> to vector<8x8xf32>
    %52 = vector.extract_strided_slice %11 {offsets = [0, 80], sizes = [8, 8], strides = [1, 1]} : vector<8x96xf32> to vector<8x8xf32>
    %cst_21 = arith.constant dense<0.000000e+00> : vector<8x8xf32>
    %53 = tpu.matmul %50, %51, %cst_21 {dimension_numbers = #tpu.dot_dimension_numbers<[1], [1], [0], [0], [0, 0, 1, 0], [], []>} : vector<8x8xf32>, vector<8x8xf32>, vector<8x8xf32> -> vector<8x8xf32>
    %cst_22 = arith.constant 0.353553385 : f32
    %54 = vector.broadcast %cst_22 : f32 to vector<8x8xf32>
    %55 = arith.mulf %53, %54 : vector<8x8xf32>
    %56 = vector.broadcast %3 : vector<1x8xf32> to vector<8x8xf32>
    %57 = arith.addf %55, %56 : vector<8x8xf32>
    %cst_23 = arith.constant dense<0xFF800000> : vector<8xf32>
    %58 = vector.multi_reduction <maximumf>, %57, %cst_23 [1] : vector<8x8xf32> to vector<8xf32>
    %59 = vector.shape_cast %58 : vector<8xf32> to vector<8x1xf32>
    %60 = vector.broadcast %59 : vector<8x1xf32> to vector<8x8xf32>
    %61 = arith.subf %57, %60 : vector<8x8xf32>
    %62 = math.exp %61 : vector<8x8xf32>
    %cst_24 = arith.constant dense<0.000000e+00> : vector<8xf32>
    %63 = vector.multi_reduction <add>, %62, %cst_24 [1] : vector<8x8xf32> to vector<8xf32>
    %64 = vector.shape_cast %63 : vector<8xf32> to vector<8x1xf32>
    %65 = tpu.reciprocal %64 {approx = true} : vector<8x1xf32> -> vector<8x1xf32>
    %66 = vector.broadcast %65 : vector<8x1xf32> to vector<8x8xf32>
    %67 = arith.mulf %62, %66 : vector<8x8xf32>
    %cst_25 = arith.constant dense<0.000000e+00> : vector<8x8xf32>
    %68 = tpu.matmul %67, %52, %cst_25 {dimension_numbers = #tpu.dot_dimension_numbers<[1], [0], [0], [1], [0, 0, 1, 1], [], []>} : vector<8x8xf32>, vector<8x8xf32>, vector<8x8xf32> -> vector<8x8xf32>
    %69 = vector.extract_strided_slice %11 {offsets = [0, 24], sizes = [8, 8], strides = [1, 1]} : vector<8x96xf32> to vector<8x8xf32>
    %70 = vector.extract_strided_slice %11 {offsets = [0, 56], sizes = [8, 8], strides = [1, 1]} : vector<8x96xf32> to vector<8x8xf32>
    %71 = vector.extract_strided_slice %11 {offsets = [0, 88], sizes = [8, 8], strides = [1, 1]} : vector<8x96xf32> to vector<8x8xf32>
    %cst_26 = arith.constant dense<0.000000e+00> : vector<8x8xf32>
    %72 = tpu.matmul %69, %70, %cst_26 {dimension_numbers = #tpu.dot_dimension_numbers<[1], [1], [0], [0], [0, 0, 1, 0], [], []>} : vector<8x8xf32>, vector<8x8xf32>, vector<8x8xf32> -> vector<8x8xf32>
    %cst_27 = arith.constant 0.353553385 : f32
    %73 = vector.broadcast %cst_27 : f32 to vector<8x8xf32>
    %74 = arith.mulf %72, %73 : vector<8x8xf32>
    %75 = vector.broadcast %3 : vector<1x8xf32> to vector<8x8xf32>
    %76 = arith.addf %74, %75 : vector<8x8xf32>
    %cst_28 = arith.constant dense<0xFF800000> : vector<8xf32>
    %77 = vector.multi_reduction <maximumf>, %76, %cst_28 [1] : vector<8x8xf32> to vector<8xf32>
    %78 = vector.shape_cast %77 : vector<8xf32> to vector<8x1xf32>
    %79 = vector.broadcast %78 : vector<8x1xf32> to vector<8x8xf32>
    %80 = arith.subf %76, %79 : vector<8x8xf32>
    %81 = math.exp %80 : vector<8x8xf32>
    %cst_29 = arith.constant dense<0.000000e+00> : vector<8xf32>
    %82 = vector.multi_reduction <add>, %81, %cst_29 [1] : vector<8x8xf32> to vector<8xf32>
    %83 = vector.shape_cast %82 : vector<8xf32> to vector<8x1xf32>
    %84 = tpu.reciprocal %83 {approx = true} : vector<8x1xf32> -> vector<8x1xf32>
    %85 = vector.broadcast %84 : vector<8x1xf32> to vector<8x8xf32>
    %86 = arith.mulf %81, %85 : vector<8x8xf32>
    %cst_30 = arith.constant dense<0.000000e+00> : vector<8x8xf32>
    %87 = tpu.matmul %86, %71, %cst_30 {dimension_numbers = #tpu.dot_dimension_numbers<[1], [0], [0], [1], [0, 0, 1, 1], [], []>} : vector<8x8xf32>, vector<8x8xf32>, vector<8x8xf32> -> vector<8x8xf32>
    %88 = tpu.concatenate %30, %49, %68, %87 in 1 : vector<8x8xf32>, vector<8x8xf32>, vector<8x8xf32>, vector<8x8xf32> -> vector<8x32xf32>
    %89 = arith.truncf %88 : vector<8x32xf32> to vector<8x32xbf16>
    %c0_31 = arith.constant 0 : index
    %c0_32 = arith.constant 0 : index
    %c0_33 = arith.constant 0 : index
    %90 = vector.load %arg5[%c0_31, %c0_32, %c0_33] : memref<2x32x32xbf16, #tpu.memory_space<vmem>>, vector<1x32x32xbf16>
    %91 = vector.shape_cast %90 : vector<1x32x32xbf16> to vector<32x32xbf16>
    %cst_34 = arith.constant dense<0.000000e+00> : vector<8x32xf32>
    %92 = tpu.matmul %89, %91, %cst_34 {dimension_numbers = #tpu.dot_dimension_numbers<[1], [0], [0], [1], [0, 0, 1, 1], [], []>} : vector<8x32xbf16>, vector<32x32xbf16>, vector<8x32xf32> -> vector<8x32xf32>
    %c0_35 = arith.constant 0 : index
    %c0_36 = arith.constant 0 : index
    %c0_37 = arith.constant 0 : index
    %93 = vector.load %arg6[%c0_35, %c0_36, %c0_37] : memref<2x1x32xf32, #tpu.memory_space<vmem>>, vector<1x1x32xf32>
    %94 = vector.shape_cast %93 : vector<1x1x32xf32> to vector<1x32xf32>
    %95 = vector.broadcast %94 : vector<1x32xf32> to vector<8x32xf32>
    %96 = arith.addf %92, %95 : vector<8x32xf32>
    %97 = arith.addf %96, %1 : vector<8x32xf32>
    %c0_38 = arith.constant 0 : index
    %c0_39 = arith.constant 0 : index
    %c0_40 = arith.constant 0 : index
    %98 = vector.load %arg11[%c0_38, %c0_39, %c0_40] : memref<2x1x32xf32, #tpu.memory_space<vmem>>, vector<1x1x32xf32>
    %99 = vector.shape_cast %98 : vector<1x1x32xf32> to vector<1x32xf32>
    %c0_41 = arith.constant 0 : index
    %c0_42 = arith.constant 0 : index
    %c0_43 = arith.constant 0 : index
    %100 = vector.load %arg12[%c0_41, %c0_42, %c0_43] : memref<2x1x32xf32, #tpu.memory_space<vmem>>, vector<1x1x32xf32>
    %101 = vector.shape_cast %100 : vector<1x1x32xf32> to vector<1x32xf32>
    %cst_44 = arith.constant dense<0.000000e+00> : vector<8xf32>
    %102 = vector.multi_reduction <add>, %97, %cst_44 [1] : vector<8x32xf32> to vector<8xf32>
    %103 = vector.shape_cast %102 : vector<8xf32> to vector<8x1xf32>
    %cst_45 = arith.constant 3.200000e+01 : f32
    %104 = vector.broadcast %cst_45 : f32 to vector<8x1xf32>
    %105 = arith.divf %103, %104 : vector<8x1xf32>
    %106 = vector.broadcast %105 : vector<8x1xf32> to vector<8x32xf32>
    %107 = arith.subf %97, %106 : vector<8x32xf32>
    %108 = arith.mulf %107, %107 : vector<8x32xf32>
    %cst_46 = arith.constant dense<0.000000e+00> : vector<8xf32>
    %109 = vector.multi_reduction <add>, %108, %cst_46 [1] : vector<8x32xf32> to vector<8xf32>
    %110 = vector.shape_cast %109 : vector<8xf32> to vector<8x1xf32>
    %cst_47 = arith.constant 3.200000e+01 : f32
    %111 = vector.broadcast %cst_47 : f32 to vector<8x1xf32>
    %112 = arith.divf %110, %111 : vector<8x1xf32>
    %113 = vector.broadcast %105 : vector<8x1xf32> to vector<8x32xf32>
    %114 = arith.subf %97, %113 : vector<8x32xf32>
    %cst_48 = arith.constant 9.99999974E-6 : f32
    %115 = vector.broadcast %cst_48 : f32 to vector<8x1xf32>
    %116 = arith.addf %112, %115 : vector<8x1xf32>
    %117 = math.rsqrt %116 : vector<8x1xf32>
    %118 = vector.broadcast %117 : vector<8x1xf32> to vector<8x32xf32>
    %119 = arith.mulf %114, %118 : vector<8x32xf32>
    %120 = vector.broadcast %99 : vector<1x32xf32> to vector<8x32xf32>
    %121 = arith.mulf %119, %120 : vector<8x32xf32>
    %122 = vector.broadcast %101 : vector<1x32xf32> to vector<8x32xf32>
    %123 = arith.addf %121, %122 : vector<8x32xf32>
    %124 = arith.truncf %123 : vector<8x32xf32> to vector<8x32xbf16>
    %c0_49 = arith.constant 0 : index
    %c0_50 = arith.constant 0 : index
    %c0_51 = arith.constant 0 : index
    %125 = vector.load %arg7[%c0_49, %c0_50, %c0_51] : memref<2x32x64xbf16, #tpu.memory_space<vmem>>, vector<1x32x64xbf16>
    %126 = vector.shape_cast %125 : vector<1x32x64xbf16> to vector<32x64xbf16>
    %cst_52 = arith.constant dense<0.000000e+00> : vector<8x64xf32>
    %127 = tpu.matmul %124, %126, %cst_52 {dimension_numbers = #tpu.dot_dimension_numbers<[1], [0], [0], [1], [0, 0, 1, 1], [], []>} : vector<8x32xbf16>, vector<32x64xbf16>, vector<8x64xf32> -> vector<8x64xf32>
    %c0_53 = arith.constant 0 : index
    %c0_54 = arith.constant 0 : index
    %c0_55 = arith.constant 0 : index
    %128 = vector.load %arg8[%c0_53, %c0_54, %c0_55] : memref<2x1x64xf32, #tpu.memory_space<vmem>>, vector<1x1x64xf32>
    %129 = vector.shape_cast %128 : vector<1x1x64xf32> to vector<1x64xf32>
    %130 = vector.broadcast %129 : vector<1x64xf32> to vector<8x64xf32>
    %131 = arith.addf %127, %130 : vector<8x64xf32>
    %cst_56 = arith.constant 5.000000e-01 : f32
    %132 = vector.broadcast %cst_56 : f32 to vector<8x64xf32>
    %133 = arith.mulf %132, %131 : vector<8x64xf32>
    %cst_57 = arith.constant 4.471500e-02 : f32
    %134 = vector.broadcast %cst_57 : f32 to vector<8x64xf32>
    %135 = arith.mulf %134, %131 : vector<8x64xf32>
    %136 = arith.mulf %135, %131 : vector<8x64xf32>
    %137 = arith.mulf %136, %131 : vector<8x64xf32>
    %138 = arith.addf %131, %137 : vector<8x64xf32>
    %cst_58 = arith.constant 0.797884583 : f32
    %139 = vector.broadcast %cst_58 : f32 to vector<8x64xf32>
    %140 = arith.mulf %139, %138 : vector<8x64xf32>
    %141 = math.tanh %140 : vector<8x64xf32>
    %cst_59 = arith.constant 1.000000e+00 : f32
    %142 = vector.broadcast %cst_59 : f32 to vector<8x64xf32>
    %143 = arith.addf %142, %141 : vector<8x64xf32>
    %144 = arith.mulf %133, %143 : vector<8x64xf32>
    %145 = arith.truncf %144 : vector<8x64xf32> to vector<8x64xbf16>
    %c0_60 = arith.constant 0 : index
    %c0_61 = arith.constant 0 : index
    %c0_62 = arith.constant 0 : index
    %146 = vector.load %arg9[%c0_60, %c0_61, %c0_62] : memref<2x64x32xbf16, #tpu.memory_space<vmem>>, vector<1x64x32xbf16>
    %147 = vector.shape_cast %146 : vector<1x64x32xbf16> to vector<64x32xbf16>
    %cst_63 = arith.constant dense<0.000000e+00> : vector<8x32xf32>
    %148 = tpu.matmul %145, %147, %cst_63 {dimension_numbers = #tpu.dot_dimension_numbers<[1], [0], [0], [1], [0, 0, 1, 1], [], []>} : vector<8x64xbf16>, vector<64x32xbf16>, vector<8x32xf32> -> vector<8x32xf32>
    %c0_64 = arith.constant 0 : index
    %c0_65 = arith.constant 0 : index
    %c0_66 = arith.constant 0 : index
    %149 = vector.load %arg10[%c0_64, %c0_65, %c0_66] : memref<2x1x32xf32, #tpu.memory_space<vmem>>, vector<1x1x32xf32>
    %150 = vector.shape_cast %149 : vector<1x1x32xf32> to vector<1x32xf32>
    %151 = vector.broadcast %150 : vector<1x32xf32> to vector<8x32xf32>
    %152 = arith.addf %148, %151 : vector<8x32xf32>
    %153 = arith.addf %152, %123 : vector<8x32xf32>
    %c0_67 = arith.constant 0 : index
    %c0_68 = arith.constant 0 : index
    %c0_69 = arith.constant 0 : index
    %154 = vector.load %arg13[%c0_67, %c0_68, %c0_69] : memref<2x1x32xf32, #tpu.memory_space<vmem>>, vector<1x1x32xf32>
    %155 = vector.shape_cast %154 : vector<1x1x32xf32> to vector<1x32xf32>
    %c0_70 = arith.constant 0 : index
    %c0_71 = arith.constant 0 : index
    %c0_72 = arith.constant 0 : index
    %156 = vector.load %arg14[%c0_70, %c0_71, %c0_72] : memref<2x1x32xf32, #tpu.memory_space<vmem>>, vector<1x1x32xf32>
    %157 = vector.shape_cast %156 : vector<1x1x32xf32> to vector<1x32xf32>
    %cst_73 = arith.constant dense<0.000000e+00> : vector<8xf32>
    %158 = vector.multi_reduction <add>, %153, %cst_73 [1] : vector<8x32xf32> to vector<8xf32>
    %159 = vector.shape_cast %158 : vector<8xf32> to vector<8x1xf32>
    %cst_74 = arith.constant 3.200000e+01 : f32
    %160 = vector.broadcast %cst_74 : f32 to vector<8x1xf32>
    %161 = arith.divf %159, %160 : vector<8x1xf32>
    %162 = vector.broadcast %161 : vector<8x1xf32> to vector<8x32xf32>
    %163 = arith.subf %153, %162 : vector<8x32xf32>
    %164 = arith.mulf %163, %163 : vector<8x32xf32>
    %cst_75 = arith.constant dense<0.000000e+00> : vector<8xf32>
    %165 = vector.multi_reduction <add>, %164, %cst_75 [1] : vector<8x32xf32> to vector<8xf32>
    %166 = vector.shape_cast %165 : vector<8xf32> to vector<8x1xf32>
    %cst_76 = arith.constant 3.200000e+01 : f32
    %167 = vector.broadcast %cst_76 : f32 to vector<8x1xf32>
    %168 = arith.divf %166, %167 : vector<8x1xf32>
    %169 = vector.broadcast %161 : vector<8x1xf32> to vector<8x32xf32>
    %170 = arith.subf %153, %169 : vector<8x32xf32>
    %cst_77 = arith.constant 9.99999974E-6 : f32
    %171 = vector.broadcast %cst_77 : f32 to vector<8x1xf32>
    %172 = arith.addf %168, %171 : vector<8x1xf32>
    %173 = math.rsqrt %172 : vector<8x1xf32>
    %174 = vector.broadcast %173 : vector<8x1xf32> to vector<8x32xf32>
    %175 = arith.mulf %170, %174 : vector<8x32xf32>
    %176 = vector.broadcast %155 : vector<1x32xf32> to vector<8x32xf32>
    %177 = arith.mulf %175, %176 : vector<8x32xf32>
    %178 = vector.broadcast %157 : vector<1x32xf32> to vector<8x32xf32>
    %179 = arith.addf %177, %178 : vector<8x32xf32>
    %180 = arith.truncf %179 : vector<8x32xf32> to vector<8x32xbf16>
    %c1 = arith.constant 1 : index
    %c0_78 = arith.constant 0 : index
    %c0_79 = arith.constant 0 : index
    %181 = vector.load %arg3[%c1, %c0_78, %c0_79] : memref<2x32x96xbf16, #tpu.memory_space<vmem>>, vector<1x32x96xbf16>
    %182 = vector.shape_cast %181 : vector<1x32x96xbf16> to vector<32x96xbf16>
    %cst_80 = arith.constant dense<0.000000e+00> : vector<8x96xf32>
    %183 = tpu.matmul %180, %182, %cst_80 {dimension_numbers = #tpu.dot_dimension_numbers<[1], [0], [0], [1], [0, 0, 1, 1], [], []>} : vector<8x32xbf16>, vector<32x96xbf16>, vector<8x96xf32> -> vector<8x96xf32>
    %c1_81 = arith.constant 1 : index
    %c0_82 = arith.constant 0 : index
    %c0_83 = arith.constant 0 : index
    %184 = vector.load %arg4[%c1_81, %c0_82, %c0_83] : memref<2x1x96xf32, #tpu.memory_space<vmem>>, vector<1x1x96xf32>
    %185 = vector.shape_cast %184 : vector<1x1x96xf32> to vector<1x96xf32>
    %186 = vector.broadcast %185 : vector<1x96xf32> to vector<8x96xf32>
    %187 = arith.addf %183, %186 : vector<8x96xf32>
    %188 = vector.extract_strided_slice %187 {offsets = [0, 0], sizes = [8, 8], strides = [1, 1]} : vector<8x96xf32> to vector<8x8xf32>
    %189 = vector.extract_strided_slice %187 {offsets = [0, 32], sizes = [8, 8], strides = [1, 1]} : vector<8x96xf32> to vector<8x8xf32>
    %190 = vector.extract_strided_slice %187 {offsets = [0, 64], sizes = [8, 8], strides = [1, 1]} : vector<8x96xf32> to vector<8x8xf32>
    %cst_84 = arith.constant dense<0.000000e+00> : vector<8x8xf32>
    %191 = tpu.matmul %188, %189, %cst_84 {dimension_numbers = #tpu.dot_dimension_numbers<[1], [1], [0], [0], [0, 0, 1, 0], [], []>} : vector<8x8xf32>, vector<8x8xf32>, vector<8x8xf32> -> vector<8x8xf32>
    %cst_85 = arith.constant 0.353553385 : f32
    %192 = vector.broadcast %cst_85 : f32 to vector<8x8xf32>
    %193 = arith.mulf %191, %192 : vector<8x8xf32>
    %194 = vector.broadcast %3 : vector<1x8xf32> to vector<8x8xf32>
    %195 = arith.addf %193, %194 : vector<8x8xf32>
    %cst_86 = arith.constant dense<0xFF800000> : vector<8xf32>
    %196 = vector.multi_reduction <maximumf>, %195, %cst_86 [1] : vector<8x8xf32> to vector<8xf32>
    %197 = vector.shape_cast %196 : vector<8xf32> to vector<8x1xf32>
    %198 = vector.broadcast %197 : vector<8x1xf32> to vector<8x8xf32>
    %199 = arith.subf %195, %198 : vector<8x8xf32>
    %200 = math.exp %199 : vector<8x8xf32>
    %cst_87 = arith.constant dense<0.000000e+00> : vector<8xf32>
    %201 = vector.multi_reduction <add>, %200, %cst_87 [1] : vector<8x8xf32> to vector<8xf32>
    %202 = vector.shape_cast %201 : vector<8xf32> to vector<8x1xf32>
    %203 = tpu.reciprocal %202 {approx = true} : vector<8x1xf32> -> vector<8x1xf32>
    %204 = vector.broadcast %203 : vector<8x1xf32> to vector<8x8xf32>
    %205 = arith.mulf %200, %204 : vector<8x8xf32>
    %cst_88 = arith.constant dense<0.000000e+00> : vector<8x8xf32>
    %206 = tpu.matmul %205, %190, %cst_88 {dimension_numbers = #tpu.dot_dimension_numbers<[1], [0], [0], [1], [0, 0, 1, 1], [], []>} : vector<8x8xf32>, vector<8x8xf32>, vector<8x8xf32> -> vector<8x8xf32>
    %207 = vector.extract_strided_slice %187 {offsets = [0, 8], sizes = [8, 8], strides = [1, 1]} : vector<8x96xf32> to vector<8x8xf32>
    %208 = vector.extract_strided_slice %187 {offsets = [0, 40], sizes = [8, 8], strides = [1, 1]} : vector<8x96xf32> to vector<8x8xf32>
    %209 = vector.extract_strided_slice %187 {offsets = [0, 72], sizes = [8, 8], strides = [1, 1]} : vector<8x96xf32> to vector<8x8xf32>
    %cst_89 = arith.constant dense<0.000000e+00> : vector<8x8xf32>
    %210 = tpu.matmul %207, %208, %cst_89 {dimension_numbers = #tpu.dot_dimension_numbers<[1], [1], [0], [0], [0, 0, 1, 0], [], []>} : vector<8x8xf32>, vector<8x8xf32>, vector<8x8xf32> -> vector<8x8xf32>
    %cst_90 = arith.constant 0.353553385 : f32
    %211 = vector.broadcast %cst_90 : f32 to vector<8x8xf32>
    %212 = arith.mulf %210, %211 : vector<8x8xf32>
    %213 = vector.broadcast %3 : vector<1x8xf32> to vector<8x8xf32>
    %214 = arith.addf %212, %213 : vector<8x8xf32>
    %cst_91 = arith.constant dense<0xFF800000> : vector<8xf32>
    %215 = vector.multi_reduction <maximumf>, %214, %cst_91 [1] : vector<8x8xf32> to vector<8xf32>
    %216 = vector.shape_cast %215 : vector<8xf32> to vector<8x1xf32>
    %217 = vector.broadcast %216 : vector<8x1xf32> to vector<8x8xf32>
    %218 = arith.subf %214, %217 : vector<8x8xf32>
    %219 = math.exp %218 : vector<8x8xf32>
    %cst_92 = arith.constant dense<0.000000e+00> : vector<8xf32>
    %220 = vector.multi_reduction <add>, %219, %cst_92 [1] : vector<8x8xf32> to vector<8xf32>
    %221 = vector.shape_cast %220 : vector<8xf32> to vector<8x1xf32>
    %222 = tpu.reciprocal %221 {approx = true} : vector<8x1xf32> -> vector<8x1xf32>
    %223 = vector.broadcast %222 : vector<8x1xf32> to vector<8x8xf32>
    %224 = arith.mulf %219, %223 : vector<8x8xf32>
    %cst_93 = arith.constant dense<0.000000e+00> : vector<8x8xf32>
    %225 = tpu.matmul %224, %209, %cst_93 {dimension_numbers = #tpu.dot_dimension_numbers<[1], [0], [0], [1], [0, 0, 1, 1], [], []>} : vector<8x8xf32>, vector<8x8xf32>, vector<8x8xf32> -> vector<8x8xf32>
    %226 = vector.extract_strided_slice %187 {offsets = [0, 16], sizes = [8, 8], strides = [1, 1]} : vector<8x96xf32> to vector<8x8xf32>
    %227 = vector.extract_strided_slice %187 {offsets = [0, 48], sizes = [8, 8], strides = [1, 1]} : vector<8x96xf32> to vector<8x8xf32>
    %228 = vector.extract_strided_slice %187 {offsets = [0, 80], sizes = [8, 8], strides = [1, 1]} : vector<8x96xf32> to vector<8x8xf32>
    %cst_94 = arith.constant dense<0.000000e+00> : vector<8x8xf32>
    %229 = tpu.matmul %226, %227, %cst_94 {dimension_numbers = #tpu.dot_dimension_numbers<[1], [1], [0], [0], [0, 0, 1, 0], [], []>} : vector<8x8xf32>, vector<8x8xf32>, vector<8x8xf32> -> vector<8x8xf32>
    %cst_95 = arith.constant 0.353553385 : f32
    %230 = vector.broadcast %cst_95 : f32 to vector<8x8xf32>
    %231 = arith.mulf %229, %230 : vector<8x8xf32>
    %232 = vector.broadcast %3 : vector<1x8xf32> to vector<8x8xf32>
    %233 = arith.addf %231, %232 : vector<8x8xf32>
    %cst_96 = arith.constant dense<0xFF800000> : vector<8xf32>
    %234 = vector.multi_reduction <maximumf>, %233, %cst_96 [1] : vector<8x8xf32> to vector<8xf32>
    %235 = vector.shape_cast %234 : vector<8xf32> to vector<8x1xf32>
    %236 = vector.broadcast %235 : vector<8x1xf32> to vector<8x8xf32>
    %237 = arith.subf %233, %236 : vector<8x8xf32>
    %238 = math.exp %237 : vector<8x8xf32>
    %cst_97 = arith.constant dense<0.000000e+00> : vector<8xf32>
    %239 = vector.multi_reduction <add>, %238, %cst_97 [1] : vector<8x8xf32> to vector<8xf32>
    %240 = vector.shape_cast %239 : vector<8xf32> to vector<8x1xf32>
    %241 = tpu.reciprocal %240 {approx = true} : vector<8x1xf32> -> vector<8x1xf32>
    %242 = vector.broadcast %241 : vector<8x1xf32> to vector<8x8xf32>
    %243 = arith.mulf %238, %242 : vector<8x8xf32>
    %cst_98 = arith.constant dense<0.000000e+00> : vector<8x8xf32>
    %244 = tpu.matmul %243, %228, %cst_98 {dimension_numbers = #tpu.dot_dimension_numbers<[1], [0], [0], [1], [0, 0, 1, 1], [], []>} : vector<8x8xf32>, vector<8x8xf32>, vector<8x8xf32> -> vector<8x8xf32>
    %245 = vector.extract_strided_slice %187 {offsets = [0, 24], sizes = [8, 8], strides = [1, 1]} : vector<8x96xf32> to vector<8x8xf32>
    %246 = vector.extract_strided_slice %187 {offsets = [0, 56], sizes = [8, 8], strides = [1, 1]} : vector<8x96xf32> to vector<8x8xf32>
    %247 = vector.extract_strided_slice %187 {offsets = [0, 88], sizes = [8, 8], strides = [1, 1]} : vector<8x96xf32> to vector<8x8xf32>
    %cst_99 = arith.constant dense<0.000000e+00> : vector<8x8xf32>
    %248 = tpu.matmul %245, %246, %cst_99 {dimension_numbers = #tpu.dot_dimension_numbers<[1], [1], [0], [0], [0, 0, 1, 0], [], []>} : vector<8x8xf32>, vector<8x8xf32>, vector<8x8xf32> -> vector<8x8xf32>
    %cst_100 = arith.constant 0.353553385 : f32
    %249 = vector.broadcast %cst_100 : f32 to vector<8x8xf32>
    %250 = arith.mulf %248, %249 : vector<8x8xf32>
    %251 = vector.broadcast %3 : vector<1x8xf32> to vector<8x8xf32>
    %252 = arith.addf %250, %251 : vector<8x8xf32>
    %cst_101 = arith.constant dense<0xFF800000> : vector<8xf32>
    %253 = vector.multi_reduction <maximumf>, %252, %cst_101 [1] : vector<8x8xf32> to vector<8xf32>
    %254 = vector.shape_cast %253 : vector<8xf32> to vector<8x1xf32>
    %255 = vector.broadcast %254 : vector<8x1xf32> to vector<8x8xf32>
    %256 = arith.subf %252, %255 : vector<8x8xf32>
    %257 = math.exp %256 : vector<8x8xf32>
    %cst_102 = arith.constant dense<0.000000e+00> : vector<8xf32>
    %258 = vector.multi_reduction <add>, %257, %cst_102 [1] : vector<8x8xf32> to vector<8xf32>
    %259 = vector.shape_cast %258 : vector<8xf32> to vector<8x1xf32>
    %260 = tpu.reciprocal %259 {approx = true} : vector<8x1xf32> -> vector<8x1xf32>
    %261 = vector.broadcast %260 : vector<8x1xf32> to vector<8x8xf32>
    %262 = arith.mulf %257, %261 : vector<8x8xf32>
    %cst_103 = arith.constant dense<0.000000e+00> : vector<8x8xf32>
    %263 = tpu.matmul %262, %247, %cst_103 {dimension_numbers = #tpu.dot_dimension_numbers<[1], [0], [0], [1], [0, 0, 1, 1], [], []>} : vector<8x8xf32>, vector<8x8xf32>, vector<8x8xf32> -> vector<8x8xf32>
    %264 = tpu.concatenate %206, %225, %244, %263 in 1 : vector<8x8xf32>, vector<8x8xf32>, vector<8x8xf32>, vector<8x8xf32> -> vector<8x32xf32>
    %265 = arith.truncf %264 : vector<8x32xf32> to vector<8x32xbf16>
    %c1_104 = arith.constant 1 : index
    %c0_105 = arith.constant 0 : index
    %c0_106 = arith.constant 0 : index
    %266 = vector.load %arg5[%c1_104, %c0_105, %c0_106] : memref<2x32x32xbf16, #tpu.memory_space<vmem>>, vector<1x32x32xbf16>
    %267 = vector.shape_cast %266 : vector<1x32x32xbf16> to vector<32x32xbf16>
    %cst_107 = arith.constant dense<0.000000e+00> : vector<8x32xf32>
    %268 = tpu.matmul %265, %267, %cst_107 {dimension_numbers = #tpu.dot_dimension_numbers<[1], [0], [0], [1], [0, 0, 1, 1], [], []>} : vector<8x32xbf16>, vector<32x32xbf16>, vector<8x32xf32> -> vector<8x32xf32>
    %c1_108 = arith.constant 1 : index
    %c0_109 = arith.constant 0 : index
    %c0_110 = arith.constant 0 : index
    %269 = vector.load %arg6[%c1_108, %c0_109, %c0_110] : memref<2x1x32xf32, #tpu.memory_space<vmem>>, vector<1x1x32xf32>
    %270 = vector.shape_cast %269 : vector<1x1x32xf32> to vector<1x32xf32>
    %271 = vector.broadcast %270 : vector<1x32xf32> to vector<8x32xf32>
    %272 = arith.addf %268, %271 : vector<8x32xf32>
    %273 = arith.addf %272, %179 : vector<8x32xf32>
    %c1_111 = arith.constant 1 : index
    %c0_112 = arith.constant 0 : index
    %c0_113 = arith.constant 0 : index
    %274 = vector.load %arg11[%c1_111, %c0_112, %c0_113] : memref<2x1x32xf32, #tpu.memory_space<vmem>>, vector<1x1x32xf32>
    %275 = vector.shape_cast %274 : vector<1x1x32xf32> to vector<1x32xf32>
    %c1_114 = arith.constant 1 : index
    %c0_115 = arith.constant 0 : index
    %c0_116 = arith.constant 0 : index
    %276 = vector.load %arg12[%c1_114, %c0_115, %c0_116] : memref<2x1x32xf32, #tpu.memory_space<vmem>>, vector<1x1x32xf32>
    %277 = vector.shape_cast %276 : vector<1x1x32xf32> to vector<1x32xf32>
    %cst_117 = arith.constant dense<0.000000e+00> : vector<8xf32>
    %278 = vector.multi_reduction <add>, %273, %cst_117 [1] : vector<8x32xf32> to vector<8xf32>
    %279 = vector.shape_cast %278 : vector<8xf32> to vector<8x1xf32>
    %cst_118 = arith.constant 3.200000e+01 : f32
    %280 = vector.broadcast %cst_118 : f32 to vector<8x1xf32>
    %281 = arith.divf %279, %280 : vector<8x1xf32>
    %282 = vector.broadcast %281 : vector<8x1xf32> to vector<8x32xf32>
    %283 = arith.subf %273, %282 : vector<8x32xf32>
    %284 = arith.mulf %283, %283 : vector<8x32xf32>
    %cst_119 = arith.constant dense<0.000000e+00> : vector<8xf32>
    %285 = vector.multi_reduction <add>, %284, %cst_119 [1] : vector<8x32xf32> to vector<8xf32>
    %286 = vector.shape_cast %285 : vector<8xf32> to vector<8x1xf32>
    %cst_120 = arith.constant 3.200000e+01 : f32
    %287 = vector.broadcast %cst_120 : f32 to vector<8x1xf32>
    %288 = arith.divf %286, %287 : vector<8x1xf32>
    %289 = vector.broadcast %281 : vector<8x1xf32> to vector<8x32xf32>
    %290 = arith.subf %273, %289 : vector<8x32xf32>
    %cst_121 = arith.constant 9.99999974E-6 : f32
    %291 = vector.broadcast %cst_121 : f32 to vector<8x1xf32>
    %292 = arith.addf %288, %291 : vector<8x1xf32>
    %293 = math.rsqrt %292 : vector<8x1xf32>
    %294 = vector.broadcast %293 : vector<8x1xf32> to vector<8x32xf32>
    %295 = arith.mulf %290, %294 : vector<8x32xf32>
    %296 = vector.broadcast %275 : vector<1x32xf32> to vector<8x32xf32>
    %297 = arith.mulf %295, %296 : vector<8x32xf32>
    %298 = vector.broadcast %277 : vector<1x32xf32> to vector<8x32xf32>
    %299 = arith.addf %297, %298 : vector<8x32xf32>
    %300 = arith.truncf %299 : vector<8x32xf32> to vector<8x32xbf16>
    %c1_122 = arith.constant 1 : index
    %c0_123 = arith.constant 0 : index
    %c0_124 = arith.constant 0 : index
    %301 = vector.load %arg7[%c1_122, %c0_123, %c0_124] : memref<2x32x64xbf16, #tpu.memory_space<vmem>>, vector<1x32x64xbf16>
    %302 = vector.shape_cast %301 : vector<1x32x64xbf16> to vector<32x64xbf16>
    %cst_125 = arith.constant dense<0.000000e+00> : vector<8x64xf32>
    %303 = tpu.matmul %300, %302, %cst_125 {dimension_numbers = #tpu.dot_dimension_numbers<[1], [0], [0], [1], [0, 0, 1, 1], [], []>} : vector<8x32xbf16>, vector<32x64xbf16>, vector<8x64xf32> -> vector<8x64xf32>
    %c1_126 = arith.constant 1 : index
    %c0_127 = arith.constant 0 : index
    %c0_128 = arith.constant 0 : index
    %304 = vector.load %arg8[%c1_126, %c0_127, %c0_128] : memref<2x1x64xf32, #tpu.memory_space<vmem>>, vector<1x1x64xf32>
    %305 = vector.shape_cast %304 : vector<1x1x64xf32> to vector<1x64xf32>
    %306 = vector.broadcast %305 : vector<1x64xf32> to vector<8x64xf32>
    %307 = arith.addf %303, %306 : vector<8x64xf32>
    %cst_129 = arith.constant 5.000000e-01 : f32
    %308 = vector.broadcast %cst_129 : f32 to vector<8x64xf32>
    %309 = arith.mulf %308, %307 : vector<8x64xf32>
    %cst_130 = arith.constant 4.471500e-02 : f32
    %310 = vector.broadcast %cst_130 : f32 to vector<8x64xf32>
    %311 = arith.mulf %310, %307 : vector<8x64xf32>
    %312 = arith.mulf %311, %307 : vector<8x64xf32>
    %313 = arith.mulf %312, %307 : vector<8x64xf32>
    %314 = arith.addf %307, %313 : vector<8x64xf32>
    %cst_131 = arith.constant 0.797884583 : f32
    %315 = vector.broadcast %cst_131 : f32 to vector<8x64xf32>
    %316 = arith.mulf %315, %314 : vector<8x64xf32>
    %317 = math.tanh %316 : vector<8x64xf32>
    %cst_132 = arith.constant 1.000000e+00 : f32
    %318 = vector.broadcast %cst_132 : f32 to vector<8x64xf32>
    %319 = arith.addf %318, %317 : vector<8x64xf32>
    %320 = arith.mulf %309, %319 : vector<8x64xf32>
    %321 = arith.truncf %320 : vector<8x64xf32> to vector<8x64xbf16>
    %c1_133 = arith.constant 1 : index
    %c0_134 = arith.constant 0 : index
    %c0_135 = arith.constant 0 : index
    %322 = vector.load %arg9[%c1_133, %c0_134, %c0_135] : memref<2x64x32xbf16, #tpu.memory_space<vmem>>, vector<1x64x32xbf16>
    %323 = vector.shape_cast %322 : vector<1x64x32xbf16> to vector<64x32xbf16>
    %cst_136 = arith.constant dense<0.000000e+00> : vector<8x32xf32>
    %324 = tpu.matmul %321, %323, %cst_136 {dimension_numbers = #tpu.dot_dimension_numbers<[1], [0], [0], [1], [0, 0, 1, 1], [], []>} : vector<8x64xbf16>, vector<64x32xbf16>, vector<8x32xf32> -> vector<8x32xf32>
    %c1_137 = arith.constant 1 : index
    %c0_138 = arith.constant 0 : index
    %c0_139 = arith.constant 0 : index
    %325 = vector.load %arg10[%c1_137, %c0_138, %c0_139] : memref<2x1x32xf32, #tpu.memory_space<vmem>>, vector<1x1x32xf32>
    %326 = vector.shape_cast %325 : vector<1x1x32xf32> to vector<1x32xf32>
    %327 = vector.broadcast %326 : vector<1x32xf32> to vector<8x32xf32>
    %328 = arith.addf %324, %327 : vector<8x32xf32>
    %329 = arith.addf %328, %299 : vector<8x32xf32>
    %c1_140 = arith.constant 1 : index
    %c0_141 = arith.constant 0 : index
    %c0_142 = arith.constant 0 : index
    %330 = vector.load %arg13[%c1_140, %c0_141, %c0_142] : memref<2x1x32xf32, #tpu.memory_space<vmem>>, vector<1x1x32xf32>
    %331 = vector.shape_cast %330 : vector<1x1x32xf32> to vector<1x32xf32>
    %c1_143 = arith.constant 1 : index
    %c0_144 = arith.constant 0 : index
    %c0_145 = arith.constant 0 : index
    %332 = vector.load %arg14[%c1_143, %c0_144, %c0_145] : memref<2x1x32xf32, #tpu.memory_space<vmem>>, vector<1x1x32xf32>
    %333 = vector.shape_cast %332 : vector<1x1x32xf32> to vector<1x32xf32>
    %cst_146 = arith.constant dense<0.000000e+00> : vector<8xf32>
    %334 = vector.multi_reduction <add>, %329, %cst_146 [1] : vector<8x32xf32> to vector<8xf32>
    %335 = vector.shape_cast %334 : vector<8xf32> to vector<8x1xf32>
    %cst_147 = arith.constant 3.200000e+01 : f32
    %336 = vector.broadcast %cst_147 : f32 to vector<8x1xf32>
    %337 = arith.divf %335, %336 : vector<8x1xf32>
    %338 = vector.broadcast %337 : vector<8x1xf32> to vector<8x32xf32>
    %339 = arith.subf %329, %338 : vector<8x32xf32>
    %340 = arith.mulf %339, %339 : vector<8x32xf32>
    %cst_148 = arith.constant dense<0.000000e+00> : vector<8xf32>
    %341 = vector.multi_reduction <add>, %340, %cst_148 [1] : vector<8x32xf32> to vector<8xf32>
    %342 = vector.shape_cast %341 : vector<8xf32> to vector<8x1xf32>
    %cst_149 = arith.constant 3.200000e+01 : f32
    %343 = vector.broadcast %cst_149 : f32 to vector<8x1xf32>
    %344 = arith.divf %342, %343 : vector<8x1xf32>
    %345 = vector.broadcast %337 : vector<8x1xf32> to vector<8x32xf32>
    %346 = arith.subf %329, %345 : vector<8x32xf32>
    %cst_150 = arith.constant 9.99999974E-6 : f32
    %347 = vector.broadcast %cst_150 : f32 to vector<8x1xf32>
    %348 = arith.addf %344, %347 : vector<8x1xf32>
    %349 = math.rsqrt %348 : vector<8x1xf32>
    %350 = vector.broadcast %349 : vector<8x1xf32> to vector<8x32xf32>
    %351 = arith.mulf %346, %350 : vector<8x32xf32>
    %352 = vector.broadcast %331 : vector<1x32xf32> to vector<8x32xf32>
    %353 = arith.mulf %351, %352 : vector<8x32xf32>
    %354 = vector.broadcast %333 : vector<1x32xf32> to vector<8x32xf32>
    %355 = arith.addf %353, %354 : vector<8x32xf32>
    %c0_151 = arith.constant 0 : index
    %c0_152 = arith.constant 0 : index
    %c0_153 = arith.constant 0 : index
    %356 = vector.load %arg15[%c0_151, %c0_152, %c0_153] : memref<1x8x32xf32, #tpu.memory_space<vmem>>, vector<1x8x32xf32>
    %357 = vector.shape_cast %356 : vector<1x8x32xf32> to vector<8x32xf32>
    %358 = vector.shape_cast %355 : vector<8x32xf32> to vector<1x8x32xf32>
    tpu.vector_store %arg15[%c0_151, %c0_152, %c0_153], %358 {strides = array<i32>} : memref<1x8x32xf32, #tpu.memory_space<vmem>>, vector<1x8x32xf32>,
    return
  }
  func.func @transform_0(%arg0: i32) -> (i32, i32, i32) {
    %c0_i32 = arith.constant 0 : i32
    %c0_i32_0 = arith.constant 0 : i32
    %c0_i32_1 = arith.constant 0 : i32
    return %arg0, %c0_i32, %c0_i32_0 : i32, i32, i32
  }
  func.func @transform_1(%arg0: i32) -> (i32, i32, i32) {
    %c0_i32 = arith.constant 0 : i32
    %c0_i32_0 = arith.constant 0 : i32
    %c0_i32_1 = arith.constant 0 : i32
    return %arg0, %c0_i32, %c0_i32_0 : i32, i32, i32
  }
  func.func @transform_2(%arg0: i32) -> (i32, i32, i32) {
    %c0_i32 = arith.constant 0 : i32
    %c0_i32_0 = arith.constant 0 : i32
    %c0_i32_1 = arith.constant 0 : i32
    %c0_i32_2 = arith.constant 0 : i32
    return %c0_i32, %c0_i32_0, %c0_i32_1 : i32, i32, i32
  }
  func.func @transform_3(%arg0: i32) -> (i32, i32, i32) {
    %c0_i32 = arith.constant 0 : i32
    %c0_i32_0 = arith.constant 0 : i32
    %c0_i32_1 = arith.constant 0 : i32
    %c0_i32_2 = arith.constant 0 : i32
    return %c0_i32, %c0_i32_0, %c0_i32_1 : i32, i32, i32
  }
  func.func @transform_4(%arg0: i32) -> (i32, i32, i32) {
    %c0_i32 = arith.constant 0 : i32
    %c0_i32_0 = arith.constant 0 : i32
    %c0_i32_1 = arith.constant 0 : i32
    %c0_i32_2 = arith.constant 0 : i32
    return %c0_i32, %c0_i32_0, %c0_i32_1 : i32, i32, i32
  }
  func.func @transform_5(%arg0: i32) -> (i32, i32, i32) {
    %c0_i32 = arith.constant 0 : i32
    %c0_i32_0 = arith.constant 0 : i32
    %c0_i32_1 = arith.constant 0 : i32
    %c0_i32_2 = arith.constant 0 : i32
    return %c0_i32, %c0_i32_0, %c0_i32_1 : i32, i32, i32
  }
  func.func @transform_6(%arg0: i32) -> (i32, i32, i32) {
    %c0_i32 = arith.constant 0 : i32
    %c0_i32_0 = arith.constant 0 : i32
    %c0_i32_1 = arith.constant 0 : i32
    %c0_i32_2 = arith.constant 0 : i32
    return %c0_i32, %c0_i32_0, %c0_i32_1 : i32, i32, i32
  }
  func.func @transform_7(%arg0: i32) -> (i32, i32, i32) {
    %c0_i32 = arith.constant 0 : i32
    %c0_i32_0 = arith.constant 0 : i32
    %c0_i32_1 = arith.constant 0 : i32
    %c0_i32_2 = arith.constant 0 : i32
    return %c0_i32, %c0_i32_0, %c0_i32_1 : i32, i32, i32
  }
  func.func @transform_8(%arg0: i32) -> (i32, i32, i32) {
    %c0_i32 = arith.constant 0 : i32
    %c0_i32_0 = arith.constant 0 : i32
    %c0_i32_1 = arith.constant 0 : i32
    %c0_i32_2 = arith.constant 0 : i32
    return %c0_i32, %c0_i32_0, %c0_i32_1 : i32, i32, i32
  }
  func.func @transform_9(%arg0: i32) -> (i32, i32, i32) {
    %c0_i32 = arith.constant 0 : i32
    %c0_i32_0 = arith.constant 0 : i32
    %c0_i32_1 = arith.constant 0 : i32
    %c0_i32_2 = arith.constant 0 : i32
    return %c0_i32, %c0_i32_0, %c0_i32_1 : i32, i32, i32
  }
  func.func @transform_10(%arg0: i32) -> (i32, i32, i32) {
    %c0_i32 = arith.constant 0 : i32
    %c0_i32_0 = arith.constant 0 : i32
    %c0_i32_1 = arith.constant 0 : i32
    %c0_i32_2 = arith.constant 0 : i32
    return %c0_i32, %c0_i32_0, %c0_i32_1 : i32, i32, i32
  }
  func.func @transform_11(%arg0: i32) -> (i32, i32, i32) {
    %c0_i32 = arith.constant 0 : i32
    %c0_i32_0 = arith.constant 0 : i32
    %c0_i32_1 = arith.constant 0 : i32
    %c0_i32_2 = arith.constant 0 : i32
    return %c0_i32, %c0_i32_0, %c0_i32_1 : i32, i32, i32
  }
  func.func @transform_12(%arg0: i32) -> (i32, i32, i32) {
    %c0_i32 = arith.constant 0 : i32
    %c0_i32_0 = arith.constant 0 : i32
    %c0_i32_1 = arith.constant 0 : i32
    %c0_i32_2 = arith.constant 0 : i32
    return %c0_i32, %c0_i32_0, %c0_i32_1 : i32, i32, i32
  }
  func.func @transform_13(%arg0: i32) -> (i32, i32, i32) {
    %c0_i32 = arith.constant 0 : i32
    %c0_i32_0 = arith.constant 0 : i32
    %c0_i32_1 = arith.constant 0 : i32
    %c0_i32_2 = arith.constant 0 : i32
    return %c0_i32, %c0_i32_0, %c0_i32_1 : i32, i32, i32
  }
  func.func @transform_14(%arg0: i32) -> (i32, i32, i32) {
    %c0_i32 = arith.constant 0 : i32
    %c0_i32_0 = arith.constant 0 : i32
    %c0_i32_1 = arith.constant 0 : i32
    return %arg0, %c0_i32, %c0_i32_0 : i32, i32, i32
  }
}

</mosaic_0001>

<llo_original>
// kernel: bert_forward.1
$region0: #{bert_forward.1}
  #allocation0 [shape = 'u32[]', space=smem, size = 0x4, offset = 0x4, fixed_abs, tag = 'smem constant byte address 0x4 - core index']
  #allocation1 [shape = 'u32[144,128]{1,0:T(1,128)}', space=vmem, size = 0x12000, scoped, tag = 'internal scratch']
  %s0 = inlined_call_operand.vmem [shape: f32[2,8,32], index: 0, kind: input, shape index: {}]
  %s1 = inlined_call_operand.vmem [shape: f32[2,1,8], index: 1, kind: input, shape index: {}]
  %s2 = inlined_call_operand.vmem [shape: bf16[2,32,96], index: 2, kind: input, shape index: {}]
  %s3 = inlined_call_operand.vmem [shape: f32[2,1,96], index: 3, kind: input, shape index: {}]
  %s4 = inlined_call_operand.vmem [shape: bf16[2,32,32], index: 4, kind: input, shape index: {}]
  %s5 = inlined_call_operand.vmem [shape: f32[2,1,32], index: 5, kind: input, shape index: {}]
  %s6 = inlined_call_operand.vmem [shape: bf16[2,32,64], index: 6, kind: input, shape index: {}]
  %s7 = inlined_call_operand.vmem [shape: f32[2,1,64], index: 7, kind: input, shape index: {}]
  %s8 = inlined_call_operand.vmem [shape: bf16[2,64,32], index: 8, kind: input, shape index: {}]
  %s9 = inlined_call_operand.vmem [shape: f32[2,1,32], index: 9, kind: input, shape index: {}]
  %s10 = inlined_call_operand.vmem [shape: f32[2,1,32], index: 10, kind: input, shape index: {}]
  %s11 = inlined_call_operand.vmem [shape: f32[2,1,32], index: 11, kind: input, shape index: {}]
  %s12 = inlined_call_operand.vmem [shape: f32[2,1,32], index: 12, kind: input, shape index: {}]
  %s13 = inlined_call_operand.vmem [shape: f32[2,1,32], index: 13, kind: input, shape index: {}]
  %s14 = inlined_call_operand.hbm [shape: f32[2,8,32], index: 14, kind: output, shape index: {}]
  %s15 = sld [smem:[#allocation0]]
  $region89: #{bert_forward.1} parent=0
    _
  %s17 = ssub.s32 1, %s15
  %s18 = scalar_select 0, %s17, %s15
  $region1: #{bert_forward.1} parent=0
    #allocation2 [shape = 'u8[8192]{0}', space=vmem, size = 0x2000, scoped, tag = 'output window, operand 0']
    #allocation3 [shape = 's32[2]{0}', space=sflag, size = 0x8, scoped, tag = 'scoped memory for bert_forward.1']
    %19 = vsyncpa [#allocation3], 0
    %s20 = scalar_lea.sflag [#allocation3], 1
    %21 = vsyncpa %s20, 0
    loop: start=0, step=1, limit=4
    $region2: #{bert_forward.1} parent=1 // loop_pre_header
      _
    $region3: #{bert_forward.1} parent=1 // loop_header
      %s23 = sphi 0, %s27
      %p24 = scmp.ge.s32.totalorder %s23, 4
      %s33 = sphi 0, %s35
      %s36 = sphi 0, %s33
      %s37 = sphi 0, %s36
      %s53 = sphi 0, %s37
      %s59 = sphi 0, %s61
      %s62 = sphi 0, %s59
      %s63 = sphi 0, %s62
      %s79 = sphi 0, %s63
      %s83 = sphi 0, %s83
      %s85 = sphi 0, %s83
      %s86 = sphi 0, %s85
      %s100 = sphi 0, %s86
      %s104 = sphi 0, %s104
      %s106 = sphi 0, %s104
      %s107 = sphi 0, %s106
      %s121 = sphi 0, %s107
      %s125 = sphi 0, %s125
      %s127 = sphi 0, %s125
      %s128 = sphi 0, %s127
      %s142 = sphi 0, %s128
      %s146 = sphi 0, %s146
      %s148 = sphi 0, %s146
      %s149 = sphi 0, %s148
      %s163 = sphi 0, %s149
      %s167 = sphi 0, %s167
      %s169 = sphi 0, %s167
      %s170 = sphi 0, %s169
      %s184 = sphi 0, %s170
      %s188 = sphi 0, %s188
      %s190 = sphi 0, %s188
      %s191 = sphi 0, %s190
      %s205 = sphi 0, %s191
      %s209 = sphi 0, %s209
      %s211 = sphi 0, %s209
      %s212 = sphi 0, %s211
      %s226 = sphi 0, %s212
      %s230 = sphi 0, %s230
      %s232 = sphi 0, %s230
      %s233 = sphi 0, %s232
      %s247 = sphi 0, %s233
      %s251 = sphi 0, %s251
      %s253 = sphi 0, %s251
      %s254 = sphi 0, %s253
      %s268 = sphi 0, %s254
      %s272 = sphi 0, %s272
      %s274 = sphi 0, %s272
      %s275 = sphi 0, %s274
      %s289 = sphi 0, %s275
      %s293 = sphi 0, %s293
      %s295 = sphi 0, %s293
      %s296 = sphi 0, %s295
      %s310 = sphi 0, %s296
      %s314 = sphi 0, %s314
      %s316 = sphi 0, %s314
      %s317 = sphi 0, %s316
      %s331 = sphi 0, %s317
      %s337 = sphi 0, %s339
      %s340 = sphi 0, %s337
      %s341 = sphi 0, %s340
      %s357 = sphi 0, %s341
    $region4: #{bert_forward.1} parent=1 // loop_header_branch
      %26 = sbr.rel (%p24) target = $region8
    $region5: #{bert_forward.1} parent=1 // loop_body
      %s28 = ssub.s32 %s23, 1
      %s29 = ssub.s32 %s23, 2
      %s30 = sadd.s32 %s23, 1
      %s31 = ssub.s32 %s23, %s30
      %p32 = scmp.eq.s32.totalorder %s31, 0
      %s34 = sadd.s32 %s33, 1
      %s35 = scalar_select %p32, %s33, %s34
      %p38 = pneg %p32
      %p39 = scmp.eq.s32.totalorder %s23, 1
      %p40 = por %p38, %p39
      %p41 = scmp.ne.s32.totalorder %s33, %s36
      %p42 = scmp.eq.s32.totalorder %s23, 0
      %p43 = por %p41, %p42
      %p44 = scmp.ne.s32.totalorder %s33, %s36
      %p45 = scmp.eq.s32.totalorder %s28, 1
      %p46 = por %p44, %p45
      %p47 = scmp.ne.s32.totalorder %s36, %s37
      %p48 = scmp.eq.s32.totalorder %s28, 0
      %p49 = por %p47, %p48
      %p50 = scmp.ne.s32.totalorder %s36, %s37
      %p51 = scmp.eq.s32.totalorder %s29, 1
      %p52 = por %p50, %p51
      %p54 = scmp.ne.s32.totalorder %s37, %s53
      %p55 = scmp.eq.s32.totalorder %s29, 0
      %p56 = por %p54, %p55
      %s57 = ssub.s32 %s23, %s30
      %p58 = scmp.eq.s32.totalorder %s57, 0
      %s60 = sadd.s32 %s59, 1
      %s61 = scalar_select %p58, %s59, %s60
      %p64 = pneg %p58
      %p65 = scmp.eq.s32.totalorder %s23, 1
      %p66 = por %p64, %p65
      %p67 = scmp.ne.s32.totalorder %s59, %s62
      %p68 = scmp.eq.s32.totalorder %s23, 0
      %p69 = por %p67, %p68
      %p70 = scmp.ne.s32.totalorder %s59, %s62
      %p71 = scmp.eq.s32.totalorder %s28, 1
      %p72 = por %p70, %p71
      %p73 = scmp.ne.s32.totalorder %s62, %s63
      %p74 = scmp.eq.s32.totalorder %s28, 0
      %p75 = por %p73, %p74
      %p76 = scmp.ne.s32.totalorder %s62, %s63
      %p77 = scmp.eq.s32.totalorder %s29, 1
      %p78 = por %p76, %p77
      %p80 = scmp.ne.s32.totalorder %s63, %s79
      %p81 = scmp.eq.s32.totalorder %s29, 0
      %p82 = por %p80, %p81
      %s84 = sadd.s32 %s83, 1
      %p87 = scmp.eq.s32.totalorder %s23, 1
      %p88 = scmp.ne.s32.totalorder %s83, %s85
      %p89 = scmp.eq.s32.totalorder %s23, 0
      %p90 = por %p88, %p89
      %p91 = scmp.ne.s32.totalorder %s83, %s85
      %p92 = scmp.eq.s32.totalorder %s28, 1
      %p93 = por %p91, %p92
      %p94 = scmp.ne.s32.totalorder %s85, %s86
      %p95 = scmp.eq.s32.totalorder %s28, 0
      %p96 = por %p94, %p95
      %p97 = scmp.ne.s32.totalorder %s85, %s86
      %p98 = scmp.eq.s32.totalorder %s29, 1
      %p99 = por %p97, %p98
      %p101 = scmp.ne.s32.totalorder %s86, %s100
      %p102 = scmp.eq.s32.totalorder %s29, 0
      %p103 = por %p101, %p102
      %s105 = sadd.s32 %s104, 1
      %p108 = scmp.eq.s32.totalorder %s23, 1
      %p109 = scmp.ne.s32.totalorder %s104, %s106
      %p110 = scmp.eq.s32.totalorder %s23, 0
      %p111 = por %p109, %p110
      %p112 = scmp.ne.s32.totalorder %s104, %s106
      %p113 = scmp.eq.s32.totalorder %s28, 1
      %p114 = por %p112, %p113
      %p115 = scmp.ne.s32.totalorder %s106, %s107
      %p116 = scmp.eq.s32.totalorder %s28, 0
      %p117 = por %p115, %p116
      %p118 = scmp.ne.s32.totalorder %s106, %s107
      %p119 = scmp.eq.s32.totalorder %s29, 1
      %p120 = por %p118, %p119
      %p122 = scmp.ne.s32.totalorder %s107, %s121
      %p123 = scmp.eq.s32.totalorder %s29, 0
      %p124 = por %p122, %p123
      %s126 = sadd.s32 %s125, 1
      %p129 = scmp.eq.s32.totalorder %s23, 1
      %p130 = scmp.ne.s32.totalorder %s125, %s127
      %p131 = scmp.eq.s32.totalorder %s23, 0
      %p132 = por %p130, %p131
      %p133 = scmp.ne.s32.totalorder %s125, %s127
      %p134 = scmp.eq.s32.totalorder %s28, 1
      %p135 = por %p133, %p134
      %p136 = scmp.ne.s32.totalorder %s127, %s128
      %p137 = scmp.eq.s32.totalorder %s28, 0
      %p138 = por %p136, %p137
      %p139 = scmp.ne.s32.totalorder %s127, %s128
      %p140 = scmp.eq.s32.totalorder %s29, 1
      %p141 = por %p139, %p140
      %p143 = scmp.ne.s32.totalorder %s128, %s142
      %p144 = scmp.eq.s32.totalorder %s29, 0
      %p145 = por %p143, %p144
      %s147 = sadd.s32 %s146, 1
      %p150 = scmp.eq.s32.totalorder %s23, 1
      %p151 = scmp.ne.s32.totalorder %s146, %s148
      %p152 = scmp.eq.s32.totalorder %s23, 0
      %p153 = por %p151, %p152
      %p154 = scmp.ne.s32.totalorder %s146, %s148
      %p155 = scmp.eq.s32.totalorder %s28, 1
      %p156 = por %p154, %p155
      %p157 = scmp.ne.s32.totalorder %s148, %s149
      %p158 = scmp.eq.s32.totalorder %s28, 0
      %p159 = por %p157, %p158
      %p160 = scmp.ne.s32.totalorder %s148, %s149
      %p161 = scmp.eq.s32.totalorder %s29, 1
      %p162 = por %p160, %p161
      %p164 = scmp.ne.s32.totalorder %s149, %s163
      %p165 = scmp.eq.s32.totalorder %s29, 0
      %p166 = por %p164, %p165
      %s168 = sadd.s32 %s167, 1
      %p171 = scmp.eq.s32.totalorder %s23, 1
      %p172 = scmp.ne.s32.totalorder %s167, %s169
      %p173 = scmp.eq.s32.totalorder %s23, 0
      %p174 = por %p172, %p173
      %p175 = scmp.ne.s32.totalorder %s167, %s169
      %p176 = scmp.eq.s32.totalorder %s28, 1
      %p177 = por %p175, %p176
      %p178 = scmp.ne.s32.totalorder %s169, %s170
      %p179 = scmp.eq.s32.totalorder %s28, 0
      %p180 = por %p178, %p179
      %p181 = scmp.ne.s32.totalorder %s169, %s170
      %p182 = scmp.eq.s32.totalorder %s29, 1
      %p183 = por %p181, %p182
      %p185 = scmp.ne.s32.totalorder %s170, %s184
      %p186 = scmp.eq.s32.totalorder %s29, 0
      %p187 = por %p185, %p186
      %s189 = sadd.s32 %s188, 1
      %p192 = scmp.eq.s32.totalorder %s23, 1
      %p193 = scmp.ne.s32.totalorder %s188, %s190
      %p194 = scmp.eq.s32.totalorder %s23, 0
      %p195 = por %p193, %p194
      %p196 = scmp.ne.s32.totalorder %s188, %s190
      %p197 = scmp.eq.s32.totalorder %s28, 1
      %p198 = por %p196, %p197
      %p199 = scmp.ne.s32.totalorder %s190, %s191
      %p200 = scmp.eq.s32.totalorder %s28, 0
      %p201 = por %p199, %p200
      %p202 = scmp.ne.s32.totalorder %s190, %s191
      %p203 = scmp.eq.s32.totalorder %s29, 1
      %p204 = por %p202, %p203
      %p206 = scmp.ne.s32.totalorder %s191, %s205
      %p207 = scmp.eq.s32.totalorder %s29, 0
      %p208 = por %p206, %p207
      %s210 = sadd.s32 %s209, 1
      %p213 = scmp.eq.s32.totalorder %s23, 1
      %p214 = scmp.ne.s32.totalorder %s209, %s211
      %p215 = scmp.eq.s32.totalorder %s23, 0
      %p216 = por %p214, %p215
      %p217 = scmp.ne.s32.totalorder %s209, %s211
      %p218 = scmp.eq.s32.totalorder %s28, 1
      %p219 = por %p217, %p218
      %p220 = scmp.ne.s32.totalorder %s211, %s212
      %p221 = scmp.eq.s32.totalorder %s28, 0
      %p222 = por %p220, %p221
      %p223 = scmp.ne.s32.totalorder %s211, %s212
      %p224 = scmp.eq.s32.totalorder %s29, 1
      %p225 = por %p223, %p224
      %p227 = scmp.ne.s32.totalorder %s212, %s226
      %p228 = scmp.eq.s32.totalorder %s29, 0
      %p229 = por %p227, %p228
      %s231 = sadd.s32 %s230, 1
      %p234 = scmp.eq.s32.totalorder %s23, 1
      %p235 = scmp.ne.s32.totalorder %s230, %s232
      %p236 = scmp.eq.s32.totalorder %s23, 0
      %p237 = por %p235, %p236
      %p238 = scmp.ne.s32.totalorder %s230, %s232
      %p239 = scmp.eq.s32.totalorder %s28, 1
      %p240 = por %p238, %p239
      %p241 = scmp.ne.s32.totalorder %s232, %s233
      %p242 = scmp.eq.s32.totalorder %s28, 0
      %p243 = por %p241, %p242
      %p244 = scmp.ne.s32.totalorder %s232, %s233
      %p245 = scmp.eq.s32.totalorder %s29, 1
      %p246 = por %p244, %p245
      %p248 = scmp.ne.s32.totalorder %s233, %s247
      %p249 = scmp.eq.s32.totalorder %s29, 0
      %p250 = por %p248, %p249
      %s252 = sadd.s32 %s251, 1
      %p255 = scmp.eq.s32.totalorder %s23, 1
      %p256 = scmp.ne.s32.totalorder %s251, %s253
      %p257 = scmp.eq.s32.totalorder %s23, 0
      %p258 = por %p256, %p257
      %p259 = scmp.ne.s32.totalorder %s251, %s253
      %p260 = scmp.eq.s32.totalorder %s28, 1
      %p261 = por %p259, %p260
      %p262 = scmp.ne.s32.totalorder %s253, %s254
      %p263 = scmp.eq.s32.totalorder %s28, 0
      %p264 = por %p262, %p263
      %p265 = scmp.ne.s32.totalorder %s253, %s254
      %p266 = scmp.eq.s32.totalorder %s29, 1
      %p267 = por %p265, %p266
      %p269 = scmp.ne.s32.totalorder %s254, %s268
      %p270 = scmp.eq.s32.totalorder %s29, 0
      %p271 = por %p269, %p270
      %s273 = sadd.s32 %s272, 1
      %p276 = scmp.eq.s32.totalorder %s23, 1
      %p277 = scmp.ne.s32.totalorder %s272, %s274
      %p278 = scmp.eq.s32.totalorder %s23, 0
      %p279 = por %p277, %p278
      %p280 = scmp.ne.s32.totalorder %s272, %s274
      %p281 = scmp.eq.s32.totalorder %s28, 1
      %p282 = por %p280, %p281
      %p283 = scmp.ne.s32.totalorder %s274, %s275
      %p284 = scmp.eq.s32.totalorder %s28, 0
      %p285 = por %p283, %p284
      %p286 = scmp.ne.s32.totalorder %s274, %s275
      %p287 = scmp.eq.s32.totalorder %s29, 1
      %p288 = por %p286, %p287
      %p290 = scmp.ne.s32.totalorder %s275, %s289
      %p291 = scmp.eq.s32.totalorder %s29, 0
      %p292 = por %p290, %p291
      %s294 = sadd.s32 %s293, 1
      %p297 = scmp.eq.s32.totalorder %s23, 1
      %p298 = scmp.ne.s32.totalorder %s293, %s295
      %p299 = scmp.eq.s32.totalorder %s23, 0
      %p300 = por %p298, %p299
      %p301 = scmp.ne.s32.totalorder %s293, %s295
      %p302 = scmp.eq.s32.totalorder %s28, 1
      %p303 = por %p301, %p302
      %p304 = scmp.ne.s32.totalorder %s295, %s296
      %p305 = scmp.eq.s32.totalorder %s28, 0
      %p306 = por %p304, %p305
      %p307 = scmp.ne.s32.totalorder %s295, %s296
      %p308 = scmp.eq.s32.totalorder %s29, 1
      %p309 = por %p307, %p308
      %p311 = scmp.ne.s32.totalorder %s296, %s310
      %p312 = scmp.eq.s32.totalorder %s29, 0
      %p313 = por %p311, %p312
      %s315 = sadd.s32 %s314, 1
      %p318 = scmp.eq.s32.totalorder %s23, 1
      %p319 = scmp.ne.s32.totalorder %s314, %s316
      %p320 = scmp.eq.s32.totalorder %s23, 0
      %p321 = por %p319, %p320
      %p322 = scmp.ne.s32.totalorder %s314, %s316
      %p323 = scmp.eq.s32.totalorder %s28, 1
      %p324 = por %p322, %p323
      %p325 = scmp.ne.s32.totalorder %s316, %s317
      %p326 = scmp.eq.s32.totalorder %s28, 0
      %p327 = por %p325, %p326
      %p328 = scmp.ne.s32.totalorder %s316, %s317
      %p329 = scmp.eq.s32.totalorder %s29, 1
      %p330 = por %p328, %p329
      %p332 = scmp.ne.s32.totalorder %s317, %s331
      %p333 = scmp.eq.s32.totalorder %s29, 0
      %p334 = por %p332, %p333
      %s335 = ssub.s32 %s23, %s30
      %p336 = scmp.eq.s32.totalorder %s335, 0
      %s338 = sadd.s32 %s337, 1
      %s339 = scalar_select %p336, %s337, %s338
      %p342 = pneg %p336
      %p343 = scmp.eq.s32.totalorder %s23, 1
      %p344 = por %p342, %p343
      %p345 = scmp.ne.s32.totalorder %s337, %s340
      %p346 = scmp.eq.s32.totalorder %s23, 0
      %p347 = por %p345, %p346
      %p348 = scmp.ne.s32.totalorder %s337, %s340
      %p349 = scmp.eq.s32.totalorder %s28, 1
      %p350 = por %p348, %p349
      %p351 = scmp.ne.s32.totalorder %s340, %s341
      %p352 = scmp.eq.s32.totalorder %s28, 0
      %p353 = por %p351, %p352
      %p354 = scmp.ne.s32.totalorder %s340, %s341
      %p355 = scmp.eq.s32.totalorder %s29, 1
      %p356 = por %p354, %p355
      %p358 = scmp.ne.s32.totalorder %s341, %s357
      %p359 = scmp.eq.s32.totalorder %s29, 0
      %p360 = por %p358, %p359
      %p361 = scmp.le.s32.totalorder 1, %s23
      %p362 = scmp.lt.s32.totalorder %s23, 3
      %p363 = pnand %p361, %p362
      %p364 = pneg %p363
      // Predicated region
      $region9: #{bert_forward.1} parent=5 // pred_check
        _
      $region10: #{bert_forward.1} parent=5 // pred_check_branch
        %366 = sbr.rel (%p363) target = $region12
      $region11: #{bert_forward.1} parent=5 // pred_region
        %s367 = ssub.s32 %s23, 1
        // Predicated region
        $region13: #{bert_forward.1} parent=11 // pred_check
          %p368 = pneg %p96
        $region14: #{bert_forward.1} parent=11 // pred_check_branch
          %370 = sbr.rel (%p368) target = $region16
        $region15: #{bert_forward.1} parent=11 // pred_region
          _
        $region16: #{bert_forward.1} parent=11 // pred_fallthru
          _
        // Predicated region
        $region17: #{bert_forward.1} parent=11 // pred_check
          %p371 = pneg %p117
        $region18: #{bert_forward.1} parent=11 // pred_check_branch
          %373 = sbr.rel (%p371) target = $region20
        $region19: #{bert_forward.1} parent=11 // pred_region
          _
        $region20: #{bert_forward.1} parent=11 // pred_fallthru
          _
        // Predicated region
        $region21: #{bert_forward.1} parent=11 // pred_check
          %p374 = pneg %p138
        $region22: #{bert_forward.1} parent=11 // pred_check_branch
          %376 = sbr.rel (%p374) target = $region24
        $region23: #{bert_forward.1} parent=11 // pred_region
          _
        $region24: #{bert_forward.1} parent=11 // pred_fallthru
          _
        // Predicated region
        $region25: #{bert_forward.1} parent=11 // pred_check
          %p377 = pneg %p159
        $region26: #{bert_forward.1} parent=11 // pred_check_branch
          %379 = sbr.rel (%p377) target = $region28
        $region27: #{bert_forward.1} parent=11 // pred_region
          _
        $region28: #{bert_forward.1} parent=11 // pred_fallthru
          _
        // Predicated region
        $region29: #{bert_forward.1} parent=11 // pred_check
          %p380 = pneg %p180
        $region30: #{bert_forward.1} parent=11 // pred_check_branch
          %382 = sbr.rel (%p380) target = $region32
        $region31: #{bert_forward.1} parent=11 // pred_region
          _
        $region32: #{bert_forward.1} parent=11 // pred_fallthru
          _
        // Predicated region
        $region33: #{bert_forward.1} parent=11 // pred_check
          %p383 = pneg %p201
        $region34: #{bert_forward.1} parent=11 // pred_check_branch
          %385 = sbr.rel (%p383) target = $region36
        $region35: #{bert_forward.1} parent=11 // pred_region
          _
        $region36: #{bert_forward.1} parent=11 // pred_fallthru
          _
        // Predicated region
        $region37: #{bert_forward.1} parent=11 // pred_check
          %p386 = pneg %p222
        $region38: #{bert_forward.1} parent=11 // pred_check_branch
          %388 = sbr.rel (%p386) target = $region40
        $region39: #{bert_forward.1} parent=11 // pred_region
          _
        $region40: #{bert_forward.1} parent=11 // pred_fallthru
          _
        // Predicated region
        $region41: #{bert_forward.1} parent=11 // pred_check
          %p389 = pneg %p243
        $region42: #{bert_forward.1} parent=11 // pred_check_branch
          %391 = sbr.rel (%p389) target = $region44
        $region43: #{bert_forward.1} parent=11 // pred_region
          _
        $region44: #{bert_forward.1} parent=11 // pred_fallthru
          _
        // Predicated region
        $region45: #{bert_forward.1} parent=11 // pred_check
          %p392 = pneg %p264
        $region46: #{bert_forward.1} parent=11 // pred_check_branch
          %394 = sbr.rel (%p392) target = $region48
        $region47: #{bert_forward.1} parent=11 // pred_region
          _
        $region48: #{bert_forward.1} parent=11 // pred_fallthru
          _
        // Predicated region
        $region49: #{bert_forward.1} parent=11 // pred_check
          %p395 = pneg %p285
        $region50: #{bert_forward.1} parent=11 // pred_check_branch
          %397 = sbr.rel (%p395) target = $region52
        $region51: #{bert_forward.1} parent=11 // pred_region
          _
        $region52: #{bert_forward.1} parent=11 // pred_fallthru
          _
        // Predicated region
        $region53: #{bert_forward.1} parent=11 // pred_check
          %p398 = pneg %p306
        $region54: #{bert_forward.1} parent=11 // pred_check_branch
          %400 = sbr.rel (%p398) target = $region56
        $region55: #{bert_forward.1} parent=11 // pred_region
          _
        $region56: #{bert_forward.1} parent=11 // pred_fallthru
          _
        // Predicated region
        $region57: #{bert_forward.1} parent=11 // pred_check
          %p401 = pneg %p327
        $region58: #{bert_forward.1} parent=11 // pred_check_branch
          %403 = sbr.rel (%p401) target = $region60
        $region59: #{bert_forward.1} parent=11 // pred_region
          _
        $region60: #{bert_forward.1} parent=11 // pred_fallthru
          _
      $region12: #{bert_forward.1} parent=5 // pred_fallthru
        _
      %p404 = scmp.lt.s32.totalorder %s23, 2
      // Predicated region
      $region61: #{bert_forward.1} parent=5 // pred_check
        %p405 = pneg %p404
      $region62: #{bert_forward.1} parent=5 // pred_check_branch
        %407 = sbr.rel (%p405) target = $region64
      $region63: #{bert_forward.1} parent=5 // pred_region
        // Predicated region
        $region65: #{bert_forward.1} parent=63 // pred_check
          %p408 = pneg %p43
        $region66: #{bert_forward.1} parent=63 // pred_check_branch
          %410 = sbr.rel (%p408) target = $region68
        $region67: #{bert_forward.1} parent=63 // pred_region
          %p411 = scmp.lt.s32.totalorder %s23, 1
          %s412 = scalar_select %p411, %s23, 1
          %s413 = smul.addr %s412, 8
          %s414 = scalar_lea.vmem %s0, %s413
        $region68: #{bert_forward.1} parent=63 // pred_fallthru
          _
        // Predicated region
        $region69: #{bert_forward.1} parent=63 // pred_check
          %p415 = pneg %p69
        $region70: #{bert_forward.1} parent=63 // pred_check_branch
          %417 = sbr.rel (%p415) target = $region72
        $region71: #{bert_forward.1} parent=63 // pred_region
          %p418 = scmp.lt.s32.totalorder %s23, 1
          %s419 = scalar_select %p418, %s23, 1
          %s420 = scalar_lea.vmem %s1, %s419
        $region72: #{bert_forward.1} parent=63 // pred_fallthru
          _
      $region64: #{bert_forward.1} parent=5 // pred_fallthru
        _
      %p421 = scmp.le.s32.totalorder 1, %s23
      %p422 = scmp.lt.s32.totalorder %s23, 3
      %p423 = pnand %p421, %p422
      %p424 = pneg %p423
      // Predicated region
      $region73: #{bert_forward.1} parent=5 // pred_check
        _
      $region74: #{bert_forward.1} parent=5 // pred_check_branch
        %426 = sbr.rel (%p423) target = $region76
      $region75: #{bert_forward.1} parent=5 // pred_region
        %s427 = ssub.s32 %s23, 1
        %p428 = scmp.lt.s32.totalorder %s28, 1
        %s429 = scalar_select %p428, %s28, 1
        %s430 = smul.addr %s429, 8
        %s431 = scalar_lea.vmem %s0, %s430
        %p432 = pneg %p49
        %p433 = pneg %p46
        %p434 = scmp.lt.s32.totalorder %s28, 1
        %s435 = scalar_select %p434, %s28, 1
        %s436 = scalar_lea.vmem %s1, %s435
        %p437 = pneg %p75
        %p438 = pneg %p72
        %p439 = pneg %p96
        %p440 = pneg %p93
        %p441 = pneg %p117
        %p442 = pneg %p114
        %p443 = pneg %p138
        %p444 = pneg %p135
        %p445 = pneg %p159
        %p446 = pneg %p156
        %p447 = pneg %p180
        %p448 = pneg %p177
        %p449 = pneg %p201
        %p450 = pneg %p198
        %p451 = pneg %p222
        %p452 = pneg %p219
        %p453 = pneg %p243
        %p454 = pneg %p240
        %p455 = pneg %p264
        %p456 = pneg %p261
        %p457 = pneg %p285
        %p458 = pneg %p282
        %p459 = pneg %p306
        %p460 = pneg %p303
        %p461 = pneg %p327
        %p462 = pneg %p324
        %p463 = pneg %p353
        %p464 = pneg %p350
        %s465 = sand.u32 %s340, 1
        %s466 = scalar_lea.sflag [#allocation3], %s465
        %s467 = sand.u32 %s340, 1
        %s468 = smul.addr %s467, 8
        %s469 = scalar_lea.vmem [#allocation2], %s468
        %p470 = scmp.lt.s32.totalorder %s28, 1
        %s471 = scalar_select %p470, %s28, 1
        %s472 = smul.addr %s471, 8
        %s473 = scalar_lea.vmem %s0, %s472
        %p474 = scmp.lt.s32.totalorder %s28, 1
        %s475 = scalar_select %p474, %s28, 1
        %s476 = scalar_lea.vmem %s1, %s475
        %v478 = vld [vmem:[%s473] sm:$0xff]
        %v479 = vld [vmem:[%s476] sm:$0x1]
        %v480 = vpack.c.bf16 %v478, %v478
        %v481 = vld [vmem:[%s2] sm:$0xf]
        %v482 = vld [vmem:[%s2 + $0x4] sm:$0xf]
        %v483 = vld [vmem:[%s2 + $0x8] sm:$0xf]
        %v484 = vld [vmem:[%s2 + $0xc] sm:$0xf]
        %v485 = vld [vmem:[%s3] sm:$0x1]
        %v487 = vlaneseq
        %v488 = vshrl.u32 %v487, 7
        %v489 = vsub.s32 0, %v488
        %v490 = vrot.slane %v485, %v489
        %v496 = vunpack.c.l.b16 %v481
        %v497 = vunpack.c.l.b16 %v482
        %v498 = vunpack.c.l.b16 %v483
        %v499 = vunpack.c.l.b16 %v484
        %v500 = vpack.c.b16 %v497, %v496
        %v501 = vpack.c.b16 %v499, %v498
        %vm504 = vcmask 261120
        %v506 = vsel %vm504, %v480, 0
        %508 = vmatprep.subr.bf16.mxu0 0
        %509 = vmatpush1.bf16.msra.mxu0 %v500
        %510 = vmatprep.subr.bf16.mxu0 0
        %511 = vmatpush1.bf16.msra.mxu0 %v501
        %512 = vmatprep.subr.bf16.mxu0 0
        %513 = vmatpush1.bf16.msra.mxu0 0
        %514 = vmatprep.subr.bf16.mxu0 0
        %515 = vmatpush1.bf16.msra.mxu0 0
        %516 = vmatprep.subr.bf16.mxu0 0
        %517 = vmatpush1.bf16.msra.mxu0 0
        %518 = vmatprep.subr.bf16.mxu0 0
        %519 = vmatpush1.bf16.msra.mxu0 0
        %520 = vmatprep.subr.bf16.mxu0 0
        %521 = vmatpush1.bf16.msra.mxu0 0
        %522 = vmatprep.subr.bf16.mxu0 0
        %523 = vmatpush1.bf16.msra.mxu0 0
        %524 = vmatprep.subr.bf16.mxu0 0
        %525 = vmatpush1.bf16.msra.mxu0 0
        %526 = vmatprep.subr.bf16.mxu0 0
        %527 = vmatpush1.bf16.msra.mxu0 0
        %528 = vmatprep.subr.bf16.mxu0 0
        %529 = vmatpush1.bf16.msra.mxu0 0
        %530 = vmatprep.subr.bf16.mxu0 0
        %531 = vmatpush1.bf16.msra.mxu0 0
        %532 = vmatprep.subr.bf16.mxu0 0
        %533 = vmatpush1.bf16.msra.mxu0 0
        %534 = vmatprep.subr.bf16.mxu0 0
        %535 = vmatpush1.bf16.msra.mxu0 0
        %536 = vmatprep.subr.bf16.mxu0 0
        %537 = vmatpush1.bf16.msra.mxu0 0
        %538 = vmatprep.subr.bf16.mxu0 0
        %539 = vmatpush1.bf16.msra.mxu0 0
        %540 = vmatprep.mubr.bf16.mxu0 0
        %541 = vmatmul.mubr.bf16.gmra.mrb[0].mxu0 %v506
        %v542 = vpop.f32.mrb[0].mxu0
        %v543 = vadd.f32 %v490, %v542
        %v544 = vpop.f32.mrb[0].mxu0
        %v545 = vpop.f32.mrb[0].mxu0
        %v546 = vpop.f32.mrb[0].mxu0
        %547 = vdwg.mxu0
        %549 = vrot.lane.b32.xlu0 %v543, 96
        %v550 = vpop.permute.xlu0 %549
        %vm551 = vcmask 64512
        %v552 = vsel %vm551, %v543, 0
        %v554 = vsel %vm551, %v550, 0
        %556 = vmatprep.subr.mxu0 0.0
        %557 = vmatpush1.xpose.msra.mxu0 %v554
        %558 = vmatprep.subr.mxu0 0.0
        %559 = vmatpush1.xpose.msra.mxu0 0.0
        %560 = vmatprep.subr.mxu0 0.0
        %561 = vmatpush1.xpose.msra.mxu0 0.0
        %562 = vmatprep.subr.mxu0 0.0
        %563 = vmatpush1.xpose.msra.mxu0 0.0
        %564 = vmatprep.subr.mxu0 0.0
        %565 = vmatpush1.xpose.msra.mxu0 0.0
        %566 = vmatprep.subr.mxu0 0.0
        %567 = vmatpush1.xpose.msra.mxu0 0.0
        %568 = vmatprep.subr.mxu0 0.0
        %569 = vmatpush1.xpose.msra.mxu0 0.0
        %570 = vmatprep.subr.mxu0 0.0
        %571 = vmatpush1.xpose.msra.mxu0 0.0
        %572 = vmatprep.subr.mxu0 0.0
        %573 = vmatpush1.xpose.msra.mxu0 0.0
        %574 = vmatprep.subr.mxu0 0.0
        %575 = vmatpush1.xpose.msra.mxu0 0.0
        %576 = vmatprep.subr.mxu0 0.0
        %577 = vmatpush1.xpose.msra.mxu0 0.0
        %578 = vmatprep.subr.mxu0 0.0
        %579 = vmatpush1.xpose.msra.mxu0 0.0
        %580 = vmatprep.subr.mxu0 0.0
        %581 = vmatpush1.xpose.msra.mxu0 0.0
        %582 = vmatprep.subr.mxu0 0.0
        %583 = vmatpush1.xpose.msra.mxu0 0.0
        %584 = vmatprep.subr.mxu0 0.0
        %585 = vmatpush1.xpose.msra.mxu0 0.0
        %586 = vmatprep.subr.mxu0 0.0
        %587 = vmatpush1.xpose.msra.mxu0 0.0
        %588 = vmatprep.subr.mxu0 0.0
        %589 = vmatpush1.xpose.msra.mxu0 0.0
        %590 = vmatprep.subr.mxu0 0.0
        %591 = vmatpush1.xpose.msra.mxu0 0.0
        %592 = vmatprep.subr.mxu0 0.0
        %593 = vmatpush1.xpose.msra.mxu0 0.0
        %594 = vmatprep.subr.mxu0 0.0
        %595 = vmatpush1.xpose.msra.mxu0 0.0
        %596 = vmatprep.subr.mxu0 0.0
        %597 = vmatpush1.xpose.msra.mxu0 0.0
        %598 = vmatprep.subr.mxu0 0.0
        %599 = vmatpush1.xpose.msra.mxu0 0.0
        %600 = vmatprep.subr.mxu0 0.0
        %601 = vmatpush1.xpose.msra.mxu0 0.0
        %602 = vmatprep.subr.mxu0 0.0
        %603 = vmatpush1.xpose.msra.mxu0 0.0
        %604 = vmatprep.subr.mxu0 0.0
        %605 = vmatpush1.xpose.msra.mxu0 0.0
        %606 = vmatprep.subr.mxu0 0.0
        %607 = vmatpush1.xpose.msra.mxu0 0.0
        %608 = vmatprep.subr.mxu0 0.0
        %609 = vmatpush1.xpose.msra.mxu0 0.0
        %610 = vmatprep.subr.mxu0 0.0
        %611 = vmatpush1.xpose.msra.mxu0 0.0
        %612 = vmatprep.subr.mxu0 0.0
        %613 = vmatpush1.xpose.msra.mxu0 0.0
        %614 = vmatprep.subr.mxu0 0.0
        %615 = vmatpush1.xpose.msra.mxu0 0.0
        %616 = vmatprep.subr.mxu0 0.0
        %617 = vmatpush1.xpose.msra.mxu0 0.0
        %618 = vmatprep.subr.mxu0 0.0
        %619 = vmatpush1.xpose.msra.mxu0 0.0
        %620 = vmatprep.mubr.f32.mxu0 0.0
        %621 = vmatmul.mubr.f32.gmra.mrb[0].mxu0 %v552
        %v622 = vpop.f32.mrb[0].mxu0
        %v623 = vadd.f32 0.0, %v622
        %v624 = vpop.f32.mrb[0].mxu0
        %625 = vdwg.mxu0
        %v626 = vmul.f32 %v623, 0.35355338
        %v628 = vlaneseq
        %v629 = vshrl.u32 %v628, 7
        %v630 = vsub.s32 0, %v629
        %v631 = vrot.slane %v479, %v630
        %v633 = vadd.f32 %v626, %v631
        %v634 = vsel %vm551, %v633, -inf
        %635 = vmax.xlane.f32.xlu0 %v634
        %v636 = vpop.xlane.xlu0 %635
        %v637 = vsub.f32 %v633, %v636
        %v638 = vmul.f32 %v637, 1.442695
        %v639 = vpow.pop %v638
        %v640 = vsel %vm551, %v639, 0.0
        %641 = vadd.xlane.f32.xlu0 %v640
        %v642 = vpop.xlane.xlu0 %641
        %v643 = vrcp.pop %v642
        %v644 = vmul.f32 %v639, %v643
        %645 = vrot.lane.b32.xlu0 %v543, 64
        %v646 = vpop.permute.xlu0 %645
        %v649 = vsel %vm551, %v644, 0
        %651 = vmatprep.subr.mxu0 0.0
        %652 = vmatpush1.msra.mxu0 %v646
        %653 = vmatprep.subr.mxu0 0.0
        %654 = vmatpush1.msra.mxu0 0.0
        %655 = vmatprep.subr.mxu0 0.0
        %656 = vmatpush1.msra.mxu0 0.0
        %657 = vmatprep.subr.mxu0 0.0
        %658 = vmatpush1.msra.mxu0 0.0
        %659 = vmatprep.subr.mxu0 0.0
        %660 = vmatpush1.msra.mxu0 0.0
        %661 = vmatprep.subr.mxu0 0.0
        %662 = vmatpush1.msra.mxu0 0.0
        %663 = vmatprep.subr.mxu0 0.0
        %664 = vmatpush1.msra.mxu0 0.0
        %665 = vmatprep.subr.mxu0 0.0
        %666 = vmatpush1.msra.mxu0 0.0
        %667 = vmatprep.subr.mxu0 0.0
        %668 = vmatpush1.msra.mxu0 0.0
        %669 = vmatprep.subr.mxu0 0.0
        %670 = vmatpush1.msra.mxu0 0.0
        %671 = vmatprep.subr.mxu0 0.0
        %672 = vmatpush1.msra.mxu0 0.0
        %673 = vmatprep.subr.mxu0 0.0
        %674 = vmatpush1.msra.mxu0 0.0
        %675 = vmatprep.subr.mxu0 0.0
        %676 = vmatpush1.msra.mxu0 0.0
        %677 = vmatprep.subr.mxu0 0.0
        %678 = vmatpush1.msra.mxu0 0.0
        %679 = vmatprep.subr.mxu0 0.0
        %680 = vmatpush1.msra.mxu0 0.0
        %681 = vmatprep.subr.mxu0 0.0
        %682 = vmatpush1.msra.mxu0 0.0
        %683 = vmatprep.subr.mxu0 0.0
        %684 = vmatpush1.msra.mxu0 0.0
        %685 = vmatprep.subr.mxu0 0.0
        %686 = vmatpush1.msra.mxu0 0.0
        %687 = vmatprep.subr.mxu0 0.0
        %688 = vmatpush1.msra.mxu0 0.0
        %689 = vmatprep.subr.mxu0 0.0
        %690 = vmatpush1.msra.mxu0 0.0
        %691 = vmatprep.subr.mxu0 0.0
        %692 = vmatpush1.msra.mxu0 0.0
        %693 = vmatprep.subr.mxu0 0.0
        %694 = vmatpush1.msra.mxu0 0.0
        %695 = vmatprep.subr.mxu0 0.0
        %696 = vmatpush1.msra.mxu0 0.0
        %697 = vmatprep.subr.mxu0 0.0
        %698 = vmatpush1.msra.mxu0 0.0
        %699 = vmatprep.subr.mxu0 0.0
        %700 = vmatpush1.msra.mxu0 0.0
        %701 = vmatprep.subr.mxu0 0.0
        %702 = vmatpush1.msra.mxu0 0.0
        %703 = vmatprep.subr.mxu0 0.0
        %704 = vmatpush1.msra.mxu0 0.0
        %705 = vmatprep.subr.mxu0 0.0
        %706 = vmatpush1.msra.mxu0 0.0
        %707 = vmatprep.subr.mxu0 0.0
        %708 = vmatpush1.msra.mxu0 0.0
        %709 = vmatprep.subr.mxu0 0.0
        %710 = vmatpush1.msra.mxu0 0.0
        %711 = vmatprep.subr.mxu0 0.0
        %712 = vmatpush1.msra.mxu0 0.0
        %713 = vmatprep.subr.mxu0 0.0
        %714 = vmatpush1.msra.mxu0 0.0
        %715 = vmatprep.mubr.f32.mxu0 0.0
        %716 = vmatmul.mubr.f32.gmra.mrb[0].mxu0 %v649
        %v717 = vpop.f32.mrb[0].mxu0
        %v718 = vadd.f32 0.0, %v717
        %v719 = vpop.f32.mrb[0].mxu0
        %720 = vdwg.mxu0
        %721 = vrot.lane.b32.xlu0 %v543, 120
        %v722 = vpop.permute.xlu0 %721
        %723 = vrot.lane.b32.xlu0 %v543, 88
        %v724 = vpop.permute.xlu0 %723
        %v725 = vsel %vm551, %v722, 0
        %v727 = vsel %vm551, %v724, 0
        %729 = vmatprep.subr.mxu0 0.0
        %730 = vmatpush1.xpose.msra.mxu0 %v727
        %731 = vmatprep.subr.mxu0 0.0
        %732 = vmatpush1.xpose.msra.mxu0 0.0
        %733 = vmatprep.subr.mxu0 0.0
        %734 = vmatpush1.xpose.msra.mxu0 0.0
        %735 = vmatprep.subr.mxu0 0.0
        %736 = vmatpush1.xpose.msra.mxu0 0.0
        %737 = vmatprep.subr.mxu0 0.0
        %738 = vmatpush1.xpose.msra.mxu0 0.0
        %739 = vmatprep.subr.mxu0 0.0
        %740 = vmatpush1.xpose.msra.mxu0 0.0
        %741 = vmatprep.subr.mxu0 0.0
        %742 = vmatpush1.xpose.msra.mxu0 0.0
        %743 = vmatprep.subr.mxu0 0.0
        %744 = vmatpush1.xpose.msra.mxu0 0.0
        %745 = vmatprep.subr.mxu0 0.0
        %746 = vmatpush1.xpose.msra.mxu0 0.0
        %747 = vmatprep.subr.mxu0 0.0
        %748 = vmatpush1.xpose.msra.mxu0 0.0
        %749 = vmatprep.subr.mxu0 0.0
        %750 = vmatpush1.xpose.msra.mxu0 0.0
        %751 = vmatprep.subr.mxu0 0.0
        %752 = vmatpush1.xpose.msra.mxu0 0.0
        %753 = vmatprep.subr.mxu0 0.0
        %754 = vmatpush1.xpose.msra.mxu0 0.0
        %755 = vmatprep.subr.mxu0 0.0
        %756 = vmatpush1.xpose.msra.mxu0 0.0
        %757 = vmatprep.subr.mxu0 0.0
        %758 = vmatpush1.xpose.msra.mxu0 0.0
        %759 = vmatprep.subr.mxu0 0.0
        %760 = vmatpush1.xpose.msra.mxu0 0.0
        %761 = vmatprep.subr.mxu0 0.0
        %762 = vmatpush1.xpose.msra.mxu0 0.0
        %763 = vmatprep.subr.mxu0 0.0
        %764 = vmatpush1.xpose.msra.mxu0 0.0
        %765 = vmatprep.subr.mxu0 0.0
        %766 = vmatpush1.xpose.msra.mxu0 0.0
        %767 = vmatprep.subr.mxu0 0.0
        %768 = vmatpush1.xpose.msra.mxu0 0.0
        %769 = vmatprep.subr.mxu0 0.0
        %770 = vmatpush1.xpose.msra.mxu0 0.0
        %771 = vmatprep.subr.mxu0 0.0
        %772 = vmatpush1.xpose.msra.mxu0 0.0
        %773 = vmatprep.subr.mxu0 0.0
        %774 = vmatpush1.xpose.msra.mxu0 0.0
        %775 = vmatprep.subr.mxu0 0.0
        %776 = vmatpush1.xpose.msra.mxu0 0.0
        %777 = vmatprep.subr.mxu0 0.0
        %778 = vmatpush1.xpose.msra.mxu0 0.0
        %779 = vmatprep.subr.mxu0 0.0
        %780 = vmatpush1.xpose.msra.mxu0 0.0
        %781 = vmatprep.subr.mxu0 0.0
        %782 = vmatpush1.xpose.msra.mxu0 0.0
        %783 = vmatprep.subr.mxu0 0.0
        %784 = vmatpush1.xpose.msra.mxu0 0.0
        %785 = vmatprep.subr.mxu0 0.0
        %786 = vmatpush1.xpose.msra.mxu0 0.0
        %787 = vmatprep.subr.mxu0 0.0
        %788 = vmatpush1.xpose.msra.mxu0 0.0
        %789 = vmatprep.subr.mxu0 0.0
        %790 = vmatpush1.xpose.msra.mxu0 0.0
        %791 = vmatprep.subr.mxu0 0.0
        %792 = vmatpush1.xpose.msra.mxu0 0.0
        %793 = vmatprep.mubr.f32.mxu0 0.0
        %794 = vmatmul.mubr.f32.gmra.mrb[0].mxu0 %v725
        %v795 = vpop.f32.mrb[0].mxu0
        %v796 = vadd.f32 0.0, %v795
        %v797 = vpop.f32.mrb[0].mxu0
        %798 = vdwg.mxu0
        %v799 = vmul.f32 %v796, 0.35355338
        %v800 = vadd.f32 %v799, %v631
        %v801 = vsel %vm551, %v800, -inf
        %802 = vmax.xlane.f32.xlu0 %v801
        %v803 = vpop.xlane.xlu0 %802
        %v804 = vsub.f32 %v800, %v803
        %v805 = vmul.f32 %v804, 1.442695
        %v806 = vpow.pop %v805
        %v807 = vsel %vm551, %v806, 0.0
        %808 = vadd.xlane.f32.xlu0 %v807
        %v809 = vpop.xlane.xlu0 %808
        %v810 = vrcp.pop %v809
        %v811 = vmul.f32 %v806, %v810
        %812 = vrot.lane.b32.xlu0 %v543, 56
        %v813 = vpop.permute.xlu0 %812
        %v816 = vsel %vm551, %v811, 0
        %818 = vmatprep.subr.mxu0 0.0
        %819 = vmatpush1.msra.mxu0 %v813
        %820 = vmatprep.subr.mxu0 0.0
        %821 = vmatpush1.msra.mxu0 0.0
        %822 = vmatprep.subr.mxu0 0.0
        %823 = vmatpush1.msra.mxu0 0.0
        %824 = vmatprep.subr.mxu0 0.0
        %825 = vmatpush1.msra.mxu0 0.0
        %826 = vmatprep.subr.mxu0 0.0
        %827 = vmatpush1.msra.mxu0 0.0
        %828 = vmatprep.subr.mxu0 0.0
        %829 = vmatpush1.msra.mxu0 0.0
        %830 = vmatprep.subr.mxu0 0.0
        %831 = vmatpush1.msra.mxu0 0.0
        %832 = vmatprep.subr.mxu0 0.0
        %833 = vmatpush1.msra.mxu0 0.0
        %834 = vmatprep.subr.mxu0 0.0
        %835 = vmatpush1.msra.mxu0 0.0
        %836 = vmatprep.subr.mxu0 0.0
        %837 = vmatpush1.msra.mxu0 0.0
        %838 = vmatprep.subr.mxu0 0.0
        %839 = vmatpush1.msra.mxu0 0.0
        %840 = vmatprep.subr.mxu0 0.0
        %841 = vmatpush1.msra.mxu0 0.0
        %842 = vmatprep.subr.mxu0 0.0
        %843 = vmatpush1.msra.mxu0 0.0
        %844 = vmatprep.subr.mxu0 0.0
        %845 = vmatpush1.msra.mxu0 0.0
        %846 = vmatprep.subr.mxu0 0.0
        %847 = vmatpush1.msra.mxu0 0.0
        %848 = vmatprep.subr.mxu0 0.0
        %849 = vmatpush1.msra.mxu0 0.0
        %850 = vmatprep.subr.mxu0 0.0
        %851 = vmatpush1.msra.mxu0 0.0
        %852 = vmatprep.subr.mxu0 0.0
        %853 = vmatpush1.msra.mxu0 0.0
        %854 = vmatprep.subr.mxu0 0.0
        %855 = vmatpush1.msra.mxu0 0.0
        %856 = vmatprep.subr.mxu0 0.0
        %857 = vmatpush1.msra.mxu0 0.0
        %858 = vmatprep.subr.mxu0 0.0
        %859 = vmatpush1.msra.mxu0 0.0
        %860 = vmatprep.subr.mxu0 0.0
        %861 = vmatpush1.msra.mxu0 0.0
        %862 = vmatprep.subr.mxu0 0.0
        %863 = vmatpush1.msra.mxu0 0.0
        %864 = vmatprep.subr.mxu0 0.0
        %865 = vmatpush1.msra.mxu0 0.0
        %866 = vmatprep.subr.mxu0 0.0
        %867 = vmatpush1.msra.mxu0 0.0
        %868 = vmatprep.subr.mxu0 0.0
        %869 = vmatpush1.msra.mxu0 0.0
        %870 = vmatprep.subr.mxu0 0.0
        %871 = vmatpush1.msra.mxu0 0.0
        %872 = vmatprep.subr.mxu0 0.0
        %873 = vmatpush1.msra.mxu0 0.0
        %874 = vmatprep.subr.mxu0 0.0
        %875 = vmatpush1.msra.mxu0 0.0
        %876 = vmatprep.subr.mxu0 0.0
        %877 = vmatpush1.msra.mxu0 0.0
        %878 = vmatprep.subr.mxu0 0.0
        %879 = vmatpush1.msra.mxu0 0.0
        %880 = vmatprep.subr.mxu0 0.0
        %881 = vmatpush1.msra.mxu0 0.0
        %882 = vmatprep.mubr.f32.mxu0 0.0
        %883 = vmatmul.mubr.f32.gmra.mrb[0].mxu0 %v816
        %v884 = vpop.f32.mrb[0].mxu0
        %v885 = vadd.f32 0.0, %v884
        %v886 = vpop.f32.mrb[0].mxu0
        %887 = vdwg.mxu0
        %888 = vrot.lane.b32.xlu0 %v543, 112
        %v889 = vpop.permute.xlu0 %888
        %890 = vrot.lane.b32.xlu0 %v543, 80
        %v891 = vpop.permute.xlu0 %890
        %v892 = vsel %vm551, %v889, 0
        %v894 = vsel %vm551, %v891, 0
        %896 = vmatprep.subr.mxu0 0.0
        %897 = vmatpush1.xpose.msra.mxu0 %v894
        %898 = vmatprep.subr.mxu0 0.0
        %899 = vmatpush1.xpose.msra.mxu0 0.0
        %900 = vmatprep.subr.mxu0 0.0
        %901 = vmatpush1.xpose.msra.mxu0 0.0
        %902 = vmatprep.subr.mxu0 0.0
        %903 = vmatpush1.xpose.msra.mxu0 0.0
        %904 = vmatprep.subr.mxu0 0.0
        %905 = vmatpush1.xpose.msra.mxu0 0.0
        %906 = vmatprep.subr.mxu0 0.0
        %907 = vmatpush1.xpose.msra.mxu0 0.0
        %908 = vmatprep.subr.mxu0 0.0
        %909 = vmatpush1.xpose.msra.mxu0 0.0
        %910 = vmatprep.subr.mxu0 0.0
        %911 = vmatpush1.xpose.msra.mxu0 0.0
        %912 = vmatprep.subr.mxu0 0.0
        %913 = vmatpush1.xpose.msra.mxu0 0.0
        %914 = vmatprep.subr.mxu0 0.0
        %915 = vmatpush1.xpose.msra.mxu0 0.0
        %916 = vmatprep.subr.mxu0 0.0
        %917 = vmatpush1.xpose.msra.mxu0 0.0
        %918 = vmatprep.subr.mxu0 0.0
        %919 = vmatpush1.xpose.msra.mxu0 0.0
        %920 = vmatprep.subr.mxu0 0.0
        %921 = vmatpush1.xpose.msra.mxu0 0.0
        %922 = vmatprep.subr.mxu0 0.0
        %923 = vmatpush1.xpose.msra.mxu0 0.0
        %924 = vmatprep.subr.mxu0 0.0
        %925 = vmatpush1.xpose.msra.mxu0 0.0
        %926 = vmatprep.subr.mxu0 0.0
        %927 = vmatpush1.xpose.msra.mxu0 0.0
        %928 = vmatprep.subr.mxu0 0.0
        %929 = vmatpush1.xpose.msra.mxu0 0.0
        %930 = vmatprep.subr.mxu0 0.0
        %931 = vmatpush1.xpose.msra.mxu0 0.0
        %932 = vmatprep.subr.mxu0 0.0
        %933 = vmatpush1.xpose.msra.mxu0 0.0
        %934 = vmatprep.subr.mxu0 0.0
        %935 = vmatpush1.xpose.msra.mxu0 0.0
        %936 = vmatprep.subr.mxu0 0.0
        %937 = vmatpush1.xpose.msra.mxu0 0.0
        %938 = vmatprep.subr.mxu0 0.0
        %939 = vmatpush1.xpose.msra.mxu0 0.0
        %940 = vmatprep.subr.mxu0 0.0
        %941 = vmatpush1.xpose.msra.mxu0 0.0
        %942 = vmatprep.subr.mxu0 0.0
        %943 = vmatpush1.xpose.msra.mxu0 0.0
        %944 = vmatprep.subr.mxu0 0.0
        %945 = vmatpush1.xpose.msra.mxu0 0.0
        %946 = vmatprep.subr.mxu0 0.0
        %947 = vmatpush1.xpose.msra.mxu0 0.0
        %948 = vmatprep.subr.mxu0 0.0
        %949 = vmatpush1.xpose.msra.mxu0 0.0
        %950 = vmatprep.subr.mxu0 0.0
        %951 = vmatpush1.xpose.msra.mxu0 0.0
        %952 = vmatprep.subr.mxu0 0.0
        %953 = vmatpush1.xpose.msra.mxu0 0.0
        %954 = vmatprep.subr.mxu0 0.0
        %955 = vmatpush1.xpose.msra.mxu0 0.0
        %956 = vmatprep.subr.mxu0 0.0
        %957 = vmatpush1.xpose.msra.mxu0 0.0
        %958 = vmatprep.subr.mxu0 0.0
        %959 = vmatpush1.xpose.msra.mxu0 0.0
        %960 = vmatprep.mubr.f32.mxu0 0.0
        %961 = vmatmul.mubr.f32.gmra.mrb[0].mxu0 %v892
        %v962 = vpop.f32.mrb[0].mxu0
        %v963 = vadd.f32 0.0, %v962
        %v964 = vpop.f32.mrb[0].mxu0
        %965 = vdwg.mxu0
        %v966 = vmul.f32 %v963, 0.35355338
        %v967 = vadd.f32 %v966, %v631
        %v968 = vsel %vm551, %v967, -inf
        %969 = vmax.xlane.f32.xlu0 %v968
        %v970 = vpop.xlane.xlu0 %969
        %v971 = vsub.f32 %v967, %v970
        %v972 = vmul.f32 %v971, 1.442695
        %v973 = vpow.pop %v972
        %v974 = vsel %vm551, %v973, 0.0
        %975 = vadd.xlane.f32.xlu0 %v974
        %v976 = vpop.xlane.xlu0 %975
        %v977 = vrcp.pop %v976
        %v978 = vmul.f32 %v973, %v977
        %979 = vrot.lane.b32.xlu0 %v543, 48
        %v980 = vpop.permute.xlu0 %979
        %v983 = vsel %vm551, %v978, 0
        %985 = vmatprep.subr.mxu0 0.0
        %986 = vmatpush1.msra.mxu0 %v980
        %987 = vmatprep.subr.mxu0 0.0
        %988 = vmatpush1.msra.mxu0 0.0
        %989 = vmatprep.subr.mxu0 0.0
        %990 = vmatpush1.msra.mxu0 0.0
        %991 = vmatprep.subr.mxu0 0.0
        %992 = vmatpush1.msra.mxu0 0.0
        %993 = vmatprep.subr.mxu0 0.0
        %994 = vmatpush1.msra.mxu0 0.0
        %995 = vmatprep.subr.mxu0 0.0
        %996 = vmatpush1.msra.mxu0 0.0
        %997 = vmatprep.subr.mxu0 0.0
        %998 = vmatpush1.msra.mxu0 0.0
        %999 = vmatprep.subr.mxu0 0.0
        %1000 = vmatpush1.msra.mxu0 0.0
        %1001 = vmatprep.subr.mxu0 0.0
        %1002 = vmatpush1.msra.mxu0 0.0
        %1003 = vmatprep.subr.mxu0 0.0
        %1004 = vmatpush1.msra.mxu0 0.0
        %1005 = vmatprep.subr.mxu0 0.0
        %1006 = vmatpush1.msra.mxu0 0.0
        %1007 = vmatprep.subr.mxu0 0.0
        %1008 = vmatpush1.msra.mxu0 0.0
        %1009 = vmatprep.subr.mxu0 0.0
        %1010 = vmatpush1.msra.mxu0 0.0
        %1011 = vmatprep.subr.mxu0 0.0
        %1012 = vmatpush1.msra.mxu0 0.0
        %1013 = vmatprep.subr.mxu0 0.0
        %1014 = vmatpush1.msra.mxu0 0.0
        %1015 = vmatprep.subr.mxu0 0.0
        %1016 = vmatpush1.msra.mxu0 0.0
        %1017 = vmatprep.subr.mxu0 0.0
        %1018 = vmatpush1.msra.mxu0 0.0
        %1019 = vmatprep.subr.mxu0 0.0
        %1020 = vmatpush1.msra.mxu0 0.0
        %1021 = vmatprep.subr.mxu0 0.0
        %1022 = vmatpush1.msra.mxu0 0.0
        %1023 = vmatprep.subr.mxu0 0.0
        %1024 = vmatpush1.msra.mxu0 0.0
        %1025 = vmatprep.subr.mxu0 0.0
        %1026 = vmatpush1.msra.mxu0 0.0
        %1027 = vmatprep.subr.mxu0 0.0
        %1028 = vmatpush1.msra.mxu0 0.0
        %1029 = vmatprep.subr.mxu0 0.0
        %1030 = vmatpush1.msra.mxu0 0.0
        %1031 = vmatprep.subr.mxu0 0.0
        %1032 = vmatpush1.msra.mxu0 0.0
        %1033 = vmatprep.subr.mxu0 0.0
        %1034 = vmatpush1.msra.mxu0 0.0
        %1035 = vmatprep.subr.mxu0 0.0
        %1036 = vmatpush1.msra.mxu0 0.0
        %1037 = vmatprep.subr.mxu0 0.0
        %1038 = vmatpush1.msra.mxu0 0.0
        %1039 = vmatprep.subr.mxu0 0.0
        %1040 = vmatpush1.msra.mxu0 0.0
        %1041 = vmatprep.subr.mxu0 0.0
        %1042 = vmatpush1.msra.mxu0 0.0
        %1043 = vmatprep.subr.mxu0 0.0
        %1044 = vmatpush1.msra.mxu0 0.0
        %1045 = vmatprep.subr.mxu0 0.0
        %1046 = vmatpush1.msra.mxu0 0.0
        %1047 = vmatprep.subr.mxu0 0.0
        %1048 = vmatpush1.msra.mxu0 0.0
        %1049 = vmatprep.mubr.f32.mxu0 0.0
        %1050 = vmatmul.mubr.f32.gmra.mrb[0].mxu0 %v983
        %v1051 = vpop.f32.mrb[0].mxu0
        %v1052 = vadd.f32 0.0, %v1051
        %v1053 = vpop.f32.mrb[0].mxu0
        %1054 = vdwg.mxu0
        %1055 = vrot.lane.b32.xlu0 %v543, 104
        %v1056 = vpop.permute.xlu0 %1055
        %1057 = vrot.lane.b32.xlu0 %v543, 72
        %v1058 = vpop.permute.xlu0 %1057
        %v1059 = vsel %vm551, %v1056, 0
        %v1061 = vsel %vm551, %v1058, 0
        %1063 = vmatprep.subr.mxu0 0.0
        %1064 = vmatpush1.xpose.msra.mxu0 %v1061
        %1065 = vmatprep.subr.mxu0 0.0
        %1066 = vmatpush1.xpose.msra.mxu0 0.0
        %1067 = vmatprep.subr.mxu0 0.0
        %1068 = vmatpush1.xpose.msra.mxu0 0.0
        %1069 = vmatprep.subr.mxu0 0.0
        %1070 = vmatpush1.xpose.msra.mxu0 0.0
        %1071 = vmatprep.subr.mxu0 0.0
        %1072 = vmatpush1.xpose.msra.mxu0 0.0
        %1073 = vmatprep.subr.mxu0 0.0
        %1074 = vmatpush1.xpose.msra.mxu0 0.0
        %1075 = vmatprep.subr.mxu0 0.0
        %1076 = vmatpush1.xpose.msra.mxu0 0.0
        %1077 = vmatprep.subr.mxu0 0.0
        %1078 = vmatpush1.xpose.msra.mxu0 0.0
        %1079 = vmatprep.subr.mxu0 0.0
        %1080 = vmatpush1.xpose.msra.mxu0 0.0
        %1081 = vmatprep.subr.mxu0 0.0
        %1082 = vmatpush1.xpose.msra.mxu0 0.0
        %1083 = vmatprep.subr.mxu0 0.0
        %1084 = vmatpush1.xpose.msra.mxu0 0.0
        %1085 = vmatprep.subr.mxu0 0.0
        %1086 = vmatpush1.xpose.msra.mxu0 0.0
        %1087 = vmatprep.subr.mxu0 0.0
        %1088 = vmatpush1.xpose.msra.mxu0 0.0
        %1089 = vmatprep.subr.mxu0 0.0
        %1090 = vmatpush1.xpose.msra.mxu0 0.0
        %1091 = vmatprep.subr.mxu0 0.0
        %1092 = vmatpush1.xpose.msra.mxu0 0.0
        %1093 = vmatprep.subr.mxu0 0.0
        %1094 = vmatpush1.xpose.msra.mxu0 0.0
        %1095 = vmatprep.subr.mxu0 0.0
        %1096 = vmatpush1.xpose.msra.mxu0 0.0
        %1097 = vmatprep.subr.mxu0 0.0
        %1098 = vmatpush1.xpose.msra.mxu0 0.0
        %1099 = vmatprep.subr.mxu0 0.0
        %1100 = vmatpush1.xpose.msra.mxu0 0.0
        %1101 = vmatprep.subr.mxu0 0.0
        %1102 = vmatpush1.xpose.msra.mxu0 0.0
        %1103 = vmatprep.subr.mxu0 0.0
        %1104 = vmatpush1.xpose.msra.mxu0 0.0
        %1105 = vmatprep.subr.mxu0 0.0
        %1106 = vmatpush1.xpose.msra.mxu0 0.0
        %1107 = vmatprep.subr.mxu0 0.0
        %1108 = vmatpush1.xpose.msra.mxu0 0.0
        %1109 = vmatprep.subr.mxu0 0.0
        %1110 = vmatpush1.xpose.msra.mxu0 0.0
        %1111 = vmatprep.subr.mxu0 0.0
        %1112 = vmatpush1.xpose.msra.mxu0 0.0
        %1113 = vmatprep.subr.mxu0 0.0
        %1114 = vmatpush1.xpose.msra.mxu0 0.0
        %1115 = vmatprep.subr.mxu0 0.0
        %1116 = vmatpush1.xpose.msra.mxu0 0.0
        %1117 = vmatprep.subr.mxu0 0.0
        %1118 = vmatpush1.xpose.msra.mxu0 0.0
        %1119 = vmatprep.subr.mxu0 0.0
        %1120 = vmatpush1.xpose.msra.mxu0 0.0
        %1121 = vmatprep.subr.mxu0 0.0
        %1122 = vmatpush1.xpose.msra.mxu0 0.0
        %1123 = vmatprep.subr.mxu0 0.0
        %1124 = vmatpush1.xpose.msra.mxu0 0.0
        %1125 = vmatprep.subr.mxu0 0.0
        %1126 = vmatpush1.xpose.msra.mxu0 0.0
        %1127 = vmatprep.mubr.f32.mxu0 0.0
        %1128 = vmatmul.mubr.f32.gmra.mrb[0].mxu0 %v1059
        %v1129 = vpop.f32.mrb[0].mxu0
        %v1130 = vadd.f32 0.0, %v1129
        %v1131 = vpop.f32.mrb[0].mxu0
        %1132 = vdwg.mxu0
        %v1133 = vmul.f32 %v1130, 0.35355338
        %v1134 = vadd.f32 %v1133, %v631
        %v1135 = vsel %vm551, %v1134, -inf
        %1136 = vmax.xlane.f32.xlu0 %v1135
        %v1137 = vpop.xlane.xlu0 %1136
        %v1138 = vsub.f32 %v1134, %v1137
        %v1139 = vmul.f32 %v1138, 1.442695
        %v1140 = vpow.pop %v1139
        %v1141 = vsel %vm551, %v1140, 0.0
        %1142 = vadd.xlane.f32.xlu0 %v1141
        %v1143 = vpop.xlane.xlu0 %1142
        %v1144 = vrcp.pop %v1143
        %v1145 = vmul.f32 %v1140, %v1144
        %1146 = vrot.lane.b32.xlu0 %v543, 40
        %v1147 = vpop.permute.xlu0 %1146
        %v1150 = vsel %vm551, %v1145, 0
        %1152 = vmatprep.subr.mxu0 0.0
        %1153 = vmatpush1.msra.mxu0 %v1147
        %1154 = vmatprep.subr.mxu0 0.0
        %1155 = vmatpush1.msra.mxu0 0.0
        %1156 = vmatprep.subr.mxu0 0.0
        %1157 = vmatpush1.msra.mxu0 0.0
        %1158 = vmatprep.subr.mxu0 0.0
        %1159 = vmatpush1.msra.mxu0 0.0
        %1160 = vmatprep.subr.mxu0 0.0
        %1161 = vmatpush1.msra.mxu0 0.0
        %1162 = vmatprep.subr.mxu0 0.0
        %1163 = vmatpush1.msra.mxu0 0.0
        %1164 = vmatprep.subr.mxu0 0.0
        %1165 = vmatpush1.msra.mxu0 0.0
        %1166 = vmatprep.subr.mxu0 0.0
        %1167 = vmatpush1.msra.mxu0 0.0
        %1168 = vmatprep.subr.mxu0 0.0
        %1169 = vmatpush1.msra.mxu0 0.0
        %1170 = vmatprep.subr.mxu0 0.0
        %1171 = vmatpush1.msra.mxu0 0.0
        %1172 = vmatprep.subr.mxu0 0.0
        %1173 = vmatpush1.msra.mxu0 0.0
        %1174 = vmatprep.subr.mxu0 0.0
        %1175 = vmatpush1.msra.mxu0 0.0
        %1176 = vmatprep.subr.mxu0 0.0
        %1177 = vmatpush1.msra.mxu0 0.0
        %1178 = vmatprep.subr.mxu0 0.0
        %1179 = vmatpush1.msra.mxu0 0.0
        %1180 = vmatprep.subr.mxu0 0.0
        %1181 = vmatpush1.msra.mxu0 0.0
        %1182 = vmatprep.subr.mxu0 0.0
        %1183 = vmatpush1.msra.mxu0 0.0
        %1184 = vmatprep.subr.mxu0 0.0
        %1185 = vmatpush1.msra.mxu0 0.0
        %1186 = vmatprep.subr.mxu0 0.0
        %1187 = vmatpush1.msra.mxu0 0.0
        %1188 = vmatprep.subr.mxu0 0.0
        %1189 = vmatpush1.msra.mxu0 0.0
        %1190 = vmatprep.subr.mxu0 0.0
        %1191 = vmatpush1.msra.mxu0 0.0
        %1192 = vmatprep.subr.mxu0 0.0
        %1193 = vmatpush1.msra.mxu0 0.0
        %1194 = vmatprep.subr.mxu0 0.0
        %1195 = vmatpush1.msra.mxu0 0.0
        %1196 = vmatprep.subr.mxu0 0.0
        %1197 = vmatpush1.msra.mxu0 0.0
        %1198 = vmatprep.subr.mxu0 0.0
        %1199 = vmatpush1.msra.mxu0 0.0
        %1200 = vmatprep.subr.mxu0 0.0
        %1201 = vmatpush1.msra.mxu0 0.0
        %1202 = vmatprep.subr.mxu0 0.0
        %1203 = vmatpush1.msra.mxu0 0.0
        %1204 = vmatprep.subr.mxu0 0.0
        %1205 = vmatpush1.msra.mxu0 0.0
        %1206 = vmatprep.subr.mxu0 0.0
        %1207 = vmatpush1.msra.mxu0 0.0
        %1208 = vmatprep.subr.mxu0 0.0
        %1209 = vmatpush1.msra.mxu0 0.0
        %1210 = vmatprep.subr.mxu0 0.0
        %1211 = vmatpush1.msra.mxu0 0.0
        %1212 = vmatprep.subr.mxu0 0.0
        %1213 = vmatpush1.msra.mxu0 0.0
        %1214 = vmatprep.subr.mxu0 0.0
        %1215 = vmatpush1.msra.mxu0 0.0
        %1216 = vmatprep.mubr.f32.mxu0 0.0
        %1217 = vmatmul.mubr.f32.gmra.mrb[0].mxu0 %v1150
        %v1218 = vpop.f32.mrb[0].mxu0
        %v1219 = vadd.f32 0.0, %v1218
        %v1220 = vpop.f32.mrb[0].mxu0
        %1221 = vdwg.mxu0
        %1223 = vrot.lane.b32.xlu0 %v885, 8
        %v1224 = vpop.permute.xlu0 %1223
        %1227 = vrot.lane.b32.xlu0 %v1052, 16
        %v1228 = vpop.permute.xlu0 %1227
        %1231 = vrot.lane.b32.xlu0 %v1219, 24
        %v1232 = vpop.permute.xlu0 %1231
        %v1234 = vsel %vm551, %v718, %v1224
        %vm1235 = vcmask 130048
        %v1236 = vsel %vm1235, %v1234, %v1228
        %vm1237 = vcmask 195584
        %v1238 = vsel %vm1237, %v1236, %v1232
        %v1239 = vpack.c.bf16 %v1238, %v1238
        %v1240 = vld [vmem:[%s4] sm:$0xf]
        %v1241 = vld [vmem:[%s4 + $0x4] sm:$0xf]
        %v1242 = vld [vmem:[%s4 + $0x8] sm:$0xf]
        %v1243 = vld [vmem:[%s4 + $0xc] sm:$0xf]
        %v1244 = vld [vmem:[%s5] sm:$0x1]
        %v1246 = vlaneseq
        %v1247 = vshrl.u32 %v1246, 7
        %v1248 = vsub.s32 0, %v1247
        %v1249 = vrot.slane %v1244, %v1248
        %v1255 = vunpack.c.l.b16 %v1240
        %v1256 = vunpack.c.l.b16 %v1241
        %v1257 = vunpack.c.l.b16 %v1242
        %v1258 = vunpack.c.l.b16 %v1243
        %v1259 = vpack.c.b16 %v1256, %v1255
        %v1260 = vpack.c.b16 %v1258, %v1257
        %v1264 = vsel %vm504, %v1239, 0
        %1266 = vmatprep.subr.bf16.mxu0 0
        %1267 = vmatpush1.bf16.msra.mxu0 %v1259
        %1268 = vmatprep.subr.bf16.mxu0 0
        %1269 = vmatpush1.bf16.msra.mxu0 %v1260
        %1270 = vmatprep.subr.bf16.mxu0 0
        %1271 = vmatpush1.bf16.msra.mxu0 0
        %1272 = vmatprep.subr.bf16.mxu0 0
        %1273 = vmatpush1.bf16.msra.mxu0 0
        %1274 = vmatprep.subr.bf16.mxu0 0
        %1275 = vmatpush1.bf16.msra.mxu0 0
        %1276 = vmatprep.subr.bf16.mxu0 0
        %1277 = vmatpush1.bf16.msra.mxu0 0
        %1278 = vmatprep.subr.bf16.mxu0 0
        %1279 = vmatpush1.bf16.msra.mxu0 0
        %1280 = vmatprep.subr.bf16.mxu0 0
        %1281 = vmatpush1.bf16.msra.mxu0 0
        %1282 = vmatprep.subr.bf16.mxu0 0
        %1283 = vmatpush1.bf16.msra.mxu0 0
        %1284 = vmatprep.subr.bf16.mxu0 0
        %1285 = vmatpush1.bf16.msra.mxu0 0
        %1286 = vmatprep.subr.bf16.mxu0 0
        %1287 = vmatpush1.bf16.msra.mxu0 0
        %1288 = vmatprep.subr.bf16.mxu0 0
        %1289 = vmatpush1.bf16.msra.mxu0 0
        %1290 = vmatprep.subr.bf16.mxu0 0
        %1291 = vmatpush1.bf16.msra.mxu0 0
        %1292 = vmatprep.subr.bf16.mxu0 0
        %1293 = vmatpush1.bf16.msra.mxu0 0
        %1294 = vmatprep.subr.bf16.mxu0 0
        %1295 = vmatpush1.bf16.msra.mxu0 0
        %1296 = vmatprep.subr.bf16.mxu0 0
        %1297 = vmatpush1.bf16.msra.mxu0 0
        %1298 = vmatprep.mubr.bf16.mxu0 0
        %1299 = vmatmul.mubr.bf16.gmra.mrb[0].mxu0 %v1264
        %v1300 = vpop.f32.mrb[0].mxu0
        %v1301 = vadd.f32 %v1249, %v1300
        %v1302 = vpop.f32.mrb[0].mxu0
        %v1303 = vpop.f32.mrb[0].mxu0
        %v1304 = vpop.f32.mrb[0].mxu0
        %1305 = vdwg.mxu0
        %v1306 = vadd.f32 %v1301, %v478
        %v1307 = vld [vmem:[%s10] sm:$0x1]
        %v1308 = vld [vmem:[%s11] sm:$0x1]
        %v1309 = vsel %vm504, %v1306, 0.0
        %1310 = vadd.xlane.f32.xlu0 %v1309
        %v1311 = vpop.xlane.xlu0 %1310
        %v1312 = vrcp.pop 32.0
        %v1313 = vmul.f32 %v1311, %v1312
        %v1314 = vsub.f32 %v1306, %v1313
        %v1315 = vmul.f32 %v1314, %v1314
        %v1316 = vsel %vm504, %v1315, 0.0
        %1317 = vadd.xlane.f32.xlu0 %v1316
        %v1318 = vpop.xlane.xlu0 %1317
        %v1319 = vmul.f32 %v1318, %v1312
        %v1320 = vadd.f32 %v1319, 1e-05
        %v1321 = vrsqrt.pop %v1320
        %v1322 = vmul.f32 %v1314, %v1321
        %v1324 = vlaneseq
        %v1325 = vshrl.u32 %v1324, 7
        %v1326 = vsub.s32 0, %v1325
        %v1327 = vrot.slane %v1307, %v1326
        %v1329 = vmul.f32 %v1322, %v1327
        %v1331 = vlaneseq
        %v1332 = vshrl.u32 %v1331, 7
        %v1333 = vsub.s32 0, %v1332
        %v1334 = vrot.slane %v1308, %v1333
        %v1336 = vadd.f32 %v1329, %v1334
        %v1337 = vpack.c.bf16 %v1336, %v1336
        %v1338 = vld [vmem:[%s6] sm:$0xf]
        %v1339 = vld [vmem:[%s6 + $0x4] sm:$0xf]
        %v1340 = vld [vmem:[%s6 + $0x8] sm:$0xf]
        %v1341 = vld [vmem:[%s6 + $0xc] sm:$0xf]
        %v1342 = vld [vmem:[%s7] sm:$0x1]
        %v1344 = vlaneseq
        %v1345 = vshrl.u32 %v1344, 7
        %v1346 = vsub.s32 0, %v1345
        %v1347 = vrot.slane %v1342, %v1346
        %v1353 = vunpack.c.l.b16 %v1338
        %v1354 = vunpack.c.l.b16 %v1339
        %v1355 = vunpack.c.l.b16 %v1340
        %v1356 = vunpack.c.l.b16 %v1341
        %v1357 = vpack.c.b16 %v1354, %v1353
        %v1358 = vpack.c.b16 %v1356, %v1355
        %v1362 = vsel %vm504, %v1337, 0
        %1364 = vmatprep.subr.bf16.mxu0 0
        %1365 = vmatpush1.bf16.msra.mxu0 %v1357
        %1366 = vmatprep.subr.bf16.mxu0 0
        %1367 = vmatpush1.bf16.msra.mxu0 %v1358
        %1368 = vmatprep.subr.bf16.mxu0 0
        %1369 = vmatpush1.bf16.msra.mxu0 0
        %1370 = vmatprep.subr.bf16.mxu0 0
        %1371 = vmatpush1.bf16.msra.mxu0 0
        %1372 = vmatprep.subr.bf16.mxu0 0
        %1373 = vmatpush1.bf16.msra.mxu0 0
        %1374 = vmatprep.subr.bf16.mxu0 0
        %1375 = vmatpush1.bf16.msra.mxu0 0
        %1376 = vmatprep.subr.bf16.mxu0 0
        %1377 = vmatpush1.bf16.msra.mxu0 0
        %1378 = vmatprep.subr.bf16.mxu0 0
        %1379 = vmatpush1.bf16.msra.mxu0 0
        %1380 = vmatprep.subr.bf16.mxu0 0
        %1381 = vmatpush1.bf16.msra.mxu0 0
        %1382 = vmatprep.subr.bf16.mxu0 0
        %1383 = vmatpush1.bf16.msra.mxu0 0
        %1384 = vmatprep.subr.bf16.mxu0 0
        %1385 = vmatpush1.bf16.msra.mxu0 0
        %1386 = vmatprep.subr.bf16.mxu0 0
        %1387 = vmatpush1.bf16.msra.mxu0 0
        %1388 = vmatprep.subr.bf16.mxu0 0
        %1389 = vmatpush1.bf16.msra.mxu0 0
        %1390 = vmatprep.subr.bf16.mxu0 0
        %1391 = vmatpush1.bf16.msra.mxu0 0
        %1392 = vmatprep.subr.bf16.mxu0 0
        %1393 = vmatpush1.bf16.msra.mxu0 0
        %1394 = vmatprep.subr.bf16.mxu0 0
        %1395 = vmatpush1.bf16.msra.mxu0 0
        %1396 = vmatprep.mubr.bf16.mxu0 0
        %1397 = vmatmul.mubr.bf16.gmra.mrb[0].mxu0 %v1362
        %v1398 = vpop.f32.mrb[0].mxu0
        %v1399 = vadd.f32 %v1347, %v1398
        %v1400 = vpop.f32.mrb[0].mxu0
        %v1401 = vpop.f32.mrb[0].mxu0
        %v1402 = vpop.f32.mrb[0].mxu0
        %1403 = vdwg.mxu0
        %v1404 = vmul.f32 %v1399, 0.5
        %v1405 = vmul.f32 %v1399, 0.044715
        %v1406 = vmul.f32 %v1405, %v1399
        %v1407 = vmul.f32 %v1406, %v1399
        %v1408 = vadd.f32 %v1399, %v1407
        %v1409 = vmul.f32 %v1408, 0.7978846
        %v1410 = vtanh.pop %v1409
        %v1411 = vadd.f32 %v1410, 1.0
        %v1412 = vmul.f32 %v1404, %v1411
        %v1413 = vpack.c.bf16 %v1412, %v1412
        %v1414 = vld [vmem:[%s8] sm:$0xf]
        %v1415 = vld [vmem:[%s8 + $0x4] sm:$0xf]
        %v1416 = vld [vmem:[%s8 + $0x8] sm:$0xf]
        %v1417 = vld [vmem:[%s8 + $0xc] sm:$0xf]
        %v1418 = vld [vmem:[%s8 + $0x10] sm:$0xf]
        %v1419 = vld [vmem:[%s8 + $0x14] sm:$0xf]
        %v1420 = vld [vmem:[%s8 + $0x18] sm:$0xf]
        %v1421 = vld [vmem:[%s8 + $0x1c] sm:$0xf]
        %v1422 = vld [vmem:[%s9] sm:$0x1]
        %v1424 = vlaneseq
        %v1425 = vshrl.u32 %v1424, 7
        %v1426 = vsub.s32 0, %v1425
        %v1427 = vrot.slane %v1422, %v1426
        %v1437 = vunpack.c.l.b16 %v1414
        %v1438 = vunpack.c.l.b16 %v1415
        %v1439 = vunpack.c.l.b16 %v1416
        %v1440 = vunpack.c.l.b16 %v1417
        %v1441 = vunpack.c.l.b16 %v1418
        %v1442 = vunpack.c.l.b16 %v1419
        %v1443 = vunpack.c.l.b16 %v1420
        %v1444 = vunpack.c.l.b16 %v1421
        %v1445 = vpack.c.b16 %v1438, %v1437
        %v1446 = vpack.c.b16 %v1440, %v1439
        %v1447 = vpack.c.b16 %v1442, %v1441
        %v1448 = vpack.c.b16 %v1444, %v1443
        %vm1453 = vcmask 523264
        %v1455 = vsel %vm1453, %v1413, 0
        %1457 = vmatprep.subr.bf16.mxu0 0
        %1458 = vmatpush1.bf16.msra.mxu0 %v1445
        %1459 = vmatprep.subr.bf16.mxu0 0
        %1460 = vmatpush1.bf16.msra.mxu0 %v1446
        %1461 = vmatprep.subr.bf16.mxu0 0
        %1462 = vmatpush1.bf16.msra.mxu0 %v1447
        %1463 = vmatprep.subr.bf16.mxu0 0
        %1464 = vmatpush1.bf16.msra.mxu0 %v1448
        %1465 = vmatprep.subr.bf16.mxu0 0
        %1466 = vmatpush1.bf16.msra.mxu0 0
        %1467 = vmatprep.subr.bf16.mxu0 0
        %1468 = vmatpush1.bf16.msra.mxu0 0
        %1469 = vmatprep.subr.bf16.mxu0 0
        %1470 = vmatpush1.bf16.msra.mxu0 0
        %1471 = vmatprep.subr.bf16.mxu0 0
        %1472 = vmatpush1.bf16.msra.mxu0 0
        %1473 = vmatprep.subr.bf16.mxu0 0
        %1474 = vmatpush1.bf16.msra.mxu0 0
        %1475 = vmatprep.subr.bf16.mxu0 0
        %1476 = vmatpush1.bf16.msra.mxu0 0
        %1477 = vmatprep.subr.bf16.mxu0 0
        %1478 = vmatpush1.bf16.msra.mxu0 0
        %1479 = vmatprep.subr.bf16.mxu0 0
        %1480 = vmatpush1.bf16.msra.mxu0 0
        %1481 = vmatprep.subr.bf16.mxu0 0
        %1482 = vmatpush1.bf16.msra.mxu0 0
        %1483 = vmatprep.subr.bf16.mxu0 0
        %1484 = vmatpush1.bf16.msra.mxu0 0
        %1485 = vmatprep.subr.bf16.mxu0 0
        %1486 = vmatpush1.bf16.msra.mxu0 0
        %1487 = vmatprep.subr.bf16.mxu0 0
        %1488 = vmatpush1.bf16.msra.mxu0 0
        %1489 = vmatprep.mubr.bf16.mxu0 0
        %1490 = vmatmul.mubr.bf16.gmra.mrb[0].mxu0 %v1455
        %v1491 = vpop.f32.mrb[0].mxu0
        %v1492 = vadd.f32 %v1427, %v1491
        %v1493 = vpop.f32.mrb[0].mxu0
        %v1494 = vpop.f32.mrb[0].mxu0
        %v1495 = vpop.f32.mrb[0].mxu0
        %1496 = vdwg.mxu0
        %v1497 = vadd.f32 %v1492, %v1336
        %v1498 = vld [vmem:[%s12] sm:$0x1]
        %v1499 = vld [vmem:[%s13] sm:$0x1]
        %v1500 = vsel %vm504, %v1497, 0.0
        %1501 = vadd.xlane.f32.xlu0 %v1500
        %v1502 = vpop.xlane.xlu0 %1501
        %v1503 = vmul.f32 %v1502, %v1312
        %v1504 = vsub.f32 %v1497, %v1503
        %v1505 = vmul.f32 %v1504, %v1504
        %v1506 = vsel %vm504, %v1505, 0.0
        %1507 = vadd.xlane.f32.xlu0 %v1506
        %v1508 = vpop.xlane.xlu0 %1507
        %v1509 = vmul.f32 %v1508, %v1312
        %v1510 = vadd.f32 %v1509, 1e-05
        %v1511 = vrsqrt.pop %v1510
        %v1512 = vmul.f32 %v1504, %v1511
        %v1514 = vlaneseq
        %v1515 = vshrl.u32 %v1514, 7
        %v1516 = vsub.s32 0, %v1515
        %v1517 = vrot.slane %v1498, %v1516
        %v1519 = vmul.f32 %v1512, %v1517
        %v1521 = vlaneseq
        %v1522 = vshrl.u32 %v1521, 7
        %v1523 = vsub.s32 0, %v1522
        %v1524 = vrot.slane %v1499, %v1523
        %v1526 = vadd.f32 %v1519, %v1524
        %v1527 = vpack.c.bf16 %v1526, %v1526
        %s1528 = scalar_lea.vmem %s2, 16
        %v1529 = vld [vmem:[%s1528] sm:$0xf]
        %v1530 = vld [vmem:[%s1528 + $0x4] sm:$0xf]
        %v1531 = vld [vmem:[%s1528 + $0x8] sm:$0xf]
        %v1532 = vld [vmem:[%s1528 + $0xc] sm:$0xf]
        %s1533 = scalar_lea.vmem %s3, 1
        %v1534 = vld [vmem:[%s1533] sm:$0x1]
        %v1536 = vlaneseq
        %v1537 = vshrl.u32 %v1536, 7
        %v1538 = vsub.s32 0, %v1537
        %v1539 = vrot.slane %v1534, %v1538
        %v1545 = vunpack.c.l.b16 %v1529
        %v1546 = vunpack.c.l.b16 %v1530
        %v1547 = vunpack.c.l.b16 %v1531
        %v1548 = vunpack.c.l.b16 %v1532
        %v1549 = vpack.c.b16 %v1546, %v1545
        %v1550 = vpack.c.b16 %v1548, %v1547
        %v1554 = vsel %vm504, %v1527, 0
        %1556 = vmatprep.subr.bf16.mxu0 0
        %1557 = vmatpush1.bf16.msra.mxu0 %v1549
        %1558 = vmatprep.subr.bf16.mxu0 0
        %1559 = vmatpush1.bf16.msra.mxu0 %v1550
        %1560 = vmatprep.subr.bf16.mxu0 0
        %1561 = vmatpush1.bf16.msra.mxu0 0
        %1562 = vmatprep.subr.bf16.mxu0 0
        %1563 = vmatpush1.bf16.msra.mxu0 0
        %1564 = vmatprep.subr.bf16.mxu0 0
        %1565 = vmatpush1.bf16.msra.mxu0 0
        %1566 = vmatprep.subr.bf16.mxu0 0
        %1567 = vmatpush1.bf16.msra.mxu0 0
        %1568 = vmatprep.subr.bf16.mxu0 0
        %1569 = vmatpush1.bf16.msra.mxu0 0
        %1570 = vmatprep.subr.bf16.mxu0 0
        %1571 = vmatpush1.bf16.msra.mxu0 0
        %1572 = vmatprep.subr.bf16.mxu0 0
        %1573 = vmatpush1.bf16.msra.mxu0 0
        %1574 = vmatprep.subr.bf16.mxu0 0
        %1575 = vmatpush1.bf16.msra.mxu0 0
        %1576 = vmatprep.subr.bf16.mxu0 0
        %1577 = vmatpush1.bf16.msra.mxu0 0
        %1578 = vmatprep.subr.bf16.mxu0 0
        %1579 = vmatpush1.bf16.msra.mxu0 0
        %1580 = vmatprep.subr.bf16.mxu0 0
        %1581 = vmatpush1.bf16.msra.mxu0 0
        %1582 = vmatprep.subr.bf16.mxu0 0
        %1583 = vmatpush1.bf16.msra.mxu0 0
        %1584 = vmatprep.subr.bf16.mxu0 0
        %1585 = vmatpush1.bf16.msra.mxu0 0
        %1586 = vmatprep.subr.bf16.mxu0 0
        %1587 = vmatpush1.bf16.msra.mxu0 0
        %1588 = vmatprep.mubr.bf16.mxu0 0
        %1589 = vmatmul.mubr.bf16.gmra.mrb[0].mxu0 %v1554
        %v1590 = vpop.f32.mrb[0].mxu0
        %v1591 = vadd.f32 %v1539, %v1590
        %v1592 = vpop.f32.mrb[0].mxu0
        %v1593 = vpop.f32.mrb[0].mxu0
        %v1594 = vpop.f32.mrb[0].mxu0
        %1595 = vdwg.mxu0
        %1597 = vrot.lane.b32.xlu0 %v1591, 96
        %v1598 = vpop.permute.xlu0 %1597
        %v1599 = vsel %vm551, %v1591, 0
        %v1601 = vsel %vm551, %v1598, 0
        %1603 = vmatprep.subr.mxu0 0.0
        %1604 = vmatpush1.xpose.msra.mxu0 %v1601
        %1605 = vmatprep.subr.mxu0 0.0
        %1606 = vmatpush1.xpose.msra.mxu0 0.0
        %1607 = vmatprep.subr.mxu0 0.0
        %1608 = vmatpush1.xpose.msra.mxu0 0.0
        %1609 = vmatprep.subr.mxu0 0.0
        %1610 = vmatpush1.xpose.msra.mxu0 0.0
        %1611 = vmatprep.subr.mxu0 0.0
        %1612 = vmatpush1.xpose.msra.mxu0 0.0
        %1613 = vmatprep.subr.mxu0 0.0
        %1614 = vmatpush1.xpose.msra.mxu0 0.0
        %1615 = vmatprep.subr.mxu0 0.0
        %1616 = vmatpush1.xpose.msra.mxu0 0.0
        %1617 = vmatprep.subr.mxu0 0.0
        %1618 = vmatpush1.xpose.msra.mxu0 0.0
        %1619 = vmatprep.subr.mxu0 0.0
        %1620 = vmatpush1.xpose.msra.mxu0 0.0
        %1621 = vmatprep.subr.mxu0 0.0
        %1622 = vmatpush1.xpose.msra.mxu0 0.0
        %1623 = vmatprep.subr.mxu0 0.0
        %1624 = vmatpush1.xpose.msra.mxu0 0.0
        %1625 = vmatprep.subr.mxu0 0.0
        %1626 = vmatpush1.xpose.msra.mxu0 0.0
        %1627 = vmatprep.subr.mxu0 0.0
        %1628 = vmatpush1.xpose.msra.mxu0 0.0
        %1629 = vmatprep.subr.mxu0 0.0
        %1630 = vmatpush1.xpose.msra.mxu0 0.0
        %1631 = vmatprep.subr.mxu0 0.0
        %1632 = vmatpush1.xpose.msra.mxu0 0.0
        %1633 = vmatprep.subr.mxu0 0.0
        %1634 = vmatpush1.xpose.msra.mxu0 0.0
        %1635 = vmatprep.subr.mxu0 0.0
        %1636 = vmatpush1.xpose.msra.mxu0 0.0
        %1637 = vmatprep.subr.mxu0 0.0
        %1638 = vmatpush1.xpose.msra.mxu0 0.0
        %1639 = vmatprep.subr.mxu0 0.0
        %1640 = vmatpush1.xpose.msra.mxu0 0.0
        %1641 = vmatprep.subr.mxu0 0.0
        %1642 = vmatpush1.xpose.msra.mxu0 0.0
        %1643 = vmatprep.subr.mxu0 0.0
        %1644 = vmatpush1.xpose.msra.mxu0 0.0
        %1645 = vmatprep.subr.mxu0 0.0
        %1646 = vmatpush1.xpose.msra.mxu0 0.0
        %1647 = vmatprep.subr.mxu0 0.0
        %1648 = vmatpush1.xpose.msra.mxu0 0.0
        %1649 = vmatprep.subr.mxu0 0.0
        %1650 = vmatpush1.xpose.msra.mxu0 0.0
        %1651 = vmatprep.subr.mxu0 0.0
        %1652 = vmatpush1.xpose.msra.mxu0 0.0
        %1653 = vmatprep.subr.mxu0 0.0
        %1654 = vmatpush1.xpose.msra.mxu0 0.0
        %1655 = vmatprep.subr.mxu0 0.0
        %1656 = vmatpush1.xpose.msra.mxu0 0.0
        %1657 = vmatprep.subr.mxu0 0.0
        %1658 = vmatpush1.xpose.msra.mxu0 0.0
        %1659 = vmatprep.subr.mxu0 0.0
        %1660 = vmatpush1.xpose.msra.mxu0 0.0
        %1661 = vmatprep.subr.mxu0 0.0
        %1662 = vmatpush1.xpose.msra.mxu0 0.0
        %1663 = vmatprep.subr.mxu0 0.0
        %1664 = vmatpush1.xpose.msra.mxu0 0.0
        %1665 = vmatprep.subr.mxu0 0.0
        %1666 = vmatpush1.xpose.msra.mxu0 0.0
        %1667 = vmatprep.mubr.f32.mxu0 0.0
        %1668 = vmatmul.mubr.f32.gmra.mrb[0].mxu0 %v1599
        %v1669 = vpop.f32.mrb[0].mxu0
        %v1670 = vadd.f32 0.0, %v1669
        %v1671 = vpop.f32.mrb[0].mxu0
        %1672 = vdwg.mxu0
        %v1673 = vmul.f32 %v1670, 0.35355338
        %v1674 = vadd.f32 %v1673, %v631
        %v1675 = vsel %vm551, %v1674, -inf
        %1676 = vmax.xlane.f32.xlu0 %v1675
        %v1677 = vpop.xlane.xlu0 %1676
        %v1678 = vsub.f32 %v1674, %v1677
        %v1679 = vmul.f32 %v1678, 1.442695
        %v1680 = vpow.pop %v1679
        %v1681 = vsel %vm551, %v1680, 0.0
        %1682 = vadd.xlane.f32.xlu0 %v1681
        %v1683 = vpop.xlane.xlu0 %1682
        %v1684 = vrcp.pop %v1683
        %v1685 = vmul.f32 %v1680, %v1684
        %1686 = vrot.lane.b32.xlu0 %v1591, 64
        %v1687 = vpop.permute.xlu0 %1686
        %v1690 = vsel %vm551, %v1685, 0
        %1692 = vmatprep.subr.mxu0 0.0
        %1693 = vmatpush1.msra.mxu0 %v1687
        %1694 = vmatprep.subr.mxu0 0.0
        %1695 = vmatpush1.msra.mxu0 0.0
        %1696 = vmatprep.subr.mxu0 0.0
        %1697 = vmatpush1.msra.mxu0 0.0
        %1698 = vmatprep.subr.mxu0 0.0
        %1699 = vmatpush1.msra.mxu0 0.0
        %1700 = vmatprep.subr.mxu0 0.0
        %1701 = vmatpush1.msra.mxu0 0.0
        %1702 = vmatprep.subr.mxu0 0.0
        %1703 = vmatpush1.msra.mxu0 0.0
        %1704 = vmatprep.subr.mxu0 0.0
        %1705 = vmatpush1.msra.mxu0 0.0
        %1706 = vmatprep.subr.mxu0 0.0
        %1707 = vmatpush1.msra.mxu0 0.0
        %1708 = vmatprep.subr.mxu0 0.0
        %1709 = vmatpush1.msra.mxu0 0.0
        %1710 = vmatprep.subr.mxu0 0.0
        %1711 = vmatpush1.msra.mxu0 0.0
        %1712 = vmatprep.subr.mxu0 0.0
        %1713 = vmatpush1.msra.mxu0 0.0
        %1714 = vmatprep.subr.mxu0 0.0
        %1715 = vmatpush1.msra.mxu0 0.0
        %1716 = vmatprep.subr.mxu0 0.0
        %1717 = vmatpush1.msra.mxu0 0.0
        %1718 = vmatprep.subr.mxu0 0.0
        %1719 = vmatpush1.msra.mxu0 0.0
        %1720 = vmatprep.subr.mxu0 0.0
        %1721 = vmatpush1.msra.mxu0 0.0
        %1722 = vmatprep.subr.mxu0 0.0
        %1723 = vmatpush1.msra.mxu0 0.0
        %1724 = vmatprep.subr.mxu0 0.0
        %1725 = vmatpush1.msra.mxu0 0.0
        %1726 = vmatprep.subr.mxu0 0.0
        %1727 = vmatpush1.msra.mxu0 0.0
        %1728 = vmatprep.subr.mxu0 0.0
        %1729 = vmatpush1.msra.mxu0 0.0
        %1730 = vmatprep.subr.mxu0 0.0
        %1731 = vmatpush1.msra.mxu0 0.0
        %1732 = vmatprep.subr.mxu0 0.0
        %1733 = vmatpush1.msra.mxu0 0.0
        %1734 = vmatprep.subr.mxu0 0.0
        %1735 = vmatpush1.msra.mxu0 0.0
        %1736 = vmatprep.subr.mxu0 0.0
        %1737 = vmatpush1.msra.mxu0 0.0
        %1738 = vmatprep.subr.mxu0 0.0
        %1739 = vmatpush1.msra.mxu0 0.0
        %1740 = vmatprep.subr.mxu0 0.0
        %1741 = vmatpush1.msra.mxu0 0.0
        %1742 = vmatprep.subr.mxu0 0.0
        %1743 = vmatpush1.msra.mxu0 0.0
        %1744 = vmatprep.subr.mxu0 0.0
        %1745 = vmatpush1.msra.mxu0 0.0
        %1746 = vmatprep.subr.mxu0 0.0
        %1747 = vmatpush1.msra.mxu0 0.0
        %1748 = vmatprep.subr.mxu0 0.0
        %1749 = vmatpush1.msra.mxu0 0.0
        %1750 = vmatprep.subr.mxu0 0.0
        %1751 = vmatpush1.msra.mxu0 0.0
        %1752 = vmatprep.subr.mxu0 0.0
        %1753 = vmatpush1.msra.mxu0 0.0
        %1754 = vmatprep.subr.mxu0 0.0
        %1755 = vmatpush1.msra.mxu0 0.0
        %1756 = vmatprep.mubr.f32.mxu0 0.0
        %1757 = vmatmul.mubr.f32.gmra.mrb[0].mxu0 %v1690
        %v1758 = vpop.f32.mrb[0].mxu0
        %v1759 = vadd.f32 0.0, %v1758
        %v1760 = vpop.f32.mrb[0].mxu0
        %1761 = vdwg.mxu0
        %1762 = vrot.lane.b32.xlu0 %v1591, 120
        %v1763 = vpop.permute.xlu0 %1762
        %1764 = vrot.lane.b32.xlu0 %v1591, 88
        %v1765 = vpop.permute.xlu0 %1764
        %v1766 = vsel %vm551, %v1763, 0
        %v1768 = vsel %vm551, %v1765, 0
        %1770 = vmatprep.subr.mxu0 0.0
        %1771 = vmatpush1.xpose.msra.mxu0 %v1768
        %1772 = vmatprep.subr.mxu0 0.0
        %1773 = vmatpush1.xpose.msra.mxu0 0.0
        %1774 = vmatprep.subr.mxu0 0.0
        %1775 = vmatpush1.xpose.msra.mxu0 0.0
        %1776 = vmatprep.subr.mxu0 0.0
        %1777 = vmatpush1.xpose.msra.mxu0 0.0
        %1778 = vmatprep.subr.mxu0 0.0
        %1779 = vmatpush1.xpose.msra.mxu0 0.0
        %1780 = vmatprep.subr.mxu0 0.0
        %1781 = vmatpush1.xpose.msra.mxu0 0.0
        %1782 = vmatprep.subr.mxu0 0.0
        %1783 = vmatpush1.xpose.msra.mxu0 0.0
        %1784 = vmatprep.subr.mxu0 0.0
        %1785 = vmatpush1.xpose.msra.mxu0 0.0
        %1786 = vmatprep.subr.mxu0 0.0
        %1787 = vmatpush1.xpose.msra.mxu0 0.0
        %1788 = vmatprep.subr.mxu0 0.0
        %1789 = vmatpush1.xpose.msra.mxu0 0.0
        %1790 = vmatprep.subr.mxu0 0.0
        %1791 = vmatpush1.xpose.msra.mxu0 0.0
        %1792 = vmatprep.subr.mxu0 0.0
        %1793 = vmatpush1.xpose.msra.mxu0 0.0
        %1794 = vmatprep.subr.mxu0 0.0
        %1795 = vmatpush1.xpose.msra.mxu0 0.0
        %1796 = vmatprep.subr.mxu0 0.0
        %1797 = vmatpush1.xpose.msra.mxu0 0.0
        %1798 = vmatprep.subr.mxu0 0.0
        %1799 = vmatpush1.xpose.msra.mxu0 0.0
        %1800 = vmatprep.subr.mxu0 0.0
        %1801 = vmatpush1.xpose.msra.mxu0 0.0
        %1802 = vmatprep.subr.mxu0 0.0
        %1803 = vmatpush1.xpose.msra.mxu0 0.0
        %1804 = vmatprep.subr.mxu0 0.0
        %1805 = vmatpush1.xpose.msra.mxu0 0.0
        %1806 = vmatprep.subr.mxu0 0.0
        %1807 = vmatpush1.xpose.msra.mxu0 0.0
        %1808 = vmatprep.subr.mxu0 0.0
        %1809 = vmatpush1.xpose.msra.mxu0 0.0
        %1810 = vmatprep.subr.mxu0 0.0
        %1811 = vmatpush1.xpose.msra.mxu0 0.0
        %1812 = vmatprep.subr.mxu0 0.0
        %1813 = vmatpush1.xpose.msra.mxu0 0.0
        %1814 = vmatprep.subr.mxu0 0.0
        %1815 = vmatpush1.xpose.msra.mxu0 0.0
        %1816 = vmatprep.subr.mxu0 0.0
        %1817 = vmatpush1.xpose.msra.mxu0 0.0
        %1818 = vmatprep.subr.mxu0 0.0
        %1819 = vmatpush1.xpose.msra.mxu0 0.0
        %1820 = vmatprep.subr.mxu0 0.0
        %1821 = vmatpush1.xpose.msra.mxu0 0.0
        %1822 = vmatprep.subr.mxu0 0.0
        %1823 = vmatpush1.xpose.msra.mxu0 0.0
        %1824 = vmatprep.subr.mxu0 0.0
        %1825 = vmatpush1.xpose.msra.mxu0 0.0
        %1826 = vmatprep.subr.mxu0 0.0
        %1827 = vmatpush1.xpose.msra.mxu0 0.0
        %1828 = vmatprep.subr.mxu0 0.0
        %1829 = vmatpush1.xpose.msra.mxu0 0.0
        %1830 = vmatprep.subr.mxu0 0.0
        %1831 = vmatpush1.xpose.msra.mxu0 0.0
        %1832 = vmatprep.subr.mxu0 0.0
        %1833 = vmatpush1.xpose.msra.mxu0 0.0
        %1834 = vmatprep.mubr.f32.mxu0 0.0
        %1835 = vmatmul.mubr.f32.gmra.mrb[0].mxu0 %v1766
        %v1836 = vpop.f32.mrb[0].mxu0
        %v1837 = vadd.f32 0.0, %v1836
        %v1838 = vpop.f32.mrb[0].mxu0
        %1839 = vdwg.mxu0
        %v1840 = vmul.f32 %v1837, 0.35355338
        %v1841 = vadd.f32 %v1840, %v631
        %v1842 = vsel %vm551, %v1841, -inf
        %1843 = vmax.xlane.f32.xlu0 %v1842
        %v1844 = vpop.xlane.xlu0 %1843
        %v1845 = vsub.f32 %v1841, %v1844
        %v1846 = vmul.f32 %v1845, 1.442695
        %v1847 = vpow.pop %v1846
        %v1848 = vsel %vm551, %v1847, 0.0
        %1849 = vadd.xlane.f32.xlu0 %v1848
        %v1850 = vpop.xlane.xlu0 %1849
        %v1851 = vrcp.pop %v1850
        %v1852 = vmul.f32 %v1847, %v1851
        %1853 = vrot.lane.b32.xlu0 %v1591, 56
        %v1854 = vpop.permute.xlu0 %1853
        %v1857 = vsel %vm551, %v1852, 0
        %1859 = vmatprep.subr.mxu0 0.0
        %1860 = vmatpush1.msra.mxu0 %v1854
        %1861 = vmatprep.subr.mxu0 0.0
        %1862 = vmatpush1.msra.mxu0 0.0
        %1863 = vmatprep.subr.mxu0 0.0
        %1864 = vmatpush1.msra.mxu0 0.0
        %1865 = vmatprep.subr.mxu0 0.0
        %1866 = vmatpush1.msra.mxu0 0.0
        %1867 = vmatprep.subr.mxu0 0.0
        %1868 = vmatpush1.msra.mxu0 0.0
        %1869 = vmatprep.subr.mxu0 0.0
        %1870 = vmatpush1.msra.mxu0 0.0
        %1871 = vmatprep.subr.mxu0 0.0
        %1872 = vmatpush1.msra.mxu0 0.0
        %1873 = vmatprep.subr.mxu0 0.0
        %1874 = vmatpush1.msra.mxu0 0.0
        %1875 = vmatprep.subr.mxu0 0.0
        %1876 = vmatpush1.msra.mxu0 0.0
        %1877 = vmatprep.subr.mxu0 0.0
        %1878 = vmatpush1.msra.mxu0 0.0
        %1879 = vmatprep.subr.mxu0 0.0
        %1880 = vmatpush1.msra.mxu0 0.0
        %1881 = vmatprep.subr.mxu0 0.0
        %1882 = vmatpush1.msra.mxu0 0.0
        %1883 = vmatprep.subr.mxu0 0.0
        %1884 = vmatpush1.msra.mxu0 0.0
        %1885 = vmatprep.subr.mxu0 0.0
        %1886 = vmatpush1.msra.mxu0 0.0
        %1887 = vmatprep.subr.mxu0 0.0
        %1888 = vmatpush1.msra.mxu0 0.0
        %1889 = vmatprep.subr.mxu0 0.0
        %1890 = vmatpush1.msra.mxu0 0.0
        %1891 = vmatprep.subr.mxu0 0.0
        %1892 = vmatpush1.msra.mxu0 0.0
        %1893 = vmatprep.subr.mxu0 0.0
        %1894 = vmatpush1.msra.mxu0 0.0
        %1895 = vmatprep.subr.mxu0 0.0
        %1896 = vmatpush1.msra.mxu0 0.0
        %1897 = vmatprep.subr.mxu0 0.0
        %1898 = vmatpush1.msra.mxu0 0.0
        %1899 = vmatprep.subr.mxu0 0.0
        %1900 = vmatpush1.msra.mxu0 0.0
        %1901 = vmatprep.subr.mxu0 0.0
        %1902 = vmatpush1.msra.mxu0 0.0
        %1903 = vmatprep.subr.mxu0 0.0
        %1904 = vmatpush1.msra.mxu0 0.0
        %1905 = vmatprep.subr.mxu0 0.0
        %1906 = vmatpush1.msra.mxu0 0.0
        %1907 = vmatprep.subr.mxu0 0.0
        %1908 = vmatpush1.msra.mxu0 0.0
        %1909 = vmatprep.subr.mxu0 0.0
        %1910 = vmatpush1.msra.mxu0 0.0
        %1911 = vmatprep.subr.mxu0 0.0
        %1912 = vmatpush1.msra.mxu0 0.0
        %1913 = vmatprep.subr.mxu0 0.0
        %1914 = vmatpush1.msra.mxu0 0.0
        %1915 = vmatprep.subr.mxu0 0.0
        %1916 = vmatpush1.msra.mxu0 0.0
        %1917 = vmatprep.subr.mxu0 0.0
        %1918 = vmatpush1.msra.mxu0 0.0
        %1919 = vmatprep.subr.mxu0 0.0
        %1920 = vmatpush1.msra.mxu0 0.0
        %1921 = vmatprep.subr.mxu0 0.0
        %1922 = vmatpush1.msra.mxu0 0.0
        %1923 = vmatprep.mubr.f32.mxu0 0.0
        %1924 = vmatmul.mubr.f32.gmra.mrb[0].mxu0 %v1857
        %v1925 = vpop.f32.mrb[0].mxu0
        %v1926 = vadd.f32 0.0, %v1925
        %v1927 = vpop.f32.mrb[0].mxu0
        %1928 = vdwg.mxu0
        %1929 = vrot.lane.b32.xlu0 %v1591, 112
        %v1930 = vpop.permute.xlu0 %1929
        %1931 = vrot.lane.b32.xlu0 %v1591, 80
        %v1932 = vpop.permute.xlu0 %1931
        %v1933 = vsel %vm551, %v1930, 0
        %v1935 = vsel %vm551, %v1932, 0
        %1937 = vmatprep.subr.mxu0 0.0
        %1938 = vmatpush1.xpose.msra.mxu0 %v1935
        %1939 = vmatprep.subr.mxu0 0.0
        %1940 = vmatpush1.xpose.msra.mxu0 0.0
        %1941 = vmatprep.subr.mxu0 0.0
        %1942 = vmatpush1.xpose.msra.mxu0 0.0
        %1943 = vmatprep.subr.mxu0 0.0
        %1944 = vmatpush1.xpose.msra.mxu0 0.0
        %1945 = vmatprep.subr.mxu0 0.0
        %1946 = vmatpush1.xpose.msra.mxu0 0.0
        %1947 = vmatprep.subr.mxu0 0.0
        %1948 = vmatpush1.xpose.msra.mxu0 0.0
        %1949 = vmatprep.subr.mxu0 0.0
        %1950 = vmatpush1.xpose.msra.mxu0 0.0
        %1951 = vmatprep.subr.mxu0 0.0
        %1952 = vmatpush1.xpose.msra.mxu0 0.0
        %1953 = vmatprep.subr.mxu0 0.0
        %1954 = vmatpush1.xpose.msra.mxu0 0.0
        %1955 = vmatprep.subr.mxu0 0.0
        %1956 = vmatpush1.xpose.msra.mxu0 0.0
        %1957 = vmatprep.subr.mxu0 0.0
        %1958 = vmatpush1.xpose.msra.mxu0 0.0
        %1959 = vmatprep.subr.mxu0 0.0
        %1960 = vmatpush1.xpose.msra.mxu0 0.0
        %1961 = vmatprep.subr.mxu0 0.0
        %1962 = vmatpush1.xpose.msra.mxu0 0.0
        %1963 = vmatprep.subr.mxu0 0.0
        %1964 = vmatpush1.xpose.msra.mxu0 0.0
        %1965 = vmatprep.subr.mxu0 0.0
        %1966 = vmatpush1.xpose.msra.mxu0 0.0
        %1967 = vmatprep.subr.mxu0 0.0
        %1968 = vmatpush1.xpose.msra.mxu0 0.0
        %1969 = vmatprep.subr.mxu0 0.0
        %1970 = vmatpush1.xpose.msra.mxu0 0.0
        %1971 = vmatprep.subr.mxu0 0.0
        %1972 = vmatpush1.xpose.msra.mxu0 0.0
        %1973 = vmatprep.subr.mxu0 0.0
        %1974 = vmatpush1.xpose.msra.mxu0 0.0
        %1975 = vmatprep.subr.mxu0 0.0
        %1976 = vmatpush1.xpose.msra.mxu0 0.0
        %1977 = vmatprep.subr.mxu0 0.0
        %1978 = vmatpush1.xpose.msra.mxu0 0.0
        %1979 = vmatprep.subr.mxu0 0.0
        %1980 = vmatpush1.xpose.msra.mxu0 0.0
        %1981 = vmatprep.subr.mxu0 0.0
        %1982 = vmatpush1.xpose.msra.mxu0 0.0
        %1983 = vmatprep.subr.mxu0 0.0
        %1984 = vmatpush1.xpose.msra.mxu0 0.0
        %1985 = vmatprep.subr.mxu0 0.0
        %1986 = vmatpush1.xpose.msra.mxu0 0.0
        %1987 = vmatprep.subr.mxu0 0.0
        %1988 = vmatpush1.xpose.msra.mxu0 0.0
        %1989 = vmatprep.subr.mxu0 0.0
        %1990 = vmatpush1.xpose.msra.mxu0 0.0
        %1991 = vmatprep.subr.mxu0 0.0
        %1992 = vmatpush1.xpose.msra.mxu0 0.0
        %1993 = vmatprep.subr.mxu0 0.0
        %1994 = vmatpush1.xpose.msra.mxu0 0.0
        %1995 = vmatprep.subr.mxu0 0.0
        %1996 = vmatpush1.xpose.msra.mxu0 0.0
        %1997 = vmatprep.subr.mxu0 0.0
        %1998 = vmatpush1.xpose.msra.mxu0 0.0
        %1999 = vmatprep.subr.mxu0 0.0
        %2000 = vmatpush1.xpose.msra.mxu0 0.0
        %2001 = vmatprep.mubr.f32.mxu0 0.0
        %2002 = vmatmul.mubr.f32.gmra.mrb[0].mxu0 %v1933
        %v2003 = vpop.f32.mrb[0].mxu0
        %v2004 = vadd.f32 0.0, %v2003
        %v2005 = vpop.f32.mrb[0].mxu0
        %2006 = vdwg.mxu0
        %v2007 = vmul.f32 %v2004, 0.35355338
        %v2008 = vadd.f32 %v2007, %v631
        %v2009 = vsel %vm551, %v2008, -inf
        %2010 = vmax.xlane.f32.xlu0 %v2009
        %v2011 = vpop.xlane.xlu0 %2010
        %v2012 = vsub.f32 %v2008, %v2011
        %v2013 = vmul.f32 %v2012, 1.442695
        %v2014 = vpow.pop %v2013
        %v2015 = vsel %vm551, %v2014, 0.0
        %2016 = vadd.xlane.f32.xlu0 %v2015
        %v2017 = vpop.xlane.xlu0 %2016
        %v2018 = vrcp.pop %v2017
        %v2019 = vmul.f32 %v2014, %v2018
        %2020 = vrot.lane.b32.xlu0 %v1591, 48
        %v2021 = vpop.permute.xlu0 %2020
        %v2024 = vsel %vm551, %v2019, 0
        %2026 = vmatprep.subr.mxu0 0.0
        %2027 = vmatpush1.msra.mxu0 %v2021
        %2028 = vmatprep.subr.mxu0 0.0
        %2029 = vmatpush1.msra.mxu0 0.0
        %2030 = vmatprep.subr.mxu0 0.0
        %2031 = vmatpush1.msra.mxu0 0.0
        %2032 = vmatprep.subr.mxu0 0.0
        %2033 = vmatpush1.msra.mxu0 0.0
        %2034 = vmatprep.subr.mxu0 0.0
        %2035 = vmatpush1.msra.mxu0 0.0
        %2036 = vmatprep.subr.mxu0 0.0
        %2037 = vmatpush1.msra.mxu0 0.0
        %2038 = vmatprep.subr.mxu0 0.0
        %2039 = vmatpush1.msra.mxu0 0.0
        %2040 = vmatprep.subr.mxu0 0.0
        %2041 = vmatpush1.msra.mxu0 0.0
        %2042 = vmatprep.subr.mxu0 0.0
        %2043 = vmatpush1.msra.mxu0 0.0
        %2044 = vmatprep.subr.mxu0 0.0
        %2045 = vmatpush1.msra.mxu0 0.0
        %2046 = vmatprep.subr.mxu0 0.0
        %2047 = vmatpush1.msra.mxu0 0.0
        %2048 = vmatprep.subr.mxu0 0.0
        %2049 = vmatpush1.msra.mxu0 0.0
        %2050 = vmatprep.subr.mxu0 0.0
        %2051 = vmatpush1.msra.mxu0 0.0
        %2052 = vmatprep.subr.mxu0 0.0
        %2053 = vmatpush1.msra.mxu0 0.0
        %2054 = vmatprep.subr.mxu0 0.0
        %2055 = vmatpush1.msra.mxu0 0.0
        %2056 = vmatprep.subr.mxu0 0.0
        %2057 = vmatpush1.msra.mxu0 0.0
        %2058 = vmatprep.subr.mxu0 0.0
        %2059 = vmatpush1.msra.mxu0 0.0
        %2060 = vmatprep.subr.mxu0 0.0
        %2061 = vmatpush1.msra.mxu0 0.0
        %2062 = vmatprep.subr.mxu0 0.0
        %2063 = vmatpush1.msra.mxu0 0.0
        %2064 = vmatprep.subr.mxu0 0.0
        %2065 = vmatpush1.msra.mxu0 0.0
        %2066 = vmatprep.subr.mxu0 0.0
        %2067 = vmatpush1.msra.mxu0 0.0
        %2068 = vmatprep.subr.mxu0 0.0
        %2069 = vmatpush1.msra.mxu0 0.0
        %2070 = vmatprep.subr.mxu0 0.0
        %2071 = vmatpush1.msra.mxu0 0.0
        %2072 = vmatprep.subr.mxu0 0.0
        %2073 = vmatpush1.msra.mxu0 0.0
        %2074 = vmatprep.subr.mxu0 0.0
        %2075 = vmatpush1.msra.mxu0 0.0
        %2076 = vmatprep.subr.mxu0 0.0
        %2077 = vmatpush1.msra.mxu0 0.0
        %2078 = vmatprep.subr.mxu0 0.0
        %2079 = vmatpush1.msra.mxu0 0.0
        %2080 = vmatprep.subr.mxu0 0.0
        %2081 = vmatpush1.msra.mxu0 0.0
        %2082 = vmatprep.subr.mxu0 0.0
        %2083 = vmatpush1.msra.mxu0 0.0
        %2084 = vmatprep.subr.mxu0 0.0
        %2085 = vmatpush1.msra.mxu0 0.0
        %2086 = vmatprep.subr.mxu0 0.0
        %2087 = vmatpush1.msra.mxu0 0.0
        %2088 = vmatprep.subr.mxu0 0.0
        %2089 = vmatpush1.msra.mxu0 0.0
        %2090 = vmatprep.mubr.f32.mxu0 0.0
        %2091 = vmatmul.mubr.f32.gmra.mrb[0].mxu0 %v2024
        %v2092 = vpop.f32.mrb[0].mxu0
        %v2093 = vadd.f32 0.0, %v2092
        %v2094 = vpop.f32.mrb[0].mxu0
        %2095 = vdwg.mxu0
        %2096 = vrot.lane.b32.xlu0 %v1591, 104
        %v2097 = vpop.permute.xlu0 %2096
        %2098 = vrot.lane.b32.xlu0 %v1591, 72
        %v2099 = vpop.permute.xlu0 %2098
        %v2100 = vsel %vm551, %v2097, 0
        %v2102 = vsel %vm551, %v2099, 0
        %2104 = vmatprep.subr.mxu0 0.0
        %2105 = vmatpush1.xpose.msra.mxu0 %v2102
        %2106 = vmatprep.subr.mxu0 0.0
        %2107 = vmatpush1.xpose.msra.mxu0 0.0
        %2108 = vmatprep.subr.mxu0 0.0
        %2109 = vmatpush1.xpose.msra.mxu0 0.0
        %2110 = vmatprep.subr.mxu0 0.0
        %2111 = vmatpush1.xpose.msra.mxu0 0.0
        %2112 = vmatprep.subr.mxu0 0.0
        %2113 = vmatpush1.xpose.msra.mxu0 0.0
        %2114 = vmatprep.subr.mxu0 0.0
        %2115 = vmatpush1.xpose.msra.mxu0 0.0
        %2116 = vmatprep.subr.mxu0 0.0
        %2117 = vmatpush1.xpose.msra.mxu0 0.0
        %2118 = vmatprep.subr.mxu0 0.0
        %2119 = vmatpush1.xpose.msra.mxu0 0.0
        %2120 = vmatprep.subr.mxu0 0.0
        %2121 = vmatpush1.xpose.msra.mxu0 0.0
        %2122 = vmatprep.subr.mxu0 0.0
        %2123 = vmatpush1.xpose.msra.mxu0 0.0
        %2124 = vmatprep.subr.mxu0 0.0
        %2125 = vmatpush1.xpose.msra.mxu0 0.0
        %2126 = vmatprep.subr.mxu0 0.0
        %2127 = vmatpush1.xpose.msra.mxu0 0.0
        %2128 = vmatprep.subr.mxu0 0.0
        %2129 = vmatpush1.xpose.msra.mxu0 0.0
        %2130 = vmatprep.subr.mxu0 0.0
        %2131 = vmatpush1.xpose.msra.mxu0 0.0
        %2132 = vmatprep.subr.mxu0 0.0
        %2133 = vmatpush1.xpose.msra.mxu0 0.0
        %2134 = vmatprep.subr.mxu0 0.0
        %2135 = vmatpush1.xpose.msra.mxu0 0.0
        %2136 = vmatprep.subr.mxu0 0.0
        %2137 = vmatpush1.xpose.msra.mxu0 0.0
        %2138 = vmatprep.subr.mxu0 0.0
        %2139 = vmatpush1.xpose.msra.mxu0 0.0
        %2140 = vmatprep.subr.mxu0 0.0
        %2141 = vmatpush1.xpose.msra.mxu0 0.0
        %2142 = vmatprep.subr.mxu0 0.0
        %2143 = vmatpush1.xpose.msra.mxu0 0.0
        %2144 = vmatprep.subr.mxu0 0.0
        %2145 = vmatpush1.xpose.msra.mxu0 0.0
        %2146 = vmatprep.subr.mxu0 0.0
        %2147 = vmatpush1.xpose.msra.mxu0 0.0
        %2148 = vmatprep.subr.mxu0 0.0
        %2149 = vmatpush1.xpose.msra.mxu0 0.0
        %2150 = vmatprep.subr.mxu0 0.0
        %2151 = vmatpush1.xpose.msra.mxu0 0.0
        %2152 = vmatprep.subr.mxu0 0.0
        %2153 = vmatpush1.xpose.msra.mxu0 0.0
        %2154 = vmatprep.subr.mxu0 0.0
        %2155 = vmatpush1.xpose.msra.mxu0 0.0
        %2156 = vmatprep.subr.mxu0 0.0
        %2157 = vmatpush1.xpose.msra.mxu0 0.0
        %2158 = vmatprep.subr.mxu0 0.0
        %2159 = vmatpush1.xpose.msra.mxu0 0.0
        %2160 = vmatprep.subr.mxu0 0.0
        %2161 = vmatpush1.xpose.msra.mxu0 0.0
        %2162 = vmatprep.subr.mxu0 0.0
        %2163 = vmatpush1.xpose.msra.mxu0 0.0
        %2164 = vmatprep.subr.mxu0 0.0
        %2165 = vmatpush1.xpose.msra.mxu0 0.0
        %2166 = vmatprep.subr.mxu0 0.0
        %2167 = vmatpush1.xpose.msra.mxu0 0.0
        %2168 = vmatprep.mubr.f32.mxu0 0.0
        %2169 = vmatmul.mubr.f32.gmra.mrb[0].mxu0 %v2100
        %v2170 = vpop.f32.mrb[0].mxu0
        %v2171 = vadd.f32 0.0, %v2170
        %v2172 = vpop.f32.mrb[0].mxu0
        %2173 = vdwg.mxu0
        %v2174 = vmul.f32 %v2171, 0.35355338
        %v2175 = vadd.f32 %v2174, %v631
        %v2176 = vsel %vm551, %v2175, -inf
        %2177 = vmax.xlane.f32.xlu0 %v2176
        %v2178 = vpop.xlane.xlu0 %2177
        %v2179 = vsub.f32 %v2175, %v2178
        %v2180 = vmul.f32 %v2179, 1.442695
        %v2181 = vpow.pop %v2180
        %v2182 = vsel %vm551, %v2181, 0.0
        %2183 = vadd.xlane.f32.xlu0 %v2182
        %v2184 = vpop.xlane.xlu0 %2183
        %v2185 = vrcp.pop %v2184
        %v2186 = vmul.f32 %v2181, %v2185
        %2187 = vrot.lane.b32.xlu0 %v1591, 40
        %v2188 = vpop.permute.xlu0 %2187
        %v2191 = vsel %vm551, %v2186, 0
        %2193 = vmatprep.subr.mxu0 0.0
        %2194 = vmatpush1.msra.mxu0 %v2188
        %2195 = vmatprep.subr.mxu0 0.0
        %2196 = vmatpush1.msra.mxu0 0.0
        %2197 = vmatprep.subr.mxu0 0.0
        %2198 = vmatpush1.msra.mxu0 0.0
        %2199 = vmatprep.subr.mxu0 0.0
        %2200 = vmatpush1.msra.mxu0 0.0
        %2201 = vmatprep.subr.mxu0 0.0
        %2202 = vmatpush1.msra.mxu0 0.0
        %2203 = vmatprep.subr.mxu0 0.0
        %2204 = vmatpush1.msra.mxu0 0.0
        %2205 = vmatprep.subr.mxu0 0.0
        %2206 = vmatpush1.msra.mxu0 0.0
        %2207 = vmatprep.subr.mxu0 0.0
        %2208 = vmatpush1.msra.mxu0 0.0
        %2209 = vmatprep.subr.mxu0 0.0
        %2210 = vmatpush1.msra.mxu0 0.0
        %2211 = vmatprep.subr.mxu0 0.0
        %2212 = vmatpush1.msra.mxu0 0.0
        %2213 = vmatprep.subr.mxu0 0.0
        %2214 = vmatpush1.msra.mxu0 0.0
        %2215 = vmatprep.subr.mxu0 0.0
        %2216 = vmatpush1.msra.mxu0 0.0
        %2217 = vmatprep.subr.mxu0 0.0
        %2218 = vmatpush1.msra.mxu0 0.0
        %2219 = vmatprep.subr.mxu0 0.0
        %2220 = vmatpush1.msra.mxu0 0.0
        %2221 = vmatprep.subr.mxu0 0.0
        %2222 = vmatpush1.msra.mxu0 0.0
        %2223 = vmatprep.subr.mxu0 0.0
        %2224 = vmatpush1.msra.mxu0 0.0
        %2225 = vmatprep.subr.mxu0 0.0
        %2226 = vmatpush1.msra.mxu0 0.0
        %2227 = vmatprep.subr.mxu0 0.0
        %2228 = vmatpush1.msra.mxu0 0.0
        %2229 = vmatprep.subr.mxu0 0.0
        %2230 = vmatpush1.msra.mxu0 0.0
        %2231 = vmatprep.subr.mxu0 0.0
        %2232 = vmatpush1.msra.mxu0 0.0
        %2233 = vmatprep.subr.mxu0 0.0
        %2234 = vmatpush1.msra.mxu0 0.0
        %2235 = vmatprep.subr.mxu0 0.0
        %2236 = vmatpush1.msra.mxu0 0.0
        %2237 = vmatprep.subr.mxu0 0.0
        %2238 = vmatpush1.msra.mxu0 0.0
        %2239 = vmatprep.subr.mxu0 0.0
        %2240 = vmatpush1.msra.mxu0 0.0
        %2241 = vmatprep.subr.mxu0 0.0
        %2242 = vmatpush1.msra.mxu0 0.0
        %2243 = vmatprep.subr.mxu0 0.0
        %2244 = vmatpush1.msra.mxu0 0.0
        %2245 = vmatprep.subr.mxu0 0.0
        %2246 = vmatpush1.msra.mxu0 0.0
        %2247 = vmatprep.subr.mxu0 0.0
        %2248 = vmatpush1.msra.mxu0 0.0
        %2249 = vmatprep.subr.mxu0 0.0
        %2250 = vmatpush1.msra.mxu0 0.0
        %2251 = vmatprep.subr.mxu0 0.0
        %2252 = vmatpush1.msra.mxu0 0.0
        %2253 = vmatprep.subr.mxu0 0.0
        %2254 = vmatpush1.msra.mxu0 0.0
        %2255 = vmatprep.subr.mxu0 0.0
        %2256 = vmatpush1.msra.mxu0 0.0
        %2257 = vmatprep.mubr.f32.mxu0 0.0
        %2258 = vmatmul.mubr.f32.gmra.mrb[0].mxu0 %v2191
        %v2259 = vpop.f32.mrb[0].mxu0
        %v2260 = vadd.f32 0.0, %v2259
        %v2261 = vpop.f32.mrb[0].mxu0
        %2262 = vdwg.mxu0
        %2264 = vrot.lane.b32.xlu0 %v1926, 8
        %v2265 = vpop.permute.xlu0 %2264
        %2268 = vrot.lane.b32.xlu0 %v2093, 16
        %v2269 = vpop.permute.xlu0 %2268
        %2272 = vrot.lane.b32.xlu0 %v2260, 24
        %v2273 = vpop.permute.xlu0 %2272
        %v2275 = vsel %vm551, %v1759, %v2265
        %v2276 = vsel %vm1235, %v2275, %v2269
        %v2277 = vsel %vm1237, %v2276, %v2273
        %v2278 = vpack.c.bf16 %v2277, %v2277
        %s2279 = scalar_lea.vmem %s4, 16
        %v2280 = vld [vmem:[%s2279] sm:$0xf]
        %v2281 = vld [vmem:[%s2279 + $0x4] sm:$0xf]
        %v2282 = vld [vmem:[%s2279 + $0x8] sm:$0xf]
        %v2283 = vld [vmem:[%s2279 + $0xc] sm:$0xf]
        %s2284 = scalar_lea.vmem %s5, 1
        %v2285 = vld [vmem:[%s2284] sm:$0x1]
        %v2287 = vlaneseq
        %v2288 = vshrl.u32 %v2287, 7
        %v2289 = vsub.s32 0, %v2288
        %v2290 = vrot.slane %v2285, %v2289
        %v2296 = vunpack.c.l.b16 %v2280
        %v2297 = vunpack.c.l.b16 %v2281
        %v2298 = vunpack.c.l.b16 %v2282
        %v2299 = vunpack.c.l.b16 %v2283
        %v2300 = vpack.c.b16 %v2297, %v2296
        %v2301 = vpack.c.b16 %v2299, %v2298
        %v2305 = vsel %vm504, %v2278, 0
        %2307 = vmatprep.subr.bf16.mxu0 0
        %2308 = vmatpush1.bf16.msra.mxu0 %v2300
        %2309 = vmatprep.subr.bf16.mxu0 0
        %2310 = vmatpush1.bf16.msra.mxu0 %v2301
        %2311 = vmatprep.subr.bf16.mxu0 0
        %2312 = vmatpush1.bf16.msra.mxu0 0
        %2313 = vmatprep.subr.bf16.mxu0 0
        %2314 = vmatpush1.bf16.msra.mxu0 0
        %2315 = vmatprep.subr.bf16.mxu0 0
        %2316 = vmatpush1.bf16.msra.mxu0 0
        %2317 = vmatprep.subr.bf16.mxu0 0
        %2318 = vmatpush1.bf16.msra.mxu0 0
        %2319 = vmatprep.subr.bf16.mxu0 0
        %2320 = vmatpush1.bf16.msra.mxu0 0
        %2321 = vmatprep.subr.bf16.mxu0 0
        %2322 = vmatpush1.bf16.msra.mxu0 0
        %2323 = vmatprep.subr.bf16.mxu0 0
        %2324 = vmatpush1.bf16.msra.mxu0 0
        %2325 = vmatprep.subr.bf16.mxu0 0
        %2326 = vmatpush1.bf16.msra.mxu0 0
        %2327 = vmatprep.subr.bf16.mxu0 0
        %2328 = vmatpush1.bf16.msra.mxu0 0
        %2329 = vmatprep.subr.bf16.mxu0 0
        %2330 = vmatpush1.bf16.msra.mxu0 0
        %2331 = vmatprep.subr.bf16.mxu0 0
        %2332 = vmatpush1.bf16.msra.mxu0 0
        %2333 = vmatprep.subr.bf16.mxu0 0
        %2334 = vmatpush1.bf16.msra.mxu0 0
        %2335 = vmatprep.subr.bf16.mxu0 0
        %2336 = vmatpush1.bf16.msra.mxu0 0
        %2337 = vmatprep.subr.bf16.mxu0 0
        %2338 = vmatpush1.bf16.msra.mxu0 0
        %2339 = vmatprep.mubr.bf16.mxu0 0
        %2340 = vmatmul.mubr.bf16.gmra.mrb[0].mxu0 %v2305
        %v2341 = vpop.f32.mrb[0].mxu0
        %v2342 = vadd.f32 %v2290, %v2341
        %v2343 = vpop.f32.mrb[0].mxu0
        %v2344 = vpop.f32.mrb[0].mxu0
        %v2345 = vpop.f32.mrb[0].mxu0
        %2346 = vdwg.mxu0
        %v2347 = vadd.f32 %v2342, %v1526
        %s2348 = scalar_lea.vmem %s10, 1
        %v2349 = vld [vmem:[%s2348] sm:$0x1]
        %s2350 = scalar_lea.vmem %s11, 1
        %v2351 = vld [vmem:[%s2350] sm:$0x1]
        %v2352 = vsel %vm504, %v2347, 0.0
        %2353 = vadd.xlane.f32.xlu0 %v2352
        %v2354 = vpop.xlane.xlu0 %2353
        %v2355 = vmul.f32 %v2354, %v1312
        %v2356 = vsub.f32 %v2347, %v2355
        %v2357 = vmul.f32 %v2356, %v2356
        %v2358 = vsel %vm504, %v2357, 0.0
        %2359 = vadd.xlane.f32.xlu0 %v2358
        %v2360 = vpop.xlane.xlu0 %2359
        %v2361 = vmul.f32 %v2360, %v1312
        %v2362 = vadd.f32 %v2361, 1e-05
        %v2363 = vrsqrt.pop %v2362
        %v2364 = vmul.f32 %v2356, %v2363
        %v2366 = vlaneseq
        %v2367 = vshrl.u32 %v2366, 7
        %v2368 = vsub.s32 0, %v2367
        %v2369 = vrot.slane %v2349, %v2368
        %v2371 = vmul.f32 %v2364, %v2369
        %v2373 = vlaneseq
        %v2374 = vshrl.u32 %v2373, 7
        %v2375 = vsub.s32 0, %v2374
        %v2376 = vrot.slane %v2351, %v2375
        %v2378 = vadd.f32 %v2371, %v2376
        %v2379 = vpack.c.bf16 %v2378, %v2378
        %s2380 = scalar_lea.vmem %s6, 16
        %v2381 = vld [vmem:[%s2380] sm:$0xf]
        %v2382 = vld [vmem:[%s2380 + $0x4] sm:$0xf]
        %v2383 = vld [vmem:[%s2380 + $0x8] sm:$0xf]
        %v2384 = vld [vmem:[%s2380 + $0xc] sm:$0xf]
        %s2385 = scalar_lea.vmem %s7, 1
        %v2386 = vld [vmem:[%s2385] sm:$0x1]
        %v2388 = vlaneseq
        %v2389 = vshrl.u32 %v2388, 7
        %v2390 = vsub.s32 0, %v2389
        %v2391 = vrot.slane %v2386, %v2390
        %v2397 = vunpack.c.l.b16 %v2381
        %v2398 = vunpack.c.l.b16 %v2382
        %v2399 = vunpack.c.l.b16 %v2383
        %v2400 = vunpack.c.l.b16 %v2384
        %v2401 = vpack.c.b16 %v2398, %v2397
        %v2402 = vpack.c.b16 %v2400, %v2399
        %v2406 = vsel %vm504, %v2379, 0
        %2408 = vmatprep.subr.bf16.mxu0 0
        %2409 = vmatpush1.bf16.msra.mxu0 %v2401
        %2410 = vmatprep.subr.bf16.mxu0 0
        %2411 = vmatpush1.bf16.msra.mxu0 %v2402
        %2412 = vmatprep.subr.bf16.mxu0 0
        %2413 = vmatpush1.bf16.msra.mxu0 0
        %2414 = vmatprep.subr.bf16.mxu0 0
        %2415 = vmatpush1.bf16.msra.mxu0 0
        %2416 = vmatprep.subr.bf16.mxu0 0
        %2417 = vmatpush1.bf16.msra.mxu0 0
        %2418 = vmatprep.subr.bf16.mxu0 0
        %2419 = vmatpush1.bf16.msra.mxu0 0
        %2420 = vmatprep.subr.bf16.mxu0 0
        %2421 = vmatpush1.bf16.msra.mxu0 0
        %2422 = vmatprep.subr.bf16.mxu0 0
        %2423 = vmatpush1.bf16.msra.mxu0 0
        %2424 = vmatprep.subr.bf16.mxu0 0
        %2425 = vmatpush1.bf16.msra.mxu0 0
        %2426 = vmatprep.subr.bf16.mxu0 0
        %2427 = vmatpush1.bf16.msra.mxu0 0
        %2428 = vmatprep.subr.bf16.mxu0 0
        %2429 = vmatpush1.bf16.msra.mxu0 0
        %2430 = vmatprep.subr.bf16.mxu0 0
        %2431 = vmatpush1.bf16.msra.mxu0 0
        %2432 = vmatprep.subr.bf16.mxu0 0
        %2433 = vmatpush1.bf16.msra.mxu0 0
        %2434 = vmatprep.subr.bf16.mxu0 0
        %2435 = vmatpush1.bf16.msra.mxu0 0
        %2436 = vmatprep.subr.bf16.mxu0 0
        %2437 = vmatpush1.bf16.msra.mxu0 0
        %2438 = vmatprep.subr.bf16.mxu0 0
        %2439 = vmatpush1.bf16.msra.mxu0 0
        %2440 = vmatprep.mubr.bf16.mxu0 0
        %2441 = vmatmul.mubr.bf16.gmra.mrb[0].mxu0 %v2406
        %v2442 = vpop.f32.mrb[0].mxu0
        %v2443 = vadd.f32 %v2391, %v2442
        %v2444 = vpop.f32.mrb[0].mxu0
        %v2445 = vpop.f32.mrb[0].mxu0
        %v2446 = vpop.f32.mrb[0].mxu0
        %2447 = vdwg.mxu0
        %v2448 = vmul.f32 %v2443, 0.5
        %v2449 = vmul.f32 %v2443, 0.044715
        %v2450 = vmul.f32 %v2449, %v2443
        %v2451 = vmul.f32 %v2450, %v2443
        %v2452 = vadd.f32 %v2443, %v2451
        %v2453 = vmul.f32 %v2452, 0.7978846
        %v2454 = vtanh.pop %v2453
        %v2455 = vadd.f32 %v2454, 1.0
        %v2456 = vmul.f32 %v2448, %v2455
        %v2457 = vpack.c.bf16 %v2456, %v2456
        %s2458 = scalar_lea.vmem %s8, 32
        %v2459 = vld [vmem:[%s2458] sm:$0xf]
        %v2460 = vld [vmem:[%s2458 + $0x4] sm:$0xf]
        %v2461 = vld [vmem:[%s2458 + $0x8] sm:$0xf]
        %v2462 = vld [vmem:[%s2458 + $0xc] sm:$0xf]
        %v2463 = vld [vmem:[%s2458 + $0x10] sm:$0xf]
        %v2464 = vld [vmem:[%s2458 + $0x14] sm:$0xf]
        %v2465 = vld [vmem:[%s2458 + $0x18] sm:$0xf]
        %v2466 = vld [vmem:[%s2458 + $0x1c] sm:$0xf]
        %s2467 = scalar_lea.vmem %s9, 1
        %v2468 = vld [vmem:[%s2467] sm:$0x1]
        %v2470 = vlaneseq
        %v2471 = vshrl.u32 %v2470, 7
        %v2472 = vsub.s32 0, %v2471
        %v2473 = vrot.slane %v2468, %v2472
        %v2483 = vunpack.c.l.b16 %v2459
        %v2484 = vunpack.c.l.b16 %v2460
        %v2485 = vunpack.c.l.b16 %v2461
        %v2486 = vunpack.c.l.b16 %v2462
        %v2487 = vunpack.c.l.b16 %v2463
        %v2488 = vunpack.c.l.b16 %v2464
        %v2489 = vunpack.c.l.b16 %v2465
        %v2490 = vunpack.c.l.b16 %v2466
        %v2491 = vpack.c.b16 %v2484, %v2483
        %v2492 = vpack.c.b16 %v2486, %v2485
        %v2493 = vpack.c.b16 %v2488, %v2487
        %v2494 = vpack.c.b16 %v2490, %v2489
        %v2500 = vsel %vm1453, %v2457, 0
        %2502 = vmatprep.subr.bf16.mxu0 0
        %2503 = vmatpush1.bf16.msra.mxu0 %v2491
        %2504 = vmatprep.subr.bf16.mxu0 0
        %2505 = vmatpush1.bf16.msra.mxu0 %v2492
        %2506 = vmatprep.subr.bf16.mxu0 0
        %2507 = vmatpush1.bf16.msra.mxu0 %v2493
        %2508 = vmatprep.subr.bf16.mxu0 0
        %2509 = vmatpush1.bf16.msra.mxu0 %v2494
        %2510 = vmatprep.subr.bf16.mxu0 0
        %2511 = vmatpush1.bf16.msra.mxu0 0
        %2512 = vmatprep.subr.bf16.mxu0 0
        %2513 = vmatpush1.bf16.msra.mxu0 0
        %2514 = vmatprep.subr.bf16.mxu0 0
        %2515 = vmatpush1.bf16.msra.mxu0 0
        %2516 = vmatprep.subr.bf16.mxu0 0
        %2517 = vmatpush1.bf16.msra.mxu0 0
        %2518 = vmatprep.subr.bf16.mxu0 0
        %2519 = vmatpush1.bf16.msra.mxu0 0
        %2520 = vmatprep.subr.bf16.mxu0 0
        %2521 = vmatpush1.bf16.msra.mxu0 0
        %2522 = vmatprep.subr.bf16.mxu0 0
        %2523 = vmatpush1.bf16.msra.mxu0 0
        %2524 = vmatprep.subr.bf16.mxu0 0
        %2525 = vmatpush1.bf16.msra.mxu0 0
        %2526 = vmatprep.subr.bf16.mxu0 0
        %2527 = vmatpush1.bf16.msra.mxu0 0
        %2528 = vmatprep.subr.bf16.mxu0 0
        %2529 = vmatpush1.bf16.msra.mxu0 0
        %2530 = vmatprep.subr.bf16.mxu0 0
        %2531 = vmatpush1.bf16.msra.mxu0 0
        %2532 = vmatprep.subr.bf16.mxu0 0
        %2533 = vmatpush1.bf16.msra.mxu0 0
        %2534 = vmatprep.mubr.bf16.mxu0 0
        %2535 = vmatmul.mubr.bf16.gmra.mrb[0].mxu0 %v2500
        %v2536 = vpop.f32.mrb[0].mxu0
        %v2537 = vadd.f32 %v2473, %v2536
        %v2538 = vpop.f32.mrb[0].mxu0
        %v2539 = vpop.f32.mrb[0].mxu0
        %v2540 = vpop.f32.mrb[0].mxu0
        %2541 = vdwg.mxu0
        %v2542 = vadd.f32 %v2537, %v2378
        %s2543 = scalar_lea.vmem %s12, 1
        %v2544 = vld [vmem:[%s2543] sm:$0x1]
        %s2545 = scalar_lea.vmem %s13, 1
        %v2546 = vld [vmem:[%s2545] sm:$0x1]
        %v2547 = vsel %vm504, %v2542, 0.0
        %2548 = vadd.xlane.f32.xlu0 %v2547
        %v2549 = vpop.xlane.xlu0 %2548
        %v2550 = vmul.f32 %v2549, %v1312
        %v2551 = vsub.f32 %v2542, %v2550
        %v2552 = vmul.f32 %v2551, %v2551
        %v2553 = vsel %vm504, %v2552, 0.0
        %2554 = vadd.xlane.f32.xlu0 %v2553
        %v2555 = vpop.xlane.xlu0 %2554
        %v2556 = vmul.f32 %v2555, %v1312
        %v2557 = vadd.f32 %v2556, 1e-05
        %v2558 = vrsqrt.pop %v2557
        %v2559 = vmul.f32 %v2551, %v2558
        %v2561 = vlaneseq
        %v2562 = vshrl.u32 %v2561, 7
        %v2563 = vsub.s32 0, %v2562
        %v2564 = vrot.slane %v2544, %v2563
        %v2566 = vmul.f32 %v2559, %v2564
        %v2568 = vlaneseq
        %v2569 = vshrl.u32 %v2568, 7
        %v2570 = vsub.s32 0, %v2569
        %v2571 = vrot.slane %v2546, %v2570
        %v2573 = vadd.f32 %v2566, %v2571
        %2574 = vst.msk [vmem:[%s469] sm:$0xff] %vm504, %v2573
        %s2575 = sand.u32 %s340, 1
        %s2576 = scalar_lea.sflag [#allocation3], %s2575
        %s2577 = sand.u32 %s340, 1
        %s2578 = smul.addr %s2577, 8
        %s2579 = scalar_lea.vmem [#allocation2], %s2578
        // Predicated region
        $region77: #{bert_forward.1} parent=75 // pred_check
          %p2580 = pneg %p350
        $region78: #{bert_forward.1} parent=75 // pred_check_branch
          %2582 = sbr.rel (%p2580) target = $region80
        $region79: #{bert_forward.1} parent=75 // pred_region
          %s2584 = ssub.s32 128, 128
          %2585 = vsyncadd %s2576, %s2584
          %s2586 = smul.addr %s28, 128
          %s2587 = scalar_lea.hbm %s14, %s2586
          %s2589 = sshll.u32 %s2579, 4
          %s2590 = int_to_ptr.vmem [resolvable:$true] %s2589
          %2592 = dma.vmem_to_hbm [thread:$0]  %s2590, 128, %s2587, %s2576
        $region80: #{bert_forward.1} parent=75 // pred_fallthru
          _
      $region76: #{bert_forward.1} parent=5 // pred_fallthru
        _
      %p2593 = scmp.le.s32.totalorder 2, %s23
      // Predicated region
      $region81: #{bert_forward.1} parent=5 // pred_check
        %p2594 = pneg %p2593
      $region82: #{bert_forward.1} parent=5 // pred_check_branch
        %2596 = sbr.rel (%p2594) target = $region84
      $region83: #{bert_forward.1} parent=5 // pred_region
        %s2597 = ssub.s32 %s23, 2
        // Predicated region
        $region85: #{bert_forward.1} parent=83 // pred_check
          %p2598 = pneg %p356
        $region86: #{bert_forward.1} parent=83 // pred_check_branch
          %2600 = sbr.rel (%p2598) target = $region88
        $region87: #{bert_forward.1} parent=83 // pred_region
          %s2601 = sand.u32 %s341, 1
          %s2602 = scalar_lea.sflag [#allocation3], %s2601
          %s2603 = sand.u32 %s341, 1
          %s2604 = smul.addr %s2603, 8
          %s2605 = scalar_lea.vmem [#allocation2], %s2604
          %2606 = dma.done %s2602, 128
        $region88: #{bert_forward.1} parent=83 // pred_fallthru
          _
      $region84: #{bert_forward.1} parent=5 // pred_fallthru
        _
    $region6: #{bert_forward.1} parent=1 // loop_footer
      %s27 = sadd.s32 1, %s23
    $region7: #{bert_forward.1} parent=1 // loop_footer_branch
      %22 = sbr.rel target = $region3
    $region8: #{bert_forward.1} parent=1 // loop_exit
      _
    %2607 = vsyncpa [#allocation3], 1
    %s2608 = scalar_lea.sflag [#allocation3], 1
    %2609 = vsyncpa %s2608, 1

</llo_original>
